<compile_context>
chip_gen: v6e
topology: v6e:2x2x1
jax: 0.10.0
libtpu: 0.0.40
codegen_flags: <defaults>
</compile_context>

<pallas_src>
import functools

import jax
import jax.numpy as jnp
from jax.experimental import pallas as pl
from jax.experimental.pallas import tpu as pltpu


_MAX_TIME_TILE = 512  # default rows (sublane axis) per output tile


def _round_up(x, m):
    return (x + m - 1) // m * m


def _tiling(l, k, itemsize, time_tile=None):
    """Pick (time_tile, num_tiles, halo_slot_rows)."""
    align = 8 * max(1, 4 // itemsize)          # 8 rows (f32) / 16 rows (bf16)
    hp = _round_up(max(k - 1, 1), align)       # sublane-aligned halo slot
    cap = _MAX_TIME_TILE if time_tile is None else time_tile
    cap = max(_round_up(cap, align), hp)       # tile must cover the halo (carry copy)
    tl = l if l <= cap else cap
    return tl, pl.cdiv(l, tl), hp


def _weight_norm(v, g):
    """PyTorch weight_norm (dim=0) for Conv1d: w = g * v / ||v||, per out-channel."""
    norm = jnp.sqrt(jnp.sum(jnp.square(v), axis=(1, 2), keepdims=True))
    return g * v / norm


# ---------------------------------------------------------------------------
# Kernels (time-major blocks: rows = time (sublanes), lanes = channels)
# ---------------------------------------------------------------------------

def _block_kernel(*refs, k, tl, hp, has_ds):
    """One fused TemporalBlock for one (batch, time-tile) grid step.

    refs (in order):
      w1 (K, C_in, C_out), b1 (1, C_out), w2 (K, C_out, C_out), b2 (1, C_out),
      [wd (C_in, C_out), bd (1, C_out)],               # optional 1x1 downsample
      x (TL, C_in),                                    # current input tile
      o (TL, C_out),                                   # output tile
      xe (HP+TL, C_in) f32, he (HP+TL, C_out) f32      # halo-carry scratch
    """
    if has_ds:
        (w1_ref, b1_ref, w2_ref, b2_ref, wd_ref, bd_ref,
         x_ref, o_ref, xe_ref, he_ref) = refs
    else:
        (w1_ref, b1_ref, w2_ref, b2_ref,
         x_ref, o_ref, xe_ref, he_ref) = refs
        wd_ref = bd_ref = None

    t = pl.program_id(1)
    o0 = hp - (k - 1)              # first scratch row read by tap 0

    # New batch element: reset the carried halos to the causal zero padding
    # (== Conv1d(padding=k-1) + Chomp1d(k-1), for both conv1's input and conv2's h1).
    @pl.when(t == 0)
    def _():
        xe_ref[...] = jnp.zeros_like(xe_ref)
        he_ref[...] = jnp.zeros_like(he_ref)

    # Stage the current input tile behind the carried halo (sublane-aligned store).
    xe_ref[hp:hp + tl, :] = x_ref[...].astype(xe_ref.dtype)

    def causal_conv(ext_ref, w_ref):
        # ext row (o0 + i + j) holds input time (t*tl + i - (k-1) + j); tap j uses
        # w[:, :, j].T  (weights were pre-transposed to (K, C_in, C_out)).
        acc = jnp.dot(ext_ref[o0:o0 + tl, :], w_ref[0].astype(jnp.float32),
                      preferred_element_type=jnp.float32)
        for j in range(1, k):      # static unroll over taps -> K MXU matmuls
            acc = acc + jnp.dot(ext_ref[o0 + j:o0 + j + tl, :],
                                w_ref[j].astype(jnp.float32),
                                preferred_element_type=jnp.float32)
        return acc

    # conv1 + bias + ReLU (dropout = identity in eval mode), kept in VMEM.
    h1 = jnp.maximum(causal_conv(xe_ref, w1_ref) + b1_ref[...], 0.0)
    he_ref[hp:hp + tl, :] = h1.astype(he_ref.dtype)

    # conv2 + bias + ReLU on the in-VMEM intermediate (no HBM round trip for h1).
    out = jnp.maximum(causal_conv(he_ref, w2_ref) + b2_ref[...], 0.0)

    # Residual (identity, or fused 1x1 downsample matmul) + final ReLU.
    if has_ds:
        res = jnp.dot(x_ref[...], wd_ref[...],
                      preferred_element_type=jnp.float32) + bd_ref[...]
    else:
        res = x_ref[...].astype(jnp.float32)
    o_ref[...] = jnp.maximum(out + res, 0.0).astype(o_ref.dtype)

    # Carry the trailing rows into the halo slot for the next time tile
    # (aligned copy; skipped on the last tile of this batch element).
    @pl.when(t != pl.num_programs(1) - 1)
    def _():
        xe_ref[0:hp, :] = xe_ref[tl:tl + hp, :]
        he_ref[0:hp, :] = he_ref[tl:tl + hp, :]


def _pointwise_kernel(w_ref, b_ref, x_ref, o_ref):
    """o = x @ Wd^T + bd  (TemporalBlock with kernel_size == 1 and a downsample)."""
    o_ref[...] = (jnp.dot(x_ref[...], w_ref[...],
                          preferred_element_type=jnp.float32)
                  + b_ref[...]).astype(o_ref.dtype)


# ---------------------------------------------------------------------------
# Pallas wrappers
# ---------------------------------------------------------------------------

def _fused_temporal_block(x, w1, b1, w2, b2, wd=None, bd=None, *, time_tile=None):
    """Full TemporalBlock (k >= 2), one pallas_call.

    x  : (N, L, C_in) time-major activations
    w1 : (C_out, C_in, K), w2 : (C_out, C_out, K)   PyTorch Conv1d weight layout
    wd : (C_out, C_in) or None (1x1 downsample), bd : (C_out,) or None
    """
    n, l, c_in = x.shape
    c_out, c_in_w, k = w1.shape
    assert c_in_w == c_in and w2.shape == (c_out, c_out, k) and k >= 2
    act_dt = x.dtype
    isz = jnp.dtype(act_dt).itemsize
    tl, n_t, hp = _tiling(l, k, isz, time_tile)
    has_ds = wd is not None

    # Tap-major transposed weights: w_t[j] == w[:, :, j].T, a clean (C_in, C_out) tile.
    w1_t = jnp.transpose(w1, (2, 1, 0)).astype(act_dt)
    w2_t = jnp.transpose(w2, (2, 1, 0)).astype(act_dt)
    b1_2d = b1.astype(jnp.float32).reshape(1, c_out)
    b2_2d = b2.astype(jnp.float32).reshape(1, c_out)

    in_specs = [
        pl.BlockSpec((k, c_in, c_out), lambda b, t: (0, 0, 0)),    # resident w1
        pl.BlockSpec((1, c_out), lambda b, t: (0, 0)),             # resident b1
        pl.BlockSpec((k, c_out, c_out), lambda b, t: (0, 0, 0)),   # resident w2
        pl.BlockSpec((1, c_out), lambda b, t: (0, 0)),             # resident b2
    ]
    args = [w1_t, b1_2d, w2_t, b2_2d]
    if has_ds:
        in_specs += [pl.BlockSpec((c_in, c_out), lambda b, t: (0, 0)),   # Wd^T
                     pl.BlockSpec((1, c_out), lambda b, t: (0, 0))]      # bd
        args += [jnp.transpose(wd).astype(act_dt),
                 bd.astype(jnp.float32).reshape(1, c_out)]
    in_specs.append(pl.BlockSpec((None, tl, c_in), lambda b, t: (b, t, 0)))  # x tile
    args.append(x)

    # Halo-carry scratch: kept f32 so the tap-window reads stay in 32-bit layout.
    scratch = [pltpu.VMEM((hp + tl, c_in), jnp.float32),
               pltpu.VMEM((hp + tl, c_out), jnp.float32)]

    # Explicit VMEM budget (blocks are double-buffered by the pipeline).
    blk_bytes = ((k * c_in * c_out + k * c_out * c_out) * isz + 2 * c_out * 4
                 + tl * (c_in + c_out) * isz)
    if has_ds:
        blk_bytes += c_in * c_out * isz + c_out * 4
    scratch_bytes = (hp + tl) * (c_in + c_out) * 4
    vmem_limit = int(min(max(2 * blk_bytes + scratch_bytes + (8 << 20), 32 << 20),
                         100 << 20))

    flops = 2 * n * l * k * c_out * (c_in + c_out)
    if has_ds:
        flops += 2 * n * l * c_in * c_out
    bytes_acc = (n * l * (c_in + c_out) * isz
                 + (k * c_in * c_out + k * c_out * c_out) * isz + 2 * c_out * 4)
    if has_ds:
        bytes_acc += c_in * c_out * isz + c_out * 4

    return pl.pallas_call(
        functools.partial(_block_kernel, k=k, tl=tl, hp=hp, has_ds=has_ds),
        out_shape=jax.ShapeDtypeStruct((n, l, c_out), act_dt),
        grid=(n, n_t),
        in_specs=in_specs,
        out_specs=pl.BlockSpec((None, tl, c_out), lambda b, t: (b, t, 0)),
        scratch_shapes=scratch,
        compiler_params=pltpu.CompilerParams(
            # batch: megacore-shardable; time: sequential (halo carry in scratch).
            dimension_semantics=("parallel", "arbitrary"),
            vmem_limit_bytes=vmem_limit),
        cost_estimate=pl.CostEstimate(flops=int(flops), transcendentals=0,
                                      bytes_accessed=int(bytes_acc)),
    )(*args)


def _pointwise_conv(x, wd, bd, *, time_tile=None):
    """1x1 downsample conv only (TemporalBlock with kernel_size == 1)."""
    n, l, c_in = x.shape
    c_out = wd.shape[0]
    act_dt = x.dtype
    isz = jnp.dtype(act_dt).itemsize
    tl, n_t, _ = _tiling(l, 1, isz, time_tile)
    return pl.pallas_call(
        _pointwise_kernel,
        out_shape=jax.ShapeDtypeStruct((n, l, c_out), act_dt),
        grid=(n, n_t),
        in_specs=[pl.BlockSpec((c_in, c_out), lambda b, t: (0, 0)),
                  pl.BlockSpec((1, c_out), lambda b, t: (0, 0)),
                  pl.BlockSpec((None, tl, c_in), lambda b, t: (b, t, 0))],
        out_specs=pl.BlockSpec((None, tl, c_out), lambda b, t: (b, t, 0)),
        compiler_params=pltpu.CompilerParams(
            dimension_semantics=("parallel", "parallel")),
        cost_estimate=pl.CostEstimate(
            flops=2 * n * l * c_in * c_out, transcendentals=0,
            bytes_accessed=int(n * l * (c_in + c_out) * isz
                               + c_in * c_out * isz + c_out * 4)),
    )(jnp.transpose(wd).astype(act_dt),
      bd.astype(jnp.float32).reshape(1, c_out), x)


# ---------------------------------------------------------------------------
# Module-level forward (matches PyTorch TemporalConvNetV4.forward, eval mode)
# ---------------------------------------------------------------------------

def temporal_block_forward(x, p, *, time_tile=None):
    """One TemporalBlock (eval-mode forward).  x: (N, L, C_in) time-major."""
    k = p["kernel_size"]
    if k == 1:
        # PyTorch: return res (x or downsample(x)); no conv path, no final ReLU.
        if p["wd"] is None:
            return x
        return _pointwise_conv(x, p["wd"], p["bd"], time_tile=time_tile)
    w1 = _weight_norm(p["v1"], p["g1"])
    w2 = _weight_norm(p["v2"], p["g2"])
    return _fused_temporal_block(x, w1, p["b1"], w2, p["b2"], p["wd"], p["bd"],
                                 time_tile=time_tile)


def temporal_conv_net_v4_forward(x, layers, *, act_dtype=None, time_tile=None):
    """TemporalConvNetV4.forward.  x: (N, L, num_inputs).

    Returns the list of per-layer outputs, each (N, L, C_i) — identical to the
    PyTorch module's `outs` (which permutes back to NLC after every layer).
    Keeping the time-major layout end-to-end makes both permutes no-ops.
    act_dtype=jnp.bfloat16 stores activations/weights in bf16 (f32 accumulation).
    """
    h = x if act_dtype is None else x.astype(act_dtype)
    outs = []
    for p in layers:
        h = temporal_block_forward(h, p, time_tile=time_tile)
        outs.append(h)
    return outs


def init_tcn_params(key, num_inputs, num_channels, kernel_size=2, model_type="lskt"):
    layers = []
    for i, c_out in enumerate(num_channels):
        k = kernel_size * 2 ** i if model_type != "lsktsk" else kernel_size
        c_in = num_inputs if i == 0 else num_channels[i - 1]
        key, k1, k2, k3, k4, k5, k6, k7, k8 = jax.random.split(key, 9)
        p = {
            "kernel_size": k,
            "v1": 0.01 * jax.random.normal(k1, (c_out, c_in, k), jnp.float32),
            "g1": 1.0 + 0.1 * jax.random.normal(k2, (c_out, 1, 1), jnp.float32),
            "b1": 0.1 * jax.random.normal(k3, (c_out,), jnp.float32),
            "v2": 0.01 * jax.random.normal(k4, (c_out, c_out, k), jnp.float32),
            "g2": 1.0 + 0.1 * jax.random.normal(k5, (c_out, 1, 1), jnp.float32),
            "b2": 0.1 * jax.random.normal(k6, (c_out,), jnp.float32),
            "wd": None,
            "bd": None,
        }
        if c_in != c_out:
            p["wd"] = 0.01 * jax.random.normal(k7, (c_out, c_in), jnp.float32)
            p["bd"] = 0.1 * jax.random.normal(k8, (c_out,), jnp.float32)
        layers.append(p)
    return layers


# ---------------------------------------------------------------------------
# Pure-JAX reference of the PyTorch forward (for verification), all f32
# ---------------------------------------------------------------------------

def _ref_causal_conv(x, w, b):
    n, l, _ = x.shape
    c_out, _, k = w.shape
    xp = jnp.pad(x.astype(jnp.float32), ((0, 0), (k - 1, 0), (0, 0)))
    out = jnp.zeros((n, l, c_out), jnp.float32)
    for j in range(k):
        out = out + jnp.einsum("nlc,oc->nlo", xp[:, j:j + l, :],
                               w[:, :, j].astype(jnp.float32))
    return out + b.astype(jnp.float32)[None, None, :]


def _ref_block(x, p):
    k = p["kernel_size"]
    if k == 1:
        if p["wd"] is None:
            return x
        return _ref_causal_conv(x, p["wd"][:, :, None], p["bd"])
    w1 = _weight_norm(p["v1"], p["g1"])
    w2 = _weight_norm(p["v2"], p["g2"])
    h1 = jnp.maximum(_ref_causal_conv(x, w1, p["b1"]), 0.0)
    h2 = jnp.maximum(_ref_causal_conv(h1, w2, p["b2"]), 0.0)
    res = x if p["wd"] is None else _ref_causal_conv(x, p["wd"][:, :, None], p["bd"])
    return jnp.maximum(h2 + res, 0.0)


def _run_and_check(x, layers, *, act_dtype=None, time_tile=None, atol=2e-3, tag=""):
    fwd = jax.jit(lambda inp: temporal_conv_net_v4_forward(
        inp, layers, act_dtype=act_dtype, time_tile=time_tile))
    outs = jax.block_until_ready(fwd(x))

    x_ref = x if act_dtype is None else x.astype(act_dtype)
    h = x_ref.astype(jnp.float32)
    ref_outs = []
    for p in layers:
        h = _ref_block(h, p)
        ref_outs.append(h)

    exp_dt = x.dtype if act_dtype is None else jnp.dtype(act_dtype)
    assert len(outs) == len(layers)
    for i, (o, r) in enumerate(zip(outs, ref_outs)):
        assert o.shape == r.shape, (tag, i, o.shape, r.shape)
        assert o.dtype == exp_dt, (tag, i, o.dtype)
        err = float(jnp.max(jnp.abs(o.astype(jnp.float32) - r)))
        assert err < atol, f"[{tag}] layer {i}: max abs err {err:.3e}"


if __name__ == "__main__":
    key = jax.random.PRNGKey(0)
    key, k_a, k_b, k_p1, k_p2 = jax.random.split(key, 5)

    num_inputs, num_channels = 4, (8, 8, 6)

    # Config A: 'lskt' (per-layer kernel sizes 2, 4, 8), single time tile.
    layers_a = init_tcn_params(k_p1, num_inputs, num_channels,
                               kernel_size=2, model_type="lskt")
    x16 = jax.random.normal(k_a, (2, 16, num_inputs), jnp.float32)
    _run_and_check(x16, layers_a, atol=2e-3, tag="f32/L=16")

    # Longer sequence with small time tiles: exercises the in-kernel halo carry
    # across tiles and the padded partial last tile (44 = 5*8 + 4).
    x44 = jax.random.normal(k_b, (2, 44, num_inputs), jnp.float32)
    _run_and_check(x44, layers_a, time_tile=8, atol=2e-3, tag="f32/L=44/tl=8")

    # bf16 activations + weights (f32 accumulation / f32 bias): halves HBM traffic.
    _run_and_check(x44, layers_a, act_dtype=jnp.bfloat16, time_tile=16, atol=1e-1,
                   tag="bf16/L=44/tl=16")

    # Config B: 'lsktsk' with kernel_size=1 -> TemporalBlock k==1 path
    # (identity / 1x1 downsample only; no conv stack, no final ReLU).
    layers_b = init_tcn_params(k_p2, num_inputs, num_channels,
                               kernel_size=1, model_type="lsktsk")
    _run_and_check(x16, layers_b, atol=2e-3, tag="k=1 path")

    print("KERNEL_OK")
</pallas_src>

<mosaic_0001>
module attributes {stable_mosaic.version = 11 : i64} {
  func.func @_block_kernel(%arg0: i32, %arg1: i32, %arg2: memref<2x4x8xf32, #tpu.memory_space<vmem>>, %arg3: memref<1x8xf32, #tpu.memory_space<vmem>>, %arg4: memref<2x8x8xf32, #tpu.memory_space<vmem>>, %arg5: memref<1x8xf32, #tpu.memory_space<vmem>>, %arg6: memref<4x8xf32, #tpu.memory_space<vmem>>, %arg7: memref<1x8xf32, #tpu.memory_space<vmem>>, %arg8: memref<1x16x4xf32, #tpu.memory_space<vmem>>, %arg9: memref<1x16x8xf32, #tpu.memory_space<vmem>>, %arg10: memref<24x4xf32, #tpu.memory_space<vmem>>, %arg11: memref<24x8xf32, #tpu.memory_space<vmem>>) attributes {dimension_semantics = [#tpu.dimension_semantics<parallel>, #tpu.dimension_semantics<arbitrary>], iteration_bounds = array<i64: 2, 1>, scalar_prefetch = 0 : i64, scratch_operands = 2 : i64, tpu.core_type = #tpu.core_type<tc>, window_params = [{pipeline_mode = #tpu.pipeline_mode<synchronous>, transform_indices = @transform_0, window_bounds = array<i64: 2, 4, 8>}, {pipeline_mode = #tpu.pipeline_mode<synchronous>, transform_indices = @transform_1, window_bounds = array<i64: 1, 8>}, {pipeline_mode = #tpu.pipeline_mode<synchronous>, transform_indices = @transform_2, window_bounds = array<i64: 2, 8, 8>}, {pipeline_mode = #tpu.pipeline_mode<synchronous>, transform_indices = @transform_3, window_bounds = array<i64: 1, 8>}, {pipeline_mode = #tpu.pipeline_mode<synchronous>, transform_indices = @transform_4, window_bounds = array<i64: 4, 8>}, {pipeline_mode = #tpu.pipeline_mode<synchronous>, transform_indices = @transform_5, window_bounds = array<i64: 1, 8>}, {transform_indices = @transform_6, window_bounds = array<i64: 1, 16, 4>}, {transform_indices = @transform_7, window_bounds = array<i64: 1, 16, 8>}]} {
    %c0_i32 = arith.constant 0 : i32
    %0 = arith.cmpi eq, %arg1, %c0_i32 : i32
    %1 = arith.extui %0 : i1 to i32
    %c0_i32_0 = arith.constant 0 : i32
    %2 = arith.cmpi ne, %1, %c0_i32_0 : i32
    scf.if %2 {
      %cst_47 = arith.constant 0.000000e+00 : f32
      %51 = vector.broadcast %cst_47 : f32 to vector<24x4xf32>
      %c0_48 = arith.constant 0 : index
      %c0_49 = arith.constant 0 : index
      %52 = vector.load %arg10[%c0_48, %c0_49] : memref<24x4xf32, #tpu.memory_space<vmem>>, vector<24x4xf32>
      tpu.vector_store %arg10[%c0_48, %c0_49], %51 {strides = array<i32>} : memref<24x4xf32, #tpu.memory_space<vmem>>, vector<24x4xf32>,
      %cst_50 = arith.constant 0.000000e+00 : f32
      %53 = vector.broadcast %cst_50 : f32 to vector<24x8xf32>
      %c0_51 = arith.constant 0 : index
      %c0_52 = arith.constant 0 : index
      %54 = vector.load %arg11[%c0_51, %c0_52] : memref<24x8xf32, #tpu.memory_space<vmem>>, vector<24x8xf32>
      tpu.vector_store %arg11[%c0_51, %c0_52], %53 {strides = array<i32>} : memref<24x8xf32, #tpu.memory_space<vmem>>, vector<24x8xf32>,
    } else {
    }
    %c0 = arith.constant 0 : index
    %c0_1 = arith.constant 0 : index
    %c0_2 = arith.constant 0 : index
    %3 = vector.load %arg8[%c0, %c0_1, %c0_2] : memref<1x16x4xf32, #tpu.memory_space<vmem>>, vector<1x16x4xf32>
    %4 = vector.shape_cast %3 : vector<1x16x4xf32> to vector<16x4xf32>
    %c8 = arith.constant 8 : index
    %c0_3 = arith.constant 0 : index
    %5 = vector.load %arg10[%c8, %c0_3] : memref<24x4xf32, #tpu.memory_space<vmem>>, vector<16x4xf32>
    tpu.vector_store %arg10[%c8, %c0_3], %4 {strides = array<i32>} : memref<24x4xf32, #tpu.memory_space<vmem>>, vector<16x4xf32>,
    %c7 = arith.constant 7 : index
    %c0_4 = arith.constant 0 : index
    %6 = vector.load %arg10[%c7, %c0_4] : memref<24x4xf32, #tpu.memory_space<vmem>>, vector<16x4xf32>
    %c0_5 = arith.constant 0 : index
    %c0_6 = arith.constant 0 : index
    %c0_7 = arith.constant 0 : index
    %7 = vector.load %arg2[%c0_5, %c0_6, %c0_7] : memref<2x4x8xf32, #tpu.memory_space<vmem>>, vector<1x4x8xf32>
    %8 = vector.shape_cast %7 : vector<1x4x8xf32> to vector<4x8xf32>
    %cst = arith.constant dense<0.000000e+00> : vector<16x8xf32>
    %9 = tpu.matmul %6, %8, %cst {dimension_numbers = #tpu.dot_dimension_numbers<[1], [0], [0], [1], [0, 0, 1, 1], [], []>} : vector<16x4xf32>, vector<4x8xf32>, vector<16x8xf32> -> vector<16x8xf32>
    %c8_8 = arith.constant 8 : index
    %c0_9 = arith.constant 0 : index
    %10 = vector.load %arg10[%c8_8, %c0_9] : memref<24x4xf32, #tpu.memory_space<vmem>>, vector<16x4xf32>
    %c1 = arith.constant 1 : index
    %c0_10 = arith.constant 0 : index
    %c0_11 = arith.constant 0 : index
    %11 = vector.load %arg2[%c1, %c0_10, %c0_11] : memref<2x4x8xf32, #tpu.memory_space<vmem>>, vector<1x4x8xf32>
    %12 = vector.shape_cast %11 : vector<1x4x8xf32> to vector<4x8xf32>
    %cst_12 = arith.constant dense<0.000000e+00> : vector<16x8xf32>
    %13 = tpu.matmul %10, %12, %cst_12 {dimension_numbers = #tpu.dot_dimension_numbers<[1], [0], [0], [1], [0, 0, 1, 1], [], []>} : vector<16x4xf32>, vector<4x8xf32>, vector<16x8xf32> -> vector<16x8xf32>
    %14 = arith.addf %9, %13 : vector<16x8xf32>
    %c0_13 = arith.constant 0 : index
    %c0_14 = arith.constant 0 : index
    %15 = vector.load %arg3[%c0_13, %c0_14] : memref<1x8xf32, #tpu.memory_space<vmem>>, vector<1x8xf32>
    %16 = vector.broadcast %15 : vector<1x8xf32> to vector<16x8xf32>
    %17 = arith.addf %14, %16 : vector<16x8xf32>
    %cst_15 = arith.constant 0.000000e+00 : f32
    %18 = vector.broadcast %cst_15 : f32 to vector<16x8xf32>
    %19 = arith.maximumf %17, %18 : vector<16x8xf32>
    %c8_16 = arith.constant 8 : index
    %c0_17 = arith.constant 0 : index
    %20 = vector.load %arg11[%c8_16, %c0_17] : memref<24x8xf32, #tpu.memory_space<vmem>>, vector<16x8xf32>
    tpu.vector_store %arg11[%c8_16, %c0_17], %19 {strides = array<i32>} : memref<24x8xf32, #tpu.memory_space<vmem>>, vector<16x8xf32>,
    %c7_18 = arith.constant 7 : index
    %c0_19 = arith.constant 0 : index
    %21 = vector.load %arg11[%c7_18, %c0_19] : memref<24x8xf32, #tpu.memory_space<vmem>>, vector<16x8xf32>
    %c0_20 = arith.constant 0 : index
    %c0_21 = arith.constant 0 : index
    %c0_22 = arith.constant 0 : index
    %22 = vector.load %arg4[%c0_20, %c0_21, %c0_22] : memref<2x8x8xf32, #tpu.memory_space<vmem>>, vector<1x8x8xf32>
    %23 = vector.shape_cast %22 : vector<1x8x8xf32> to vector<8x8xf32>
    %cst_23 = arith.constant dense<0.000000e+00> : vector<16x8xf32>
    %24 = tpu.matmul %21, %23, %cst_23 {dimension_numbers = #tpu.dot_dimension_numbers<[1], [0], [0], [1], [0, 0, 1, 1], [], []>} : vector<16x8xf32>, vector<8x8xf32>, vector<16x8xf32> -> vector<16x8xf32>
    %c8_24 = arith.constant 8 : index
    %c0_25 = arith.constant 0 : index
    %25 = vector.load %arg11[%c8_24, %c0_25] : memref<24x8xf32, #tpu.memory_space<vmem>>, vector<16x8xf32>
    %c1_26 = arith.constant 1 : index
    %c0_27 = arith.constant 0 : index
    %c0_28 = arith.constant 0 : index
    %26 = vector.load %arg4[%c1_26, %c0_27, %c0_28] : memref<2x8x8xf32, #tpu.memory_space<vmem>>, vector<1x8x8xf32>
    %27 = vector.shape_cast %26 : vector<1x8x8xf32> to vector<8x8xf32>
    %cst_29 = arith.constant dense<0.000000e+00> : vector<16x8xf32>
    %28 = tpu.matmul %25, %27, %cst_29 {dimension_numbers = #tpu.dot_dimension_numbers<[1], [0], [0], [1], [0, 0, 1, 1], [], []>} : vector<16x8xf32>, vector<8x8xf32>, vector<16x8xf32> -> vector<16x8xf32>
    %29 = arith.addf %24, %28 : vector<16x8xf32>
    %c0_30 = arith.constant 0 : index
    %c0_31 = arith.constant 0 : index
    %30 = vector.load %arg5[%c0_30, %c0_31] : memref<1x8xf32, #tpu.memory_space<vmem>>, vector<1x8xf32>
    %31 = vector.broadcast %30 : vector<1x8xf32> to vector<16x8xf32>
    %32 = arith.addf %29, %31 : vector<16x8xf32>
    %cst_32 = arith.constant 0.000000e+00 : f32
    %33 = vector.broadcast %cst_32 : f32 to vector<16x8xf32>
    %34 = arith.maximumf %32, %33 : vector<16x8xf32>
    %c0_33 = arith.constant 0 : index
    %c0_34 = arith.constant 0 : index
    %c0_35 = arith.constant 0 : index
    %35 = vector.load %arg8[%c0_33, %c0_34, %c0_35] : memref<1x16x4xf32, #tpu.memory_space<vmem>>, vector<1x16x4xf32>
    %36 = vector.shape_cast %35 : vector<1x16x4xf32> to vector<16x4xf32>
    %c0_36 = arith.constant 0 : index
    %c0_37 = arith.constant 0 : index
    %37 = vector.load %arg6[%c0_36, %c0_37] : memref<4x8xf32, #tpu.memory_space<vmem>>, vector<4x8xf32>
    %cst_38 = arith.constant dense<0.000000e+00> : vector<16x8xf32>
    %38 = tpu.matmul %36, %37, %cst_38 {dimension_numbers = #tpu.dot_dimension_numbers<[1], [0], [0], [1], [0, 0, 1, 1], [], []>} : vector<16x4xf32>, vector<4x8xf32>, vector<16x8xf32> -> vector<16x8xf32>
    %c0_39 = arith.constant 0 : index
    %c0_40 = arith.constant 0 : index
    %39 = vector.load %arg7[%c0_39, %c0_40] : memref<1x8xf32, #tpu.memory_space<vmem>>, vector<1x8xf32>
    %40 = vector.broadcast %39 : vector<1x8xf32> to vector<16x8xf32>
    %41 = arith.addf %38, %40 : vector<16x8xf32>
    %42 = arith.addf %34, %41 : vector<16x8xf32>
    %cst_41 = arith.constant 0.000000e+00 : f32
    %43 = vector.broadcast %cst_41 : f32 to vector<16x8xf32>
    %44 = arith.maximumf %42, %43 : vector<16x8xf32>
    %c0_42 = arith.constant 0 : index
    %c0_43 = arith.constant 0 : index
    %c0_44 = arith.constant 0 : index
    %45 = vector.load %arg9[%c0_42, %c0_43, %c0_44] : memref<1x16x8xf32, #tpu.memory_space<vmem>>, vector<1x16x8xf32>
    %46 = vector.shape_cast %45 : vector<1x16x8xf32> to vector<16x8xf32>
    %47 = vector.shape_cast %44 : vector<16x8xf32> to vector<1x16x8xf32>
    tpu.vector_store %arg9[%c0_42, %c0_43, %c0_44], %47 {strides = array<i32>} : memref<1x16x8xf32, #tpu.memory_space<vmem>>, vector<1x16x8xf32>,
    %c0_i32_45 = arith.constant 0 : i32
    %48 = arith.cmpi ne, %arg1, %c0_i32_45 : i32
    %49 = arith.extui %48 : i1 to i32
    %c0_i32_46 = arith.constant 0 : i32
    %50 = arith.cmpi ne, %49, %c0_i32_46 : i32
    scf.if %50 {
      %c16 = arith.constant 16 : index
      %c0_47 = arith.constant 0 : index
      %51 = vector.load %arg10[%c16, %c0_47] : memref<24x4xf32, #tpu.memory_space<vmem>>, vector<8x4xf32>
      %c0_48 = arith.constant 0 : index
      %c0_49 = arith.constant 0 : index
      %52 = vector.load %arg10[%c0_48, %c0_49] : memref<24x4xf32, #tpu.memory_space<vmem>>, vector<8x4xf32>
      tpu.vector_store %arg10[%c0_48, %c0_49], %51 {strides = array<i32>} : memref<24x4xf32, #tpu.memory_space<vmem>>, vector<8x4xf32>,
      %c16_50 = arith.constant 16 : index
      %c0_51 = arith.constant 0 : index
      %53 = vector.load %arg11[%c16_50, %c0_51] : memref<24x8xf32, #tpu.memory_space<vmem>>, vector<8x8xf32>
      %c0_52 = arith.constant 0 : index
      %c0_53 = arith.constant 0 : index
      %54 = vector.load %arg11[%c0_52, %c0_53] : memref<24x8xf32, #tpu.memory_space<vmem>>, vector<8x8xf32>
      tpu.vector_store %arg11[%c0_52, %c0_53], %53 {strides = array<i32>} : memref<24x8xf32, #tpu.memory_space<vmem>>, vector<8x8xf32>,
    } else {
    }
    return
  }
  func.func @transform_0(%arg0: i32, %arg1: i32) -> (i32, i32, i32) {
    %c0_i32 = arith.constant 0 : i32
    %c0_i32_0 = arith.constant 0 : i32
    %c0_i32_1 = arith.constant 0 : i32
    %c0_i32_2 = arith.constant 0 : i32
    return %c0_i32, %c0_i32_0, %c0_i32_1 : i32, i32, i32
  }
  func.func @transform_1(%arg0: i32, %arg1: i32) -> (i32, i32) {
    %c0_i32 = arith.constant 0 : i32
    %c0_i32_0 = arith.constant 0 : i32
    %c0_i32_1 = arith.constant 0 : i32
    return %c0_i32, %c0_i32_0 : i32, i32
  }
  func.func @transform_2(%arg0: i32, %arg1: i32) -> (i32, i32, i32) {
    %c0_i32 = arith.constant 0 : i32
    %c0_i32_0 = arith.constant 0 : i32
    %c0_i32_1 = arith.constant 0 : i32
    %c0_i32_2 = arith.constant 0 : i32
    return %c0_i32, %c0_i32_0, %c0_i32_1 : i32, i32, i32
  }
  func.func @transform_3(%arg0: i32, %arg1: i32) -> (i32, i32) {
    %c0_i32 = arith.constant 0 : i32
    %c0_i32_0 = arith.constant 0 : i32
    %c0_i32_1 = arith.constant 0 : i32
    return %c0_i32, %c0_i32_0 : i32, i32
  }
  func.func @transform_4(%arg0: i32, %arg1: i32) -> (i32, i32) {
    %c0_i32 = arith.constant 0 : i32
    %c0_i32_0 = arith.constant 0 : i32
    %c0_i32_1 = arith.constant 0 : i32
    return %c0_i32, %c0_i32_0 : i32, i32
  }
  func.func @transform_5(%arg0: i32, %arg1: i32) -> (i32, i32) {
    %c0_i32 = arith.constant 0 : i32
    %c0_i32_0 = arith.constant 0 : i32
    %c0_i32_1 = arith.constant 0 : i32
    return %c0_i32, %c0_i32_0 : i32, i32
  }
  func.func @transform_6(%arg0: i32, %arg1: i32) -> (i32, i32, i32) {
    %c0_i32 = arith.constant 0 : i32
    %c0_i32_0 = arith.constant 0 : i32
    return %arg0, %arg1, %c0_i32 : i32, i32, i32
  }
  func.func @transform_7(%arg0: i32, %arg1: i32) -> (i32, i32, i32) {
    %c0_i32 = arith.constant 0 : i32
    %c0_i32_0 = arith.constant 0 : i32
    return %arg0, %arg1, %c0_i32 : i32, i32, i32
  }
}

module attributes {stable_mosaic.version = 11 : i64} {
  func.func @_block_kernel(%arg0: i32, %arg1: i32, %arg2: memref<4x8x8xf32, #tpu.memory_space<vmem>>, %arg3: memref<1x8xf32, #tpu.memory_space<vmem>>, %arg4: memref<4x8x8xf32, #tpu.memory_space<vmem>>, %arg5: memref<1x8xf32, #tpu.memory_space<vmem>>, %arg6: memref<1x16x8xf32, #tpu.memory_space<vmem>>, %arg7: memref<1x16x8xf32, #tpu.memory_space<vmem>>, %arg8: memref<24x8xf32, #tpu.memory_space<vmem>>, %arg9: memref<24x8xf32, #tpu.memory_space<vmem>>) attributes {dimension_semantics = [#tpu.dimension_semantics<parallel>, #tpu.dimension_semantics<arbitrary>], iteration_bounds = array<i64: 2, 1>, scalar_prefetch = 0 : i64, scratch_operands = 2 : i64, tpu.core_type = #tpu.core_type<tc>, window_params = [{pipeline_mode = #tpu.pipeline_mode<synchronous>, transform_indices = @transform_0, window_bounds = array<i64: 4, 8, 8>}, {pipeline_mode = #tpu.pipeline_mode<synchronous>, transform_indices = @transform_1, window_bounds = array<i64: 1, 8>}, {pipeline_mode = #tpu.pipeline_mode<synchronous>, transform_indices = @transform_2, window_bounds = array<i64: 4, 8, 8>}, {pipeline_mode = #tpu.pipeline_mode<synchronous>, transform_indices = @transform_3, window_bounds = array<i64: 1, 8>}, {transform_indices = @transform_4, window_bounds = array<i64: 1, 16, 8>}, {transform_indices = @transform_5, window_bounds = array<i64: 1, 16, 8>}]} {
    %c0_i32 = arith.constant 0 : i32
    %0 = arith.cmpi eq, %arg1, %c0_i32 : i32
    %1 = arith.extui %0 : i1 to i32
    %c0_i32_0 = arith.constant 0 : i32
    %2 = arith.cmpi ne, %1, %c0_i32_0 : i32
    scf.if %2 {
      %cst_62 = arith.constant 0.000000e+00 : f32
      %66 = vector.broadcast %cst_62 : f32 to vector<24x8xf32>
      %c0_63 = arith.constant 0 : index
      %c0_64 = arith.constant 0 : index
      %67 = vector.load %arg8[%c0_63, %c0_64] : memref<24x8xf32, #tpu.memory_space<vmem>>, vector<24x8xf32>
      tpu.vector_store %arg8[%c0_63, %c0_64], %66 {strides = array<i32>} : memref<24x8xf32, #tpu.memory_space<vmem>>, vector<24x8xf32>,
      %cst_65 = arith.constant 0.000000e+00 : f32
      %68 = vector.broadcast %cst_65 : f32 to vector<24x8xf32>
      %c0_66 = arith.constant 0 : index
      %c0_67 = arith.constant 0 : index
      %69 = vector.load %arg9[%c0_66, %c0_67] : memref<24x8xf32, #tpu.memory_space<vmem>>, vector<24x8xf32>
      tpu.vector_store %arg9[%c0_66, %c0_67], %68 {strides = array<i32>} : memref<24x8xf32, #tpu.memory_space<vmem>>, vector<24x8xf32>,
    } else {
    }
    %c0 = arith.constant 0 : index
    %c0_1 = arith.constant 0 : index
    %c0_2 = arith.constant 0 : index
    %3 = vector.load %arg6[%c0, %c0_1, %c0_2] : memref<1x16x8xf32, #tpu.memory_space<vmem>>, vector<1x16x8xf32>
    %4 = vector.shape_cast %3 : vector<1x16x8xf32> to vector<16x8xf32>
    %c8 = arith.constant 8 : index
    %c0_3 = arith.constant 0 : index
    %5 = vector.load %arg8[%c8, %c0_3] : memref<24x8xf32, #tpu.memory_space<vmem>>, vector<16x8xf32>
    tpu.vector_store %arg8[%c8, %c0_3], %4 {strides = array<i32>} : memref<24x8xf32, #tpu.memory_space<vmem>>, vector<16x8xf32>,
    %c5 = arith.constant 5 : index
    %c0_4 = arith.constant 0 : index
    %6 = vector.load %arg8[%c5, %c0_4] : memref<24x8xf32, #tpu.memory_space<vmem>>, vector<16x8xf32>
    %c0_5 = arith.constant 0 : index
    %c0_6 = arith.constant 0 : index
    %c0_7 = arith.constant 0 : index
    %7 = vector.load %arg2[%c0_5, %c0_6, %c0_7] : memref<4x8x8xf32, #tpu.memory_space<vmem>>, vector<1x8x8xf32>
    %8 = vector.shape_cast %7 : vector<1x8x8xf32> to vector<8x8xf32>
    %cst = arith.constant dense<0.000000e+00> : vector<16x8xf32>
    %9 = tpu.matmul %6, %8, %cst {dimension_numbers = #tpu.dot_dimension_numbers<[1], [0], [0], [1], [0, 0, 1, 1], [], []>} : vector<16x8xf32>, vector<8x8xf32>, vector<16x8xf32> -> vector<16x8xf32>
    %c6 = arith.constant 6 : index
    %c0_8 = arith.constant 0 : index
    %10 = vector.load %arg8[%c6, %c0_8] : memref<24x8xf32, #tpu.memory_space<vmem>>, vector<16x8xf32>
    %c1 = arith.constant 1 : index
    %c0_9 = arith.constant 0 : index
    %c0_10 = arith.constant 0 : index
    %11 = vector.load %arg2[%c1, %c0_9, %c0_10] : memref<4x8x8xf32, #tpu.memory_space<vmem>>, vector<1x8x8xf32>
    %12 = vector.shape_cast %11 : vector<1x8x8xf32> to vector<8x8xf32>
    %cst_11 = arith.constant dense<0.000000e+00> : vector<16x8xf32>
    %13 = tpu.matmul %10, %12, %cst_11 {dimension_numbers = #tpu.dot_dimension_numbers<[1], [0], [0], [1], [0, 0, 1, 1], [], []>} : vector<16x8xf32>, vector<8x8xf32>, vector<16x8xf32> -> vector<16x8xf32>
    %14 = arith.addf %9, %13 : vector<16x8xf32>
    %c7 = arith.constant 7 : index
    %c0_12 = arith.constant 0 : index
    %15 = vector.load %arg8[%c7, %c0_12] : memref<24x8xf32, #tpu.memory_space<vmem>>, vector<16x8xf32>
    %c2 = arith.constant 2 : index
    %c0_13 = arith.constant 0 : index
    %c0_14 = arith.constant 0 : index
    %16 = vector.load %arg2[%c2, %c0_13, %c0_14] : memref<4x8x8xf32, #tpu.memory_space<vmem>>, vector<1x8x8xf32>
    %17 = vector.shape_cast %16 : vector<1x8x8xf32> to vector<8x8xf32>
    %cst_15 = arith.constant dense<0.000000e+00> : vector<16x8xf32>
    %18 = tpu.matmul %15, %17, %cst_15 {dimension_numbers = #tpu.dot_dimension_numbers<[1], [0], [0], [1], [0, 0, 1, 1], [], []>} : vector<16x8xf32>, vector<8x8xf32>, vector<16x8xf32> -> vector<16x8xf32>
    %19 = arith.addf %14, %18 : vector<16x8xf32>
    %c8_16 = arith.constant 8 : index
    %c0_17 = arith.constant 0 : index
    %20 = vector.load %arg8[%c8_16, %c0_17] : memref<24x8xf32, #tpu.memory_space<vmem>>, vector<16x8xf32>
    %c3 = arith.constant 3 : index
    %c0_18 = arith.constant 0 : index
    %c0_19 = arith.constant 0 : index
    %21 = vector.load %arg2[%c3, %c0_18, %c0_19] : memref<4x8x8xf32, #tpu.memory_space<vmem>>, vector<1x8x8xf32>
    %22 = vector.shape_cast %21 : vector<1x8x8xf32> to vector<8x8xf32>
    %cst_20 = arith.constant dense<0.000000e+00> : vector<16x8xf32>
    %23 = tpu.matmul %20, %22, %cst_20 {dimension_numbers = #tpu.dot_dimension_numbers<[1], [0], [0], [1], [0, 0, 1, 1], [], []>} : vector<16x8xf32>, vector<8x8xf32>, vector<16x8xf32> -> vector<16x8xf32>
    %24 = arith.addf %19, %23 : vector<16x8xf32>
    %c0_21 = arith.constant 0 : index
    %c0_22 = arith.constant 0 : index
    %25 = vector.load %arg3[%c0_21, %c0_22] : memref<1x8xf32, #tpu.memory_space<vmem>>, vector<1x8xf32>
    %26 = vector.broadcast %25 : vector<1x8xf32> to vector<16x8xf32>
    %27 = arith.addf %24, %26 : vector<16x8xf32>
    %cst_23 = arith.constant 0.000000e+00 : f32
    %28 = vector.broadcast %cst_23 : f32 to vector<16x8xf32>
    %29 = arith.maximumf %27, %28 : vector<16x8xf32>
    %c8_24 = arith.constant 8 : index
    %c0_25 = arith.constant 0 : index
    %30 = vector.load %arg9[%c8_24, %c0_25] : memref<24x8xf32, #tpu.memory_space<vmem>>, vector<16x8xf32>
    tpu.vector_store %arg9[%c8_24, %c0_25], %29 {strides = array<i32>} : memref<24x8xf32, #tpu.memory_space<vmem>>, vector<16x8xf32>,
    %c5_26 = arith.constant 5 : index
    %c0_27 = arith.constant 0 : index
    %31 = vector.load %arg9[%c5_26, %c0_27] : memref<24x8xf32, #tpu.memory_space<vmem>>, vector<16x8xf32>
    %c0_28 = arith.constant 0 : index
    %c0_29 = arith.constant 0 : index
    %c0_30 = arith.constant 0 : index
    %32 = vector.load %arg4[%c0_28, %c0_29, %c0_30] : memref<4x8x8xf32, #tpu.memory_space<vmem>>, vector<1x8x8xf32>
    %33 = vector.shape_cast %32 : vector<1x8x8xf32> to vector<8x8xf32>
    %cst_31 = arith.constant dense<0.000000e+00> : vector<16x8xf32>
    %34 = tpu.matmul %31, %33, %cst_31 {dimension_numbers = #tpu.dot_dimension_numbers<[1], [0], [0], [1], [0, 0, 1, 1], [], []>} : vector<16x8xf32>, vector<8x8xf32>, vector<16x8xf32> -> vector<16x8xf32>
    %c6_32 = arith.constant 6 : index
    %c0_33 = arith.constant 0 : index
    %35 = vector.load %arg9[%c6_32, %c0_33] : memref<24x8xf32, #tpu.memory_space<vmem>>, vector<16x8xf32>
    %c1_34 = arith.constant 1 : index
    %c0_35 = arith.constant 0 : index
    %c0_36 = arith.constant 0 : index
    %36 = vector.load %arg4[%c1_34, %c0_35, %c0_36] : memref<4x8x8xf32, #tpu.memory_space<vmem>>, vector<1x8x8xf32>
    %37 = vector.shape_cast %36 : vector<1x8x8xf32> to vector<8x8xf32>
    %cst_37 = arith.constant dense<0.000000e+00> : vector<16x8xf32>
    %38 = tpu.matmul %35, %37, %cst_37 {dimension_numbers = #tpu.dot_dimension_numbers<[1], [0], [0], [1], [0, 0, 1, 1], [], []>} : vector<16x8xf32>, vector<8x8xf32>, vector<16x8xf32> -> vector<16x8xf32>
    %39 = arith.addf %34, %38 : vector<16x8xf32>
    %c7_38 = arith.constant 7 : index
    %c0_39 = arith.constant 0 : index
    %40 = vector.load %arg9[%c7_38, %c0_39] : memref<24x8xf32, #tpu.memory_space<vmem>>, vector<16x8xf32>
    %c2_40 = arith.constant 2 : index
    %c0_41 = arith.constant 0 : index
    %c0_42 = arith.constant 0 : index
    %41 = vector.load %arg4[%c2_40, %c0_41, %c0_42] : memref<4x8x8xf32, #tpu.memory_space<vmem>>, vector<1x8x8xf32>
    %42 = vector.shape_cast %41 : vector<1x8x8xf32> to vector<8x8xf32>
    %cst_43 = arith.constant dense<0.000000e+00> : vector<16x8xf32>
    %43 = tpu.matmul %40, %42, %cst_43 {dimension_numbers = #tpu.dot_dimension_numbers<[1], [0], [0], [1], [0, 0, 1, 1], [], []>} : vector<16x8xf32>, vector<8x8xf32>, vector<16x8xf32> -> vector<16x8xf32>
    %44 = arith.addf %39, %43 : vector<16x8xf32>
    %c8_44 = arith.constant 8 : index
    %c0_45 = arith.constant 0 : index
    %45 = vector.load %arg9[%c8_44, %c0_45] : memref<24x8xf32, #tpu.memory_space<vmem>>, vector<16x8xf32>
    %c3_46 = arith.constant 3 : index
    %c0_47 = arith.constant 0 : index
    %c0_48 = arith.constant 0 : index
    %46 = vector.load %arg4[%c3_46, %c0_47, %c0_48] : memref<4x8x8xf32, #tpu.memory_space<vmem>>, vector<1x8x8xf32>
    %47 = vector.shape_cast %46 : vector<1x8x8xf32> to vector<8x8xf32>
    %cst_49 = arith.constant dense<0.000000e+00> : vector<16x8xf32>
    %48 = tpu.matmul %45, %47, %cst_49 {dimension_numbers = #tpu.dot_dimension_numbers<[1], [0], [0], [1], [0, 0, 1, 1], [], []>} : vector<16x8xf32>, vector<8x8xf32>, vector<16x8xf32> -> vector<16x8xf32>
    %49 = arith.addf %44, %48 : vector<16x8xf32>
    %c0_50 = arith.constant 0 : index
    %c0_51 = arith.constant 0 : index
    %50 = vector.load %arg5[%c0_50, %c0_51] : memref<1x8xf32, #tpu.memory_space<vmem>>, vector<1x8xf32>
    %51 = vector.broadcast %50 : vector<1x8xf32> to vector<16x8xf32>
    %52 = arith.addf %49, %51 : vector<16x8xf32>
    %cst_52 = arith.constant 0.000000e+00 : f32
    %53 = vector.broadcast %cst_52 : f32 to vector<16x8xf32>
    %54 = arith.maximumf %52, %53 : vector<16x8xf32>
    %c0_53 = arith.constant 0 : index
    %c0_54 = arith.constant 0 : index
    %c0_55 = arith.constant 0 : index
    %55 = vector.load %arg6[%c0_53, %c0_54, %c0_55] : memref<1x16x8xf32, #tpu.memory_space<vmem>>, vector<1x16x8xf32>
    %56 = vector.shape_cast %55 : vector<1x16x8xf32> to vector<16x8xf32>
    %57 = arith.addf %54, %56 : vector<16x8xf32>
    %cst_56 = arith.constant 0.000000e+00 : f32
    %58 = vector.broadcast %cst_56 : f32 to vector<16x8xf32>
    %59 = arith.maximumf %57, %58 : vector<16x8xf32>
    %c0_57 = arith.constant 0 : index
    %c0_58 = arith.constant 0 : index
    %c0_59 = arith.constant 0 : index
    %60 = vector.load %arg7[%c0_57, %c0_58, %c0_59] : memref<1x16x8xf32, #tpu.memory_space<vmem>>, vector<1x16x8xf32>
    %61 = vector.shape_cast %60 : vector<1x16x8xf32> to vector<16x8xf32>
    %62 = vector.shape_cast %59 : vector<16x8xf32> to vector<1x16x8xf32>
    tpu.vector_store %arg7[%c0_57, %c0_58, %c0_59], %62 {strides = array<i32>} : memref<1x16x8xf32, #tpu.memory_space<vmem>>, vector<1x16x8xf32>,
    %c0_i32_60 = arith.constant 0 : i32
    %63 = arith.cmpi ne, %arg1, %c0_i32_60 : i32
    %64 = arith.extui %63 : i1 to i32
    %c0_i32_61 = arith.constant 0 : i32
    %65 = arith.cmpi ne, %64, %c0_i32_61 : i32
    scf.if %65 {
      %c16 = arith.constant 16 : index
      %c0_62 = arith.constant 0 : index
      %66 = vector.load %arg8[%c16, %c0_62] : memref<24x8xf32, #tpu.memory_space<vmem>>, vector<8x8xf32>
      %c0_63 = arith.constant 0 : index
      %c0_64 = arith.constant 0 : index
      %67 = vector.load %arg8[%c0_63, %c0_64] : memref<24x8xf32, #tpu.memory_space<vmem>>, vector<8x8xf32>
      tpu.vector_store %arg8[%c0_63, %c0_64], %66 {strides = array<i32>} : memref<24x8xf32, #tpu.memory_space<vmem>>, vector<8x8xf32>,
      %c16_65 = arith.constant 16 : index
      %c0_66 = arith.constant 0 : index
      %68 = vector.load %arg9[%c16_65, %c0_66] : memref<24x8xf32, #tpu.memory_space<vmem>>, vector<8x8xf32>
      %c0_67 = arith.constant 0 : index
      %c0_68 = arith.constant 0 : index
      %69 = vector.load %arg9[%c0_67, %c0_68] : memref<24x8xf32, #tpu.memory_space<vmem>>, vector<8x8xf32>
      tpu.vector_store %arg9[%c0_67, %c0_68], %68 {strides = array<i32>} : memref<24x8xf32, #tpu.memory_space<vmem>>, vector<8x8xf32>,
    } else {
    }
    return
  }
  func.func @transform_0(%arg0: i32, %arg1: i32) -> (i32, i32, i32) {
    %c0_i32 = arith.constant 0 : i32
    %c0_i32_0 = arith.constant 0 : i32
    %c0_i32_1 = arith.constant 0 : i32
    %c0_i32_2 = arith.constant 0 : i32
    return %c0_i32, %c0_i32_0, %c0_i32_1 : i32, i32, i32
  }
  func.func @transform_1(%arg0: i32, %arg1: i32) -> (i32, i32) {
    %c0_i32 = arith.constant 0 : i32
    %c0_i32_0 = arith.constant 0 : i32
    %c0_i32_1 = arith.constant 0 : i32
    return %c0_i32, %c0_i32_0 : i32, i32
  }
  func.func @transform_2(%arg0: i32, %arg1: i32) -> (i32, i32, i32) {
    %c0_i32 = arith.constant 0 : i32
    %c0_i32_0 = arith.constant 0 : i32
    %c0_i32_1 = arith.constant 0 : i32
    %c0_i32_2 = arith.constant 0 : i32
    return %c0_i32, %c0_i32_0, %c0_i32_1 : i32, i32, i32
  }
  func.func @transform_3(%arg0: i32, %arg1: i32) -> (i32, i32) {
    %c0_i32 = arith.constant 0 : i32
    %c0_i32_0 = arith.constant 0 : i32
    %c0_i32_1 = arith.constant 0 : i32
    return %c0_i32, %c0_i32_0 : i32, i32
  }
  func.func @transform_4(%arg0: i32, %arg1: i32) -> (i32, i32, i32) {
    %c0_i32 = arith.constant 0 : i32
    %c0_i32_0 = arith.constant 0 : i32
    return %arg0, %arg1, %c0_i32 : i32, i32, i32
  }
  func.func @transform_5(%arg0: i32, %arg1: i32) -> (i32, i32, i32) {
    %c0_i32 = arith.constant 0 : i32
    %c0_i32_0 = arith.constant 0 : i32
    return %arg0, %arg1, %c0_i32 : i32, i32, i32
  }
}

module attributes {stable_mosaic.version = 11 : i64} {
  func.func @_block_kernel(%arg0: i32, %arg1: i32, %arg2: memref<8x8x6xf32, #tpu.memory_space<vmem>>, %arg3: memref<1x6xf32, #tpu.memory_space<vmem>>, %arg4: memref<8x6x6xf32, #tpu.memory_space<vmem>>, %arg5: memref<1x6xf32, #tpu.memory_space<vmem>>, %arg6: memref<8x6xf32, #tpu.memory_space<vmem>>, %arg7: memref<1x6xf32, #tpu.memory_space<vmem>>, %arg8: memref<1x16x8xf32, #tpu.memory_space<vmem>>, %arg9: memref<1x16x6xf32, #tpu.memory_space<vmem>>, %arg10: memref<24x8xf32, #tpu.memory_space<vmem>>, %arg11: memref<24x6xf32, #tpu.memory_space<vmem>>) attributes {dimension_semantics = [#tpu.dimension_semantics<parallel>, #tpu.dimension_semantics<arbitrary>], iteration_bounds = array<i64: 2, 1>, scalar_prefetch = 0 : i64, scratch_operands = 2 : i64, tpu.core_type = #tpu.core_type<tc>, window_params = [{pipeline_mode = #tpu.pipeline_mode<synchronous>, transform_indices = @transform_0, window_bounds = array<i64: 8, 8, 6>}, {pipeline_mode = #tpu.pipeline_mode<synchronous>, transform_indices = @transform_1, window_bounds = array<i64: 1, 6>}, {pipeline_mode = #tpu.pipeline_mode<synchronous>, transform_indices = @transform_2, window_bounds = array<i64: 8, 6, 6>}, {pipeline_mode = #tpu.pipeline_mode<synchronous>, transform_indices = @transform_3, window_bounds = array<i64: 1, 6>}, {pipeline_mode = #tpu.pipeline_mode<synchronous>, transform_indices = @transform_4, window_bounds = array<i64: 8, 6>}, {pipeline_mode = #tpu.pipeline_mode<synchronous>, transform_indices = @transform_5, window_bounds = array<i64: 1, 6>}, {transform_indices = @transform_6, window_bounds = array<i64: 1, 16, 8>}, {transform_indices = @transform_7, window_bounds = array<i64: 1, 16, 6>}]} {
    %c0_i32 = arith.constant 0 : i32
    %0 = arith.cmpi eq, %arg1, %c0_i32 : i32
    %1 = arith.extui %0 : i1 to i32
    %c0_i32_0 = arith.constant 0 : i32
    %2 = arith.cmpi ne, %1, %c0_i32_0 : i32
    scf.if %2 {
      %cst_114 = arith.constant 0.000000e+00 : f32
      %111 = vector.broadcast %cst_114 : f32 to vector<24x8xf32>
      %c0_115 = arith.constant 0 : index
      %c0_116 = arith.constant 0 : index
      %112 = vector.load %arg10[%c0_115, %c0_116] : memref<24x8xf32, #tpu.memory_space<vmem>>, vector<24x8xf32>
      tpu.vector_store %arg10[%c0_115, %c0_116], %111 {strides = array<i32>} : memref<24x8xf32, #tpu.memory_space<vmem>>, vector<24x8xf32>,
      %cst_117 = arith.constant 0.000000e+00 : f32
      %113 = vector.broadcast %cst_117 : f32 to vector<24x6xf32>
      %c0_118 = arith.constant 0 : index
      %c0_119 = arith.constant 0 : index
      %114 = vector.load %arg11[%c0_118, %c0_119] : memref<24x6xf32, #tpu.memory_space<vmem>>, vector<24x6xf32>
      tpu.vector_store %arg11[%c0_118, %c0_119], %113 {strides = array<i32>} : memref<24x6xf32, #tpu.memory_space<vmem>>, vector<24x6xf32>,
    } else {
    }
    %c0 = arith.constant 0 : index
    %c0_1 = arith.constant 0 : index
    %c0_2 = arith.constant 0 : index
    %3 = vector.load %arg8[%c0, %c0_1, %c0_2] : memref<1x16x8xf32, #tpu.memory_space<vmem>>, vector<1x16x8xf32>
    %4 = vector.shape_cast %3 : vector<1x16x8xf32> to vector<16x8xf32>
    %c8 = arith.constant 8 : index
    %c0_3 = arith.constant 0 : index
    %5 = vector.load %arg10[%c8, %c0_3] : memref<24x8xf32, #tpu.memory_space<vmem>>, vector<16x8xf32>
    tpu.vector_store %arg10[%c8, %c0_3], %4 {strides = array<i32>} : memref<24x8xf32, #tpu.memory_space<vmem>>, vector<16x8xf32>,
    %c1 = arith.constant 1 : index
    %c0_4 = arith.constant 0 : index
    %6 = vector.load %arg10[%c1, %c0_4] : memref<24x8xf32, #tpu.memory_space<vmem>>, vector<16x8xf32>
    %c0_5 = arith.constant 0 : index
    %c0_6 = arith.constant 0 : index
    %c0_7 = arith.constant 0 : index
    %7 = vector.load %arg2[%c0_5, %c0_6, %c0_7] : memref<8x8x6xf32, #tpu.memory_space<vmem>>, vector<1x8x6xf32>
    %8 = vector.shape_cast %7 : vector<1x8x6xf32> to vector<8x6xf32>
    %cst = arith.constant dense<0.000000e+00> : vector<16x6xf32>
    %9 = tpu.matmul %6, %8, %cst {dimension_numbers = #tpu.dot_dimension_numbers<[1], [0], [0], [1], [0, 0, 1, 1], [], []>} : vector<16x8xf32>, vector<8x6xf32>, vector<16x6xf32> -> vector<16x6xf32>
    %c2 = arith.constant 2 : index
    %c0_8 = arith.constant 0 : index
    %10 = vector.load %arg10[%c2, %c0_8] : memref<24x8xf32, #tpu.memory_space<vmem>>, vector<16x8xf32>
    %c1_9 = arith.constant 1 : index
    %c0_10 = arith.constant 0 : index
    %c0_11 = arith.constant 0 : index
    %11 = vector.load %arg2[%c1_9, %c0_10, %c0_11] : memref<8x8x6xf32, #tpu.memory_space<vmem>>, vector<1x8x6xf32>
    %12 = vector.shape_cast %11 : vector<1x8x6xf32> to vector<8x6xf32>
    %cst_12 = arith.constant dense<0.000000e+00> : vector<16x6xf32>
    %13 = tpu.matmul %10, %12, %cst_12 {dimension_numbers = #tpu.dot_dimension_numbers<[1], [0], [0], [1], [0, 0, 1, 1], [], []>} : vector<16x8xf32>, vector<8x6xf32>, vector<16x6xf32> -> vector<16x6xf32>
    %14 = arith.addf %9, %13 : vector<16x6xf32>
    %c3 = arith.constant 3 : index
    %c0_13 = arith.constant 0 : index
    %15 = vector.load %arg10[%c3, %c0_13] : memref<24x8xf32, #tpu.memory_space<vmem>>, vector<16x8xf32>
    %c2_14 = arith.constant 2 : index
    %c0_15 = arith.constant 0 : index
    %c0_16 = arith.constant 0 : index
    %16 = vector.load %arg2[%c2_14, %c0_15, %c0_16] : memref<8x8x6xf32, #tpu.memory_space<vmem>>, vector<1x8x6xf32>
    %17 = vector.shape_cast %16 : vector<1x8x6xf32> to vector<8x6xf32>
    %cst_17 = arith.constant dense<0.000000e+00> : vector<16x6xf32>
    %18 = tpu.matmul %15, %17, %cst_17 {dimension_numbers = #tpu.dot_dimension_numbers<[1], [0], [0], [1], [0, 0, 1, 1], [], []>} : vector<16x8xf32>, vector<8x6xf32>, vector<16x6xf32> -> vector<16x6xf32>
    %19 = arith.addf %14, %18 : vector<16x6xf32>
    %c4 = arith.constant 4 : index
    %c0_18 = arith.constant 0 : index
    %20 = vector.load %arg10[%c4, %c0_18] : memref<24x8xf32, #tpu.memory_space<vmem>>, vector<16x8xf32>
    %c3_19 = arith.constant 3 : index
    %c0_20 = arith.constant 0 : index
    %c0_21 = arith.constant 0 : index
    %21 = vector.load %arg2[%c3_19, %c0_20, %c0_21] : memref<8x8x6xf32, #tpu.memory_space<vmem>>, vector<1x8x6xf32>
    %22 = vector.shape_cast %21 : vector<1x8x6xf32> to vector<8x6xf32>
    %cst_22 = arith.constant dense<0.000000e+00> : vector<16x6xf32>
    %23 = tpu.matmul %20, %22, %cst_22 {dimension_numbers = #tpu.dot_dimension_numbers<[1], [0], [0], [1], [0, 0, 1, 1], [], []>} : vector<16x8xf32>, vector<8x6xf32>, vector<16x6xf32> -> vector<16x6xf32>
    %24 = arith.addf %19, %23 : vector<16x6xf32>
    %c5 = arith.constant 5 : index
    %c0_23 = arith.constant 0 : index
    %25 = vector.load %arg10[%c5, %c0_23] : memref<24x8xf32, #tpu.memory_space<vmem>>, vector<16x8xf32>
    %c4_24 = arith.constant 4 : index
    %c0_25 = arith.constant 0 : index
    %c0_26 = arith.constant 0 : index
    %26 = vector.load %arg2[%c4_24, %c0_25, %c0_26] : memref<8x8x6xf32, #tpu.memory_space<vmem>>, vector<1x8x6xf32>
    %27 = vector.shape_cast %26 : vector<1x8x6xf32> to vector<8x6xf32>
    %cst_27 = arith.constant dense<0.000000e+00> : vector<16x6xf32>
    %28 = tpu.matmul %25, %27, %cst_27 {dimension_numbers = #tpu.dot_dimension_numbers<[1], [0], [0], [1], [0, 0, 1, 1], [], []>} : vector<16x8xf32>, vector<8x6xf32>, vector<16x6xf32> -> vector<16x6xf32>
    %29 = arith.addf %24, %28 : vector<16x6xf32>
    %c6 = arith.constant 6 : index
    %c0_28 = arith.constant 0 : index
    %30 = vector.load %arg10[%c6, %c0_28] : memref<24x8xf32, #tpu.memory_space<vmem>>, vector<16x8xf32>
    %c5_29 = arith.constant 5 : index
    %c0_30 = arith.constant 0 : index
    %c0_31 = arith.constant 0 : index
    %31 = vector.load %arg2[%c5_29, %c0_30, %c0_31] : memref<8x8x6xf32, #tpu.memory_space<vmem>>, vector<1x8x6xf32>
    %32 = vector.shape_cast %31 : vector<1x8x6xf32> to vector<8x6xf32>
    %cst_32 = arith.constant dense<0.000000e+00> : vector<16x6xf32>
    %33 = tpu.matmul %30, %32, %cst_32 {dimension_numbers = #tpu.dot_dimension_numbers<[1], [0], [0], [1], [0, 0, 1, 1], [], []>} : vector<16x8xf32>, vector<8x6xf32>, vector<16x6xf32> -> vector<16x6xf32>
    %34 = arith.addf %29, %33 : vector<16x6xf32>
    %c7 = arith.constant 7 : index
    %c0_33 = arith.constant 0 : index
    %35 = vector.load %arg10[%c7, %c0_33] : memref<24x8xf32, #tpu.memory_space<vmem>>, vector<16x8xf32>
    %c6_34 = arith.constant 6 : index
    %c0_35 = arith.constant 0 : index
    %c0_36 = arith.constant 0 : index
    %36 = vector.load %arg2[%c6_34, %c0_35, %c0_36] : memref<8x8x6xf32, #tpu.memory_space<vmem>>, vector<1x8x6xf32>
    %37 = vector.shape_cast %36 : vector<1x8x6xf32> to vector<8x6xf32>
    %cst_37 = arith.constant dense<0.000000e+00> : vector<16x6xf32>
    %38 = tpu.matmul %35, %37, %cst_37 {dimension_numbers = #tpu.dot_dimension_numbers<[1], [0], [0], [1], [0, 0, 1, 1], [], []>} : vector<16x8xf32>, vector<8x6xf32>, vector<16x6xf32> -> vector<16x6xf32>
    %39 = arith.addf %34, %38 : vector<16x6xf32>
    %c8_38 = arith.constant 8 : index
    %c0_39 = arith.constant 0 : index
    %40 = vector.load %arg10[%c8_38, %c0_39] : memref<24x8xf32, #tpu.memory_space<vmem>>, vector<16x8xf32>
    %c7_40 = arith.constant 7 : index
    %c0_41 = arith.constant 0 : index
    %c0_42 = arith.constant 0 : index
    %41 = vector.load %arg2[%c7_40, %c0_41, %c0_42] : memref<8x8x6xf32, #tpu.memory_space<vmem>>, vector<1x8x6xf32>
    %42 = vector.shape_cast %41 : vector<1x8x6xf32> to vector<8x6xf32>
    %cst_43 = arith.constant dense<0.000000e+00> : vector<16x6xf32>
    %43 = tpu.matmul %40, %42, %cst_43 {dimension_numbers = #tpu.dot_dimension_numbers<[1], [0], [0], [1], [0, 0, 1, 1], [], []>} : vector<16x8xf32>, vector<8x6xf32>, vector<16x6xf32> -> vector<16x6xf32>
    %44 = arith.addf %39, %43 : vector<16x6xf32>
    %c0_44 = arith.constant 0 : index
    %c0_45 = arith.constant 0 : index
    %45 = vector.load %arg3[%c0_44, %c0_45] : memref<1x6xf32, #tpu.memory_space<vmem>>, vector<1x6xf32>
    %46 = vector.broadcast %45 : vector<1x6xf32> to vector<16x6xf32>
    %47 = arith.addf %44, %46 : vector<16x6xf32>
    %cst_46 = arith.constant 0.000000e+00 : f32
    %48 = vector.broadcast %cst_46 : f32 to vector<16x6xf32>
    %49 = arith.maximumf %47, %48 : vector<16x6xf32>
    %c8_47 = arith.constant 8 : index
    %c0_48 = arith.constant 0 : index
    %50 = vector.load %arg11[%c8_47, %c0_48] : memref<24x6xf32, #tpu.memory_space<vmem>>, vector<16x6xf32>
    tpu.vector_store %arg11[%c8_47, %c0_48], %49 {strides = array<i32>} : memref<24x6xf32, #tpu.memory_space<vmem>>, vector<16x6xf32>,
    %c1_49 = arith.constant 1 : index
    %c0_50 = arith.constant 0 : index
    %51 = vector.load %arg11[%c1_49, %c0_50] : memref<24x6xf32, #tpu.memory_space<vmem>>, vector<16x6xf32>
    %c0_51 = arith.constant 0 : index
    %c0_52 = arith.constant 0 : index
    %c0_53 = arith.constant 0 : index
    %52 = vector.load %arg4[%c0_51, %c0_52, %c0_53] : memref<8x6x6xf32, #tpu.memory_space<vmem>>, vector<1x6x6xf32>
    %53 = vector.shape_cast %52 : vector<1x6x6xf32> to vector<6x6xf32>
    %cst_54 = arith.constant dense<0.000000e+00> : vector<16x6xf32>
    %54 = tpu.matmul %51, %53, %cst_54 {dimension_numbers = #tpu.dot_dimension_numbers<[1], [0], [0], [1], [0, 0, 1, 1], [], []>} : vector<16x6xf32>, vector<6x6xf32>, vector<16x6xf32> -> vector<16x6xf32>
    %c2_55 = arith.constant 2 : index
    %c0_56 = arith.constant 0 : index
    %55 = vector.load %arg11[%c2_55, %c0_56] : memref<24x6xf32, #tpu.memory_space<vmem>>, vector<16x6xf32>
    %c1_57 = arith.constant 1 : index
    %c0_58 = arith.constant 0 : index
    %c0_59 = arith.constant 0 : index
    %56 = vector.load %arg4[%c1_57, %c0_58, %c0_59] : memref<8x6x6xf32, #tpu.memory_space<vmem>>, vector<1x6x6xf32>
    %57 = vector.shape_cast %56 : vector<1x6x6xf32> to vector<6x6xf32>
    %cst_60 = arith.constant dense<0.000000e+00> : vector<16x6xf32>
    %58 = tpu.matmul %55, %57, %cst_60 {dimension_numbers = #tpu.dot_dimension_numbers<[1], [0], [0], [1], [0, 0, 1, 1], [], []>} : vector<16x6xf32>, vector<6x6xf32>, vector<16x6xf32> -> vector<16x6xf32>
    %59 = arith.addf %54, %58 : vector<16x6xf32>
    %c3_61 = arith.constant 3 : index
    %c0_62 = arith.constant 0 : index
    %60 = vector.load %arg11[%c3_61, %c0_62] : memref<24x6xf32, #tpu.memory_space<vmem>>, vector<16x6xf32>
    %c2_63 = arith.constant 2 : index
    %c0_64 = arith.constant 0 : index
    %c0_65 = arith.constant 0 : index
    %61 = vector.load %arg4[%c2_63, %c0_64, %c0_65] : memref<8x6x6xf32, #tpu.memory_space<vmem>>, vector<1x6x6xf32>
    %62 = vector.shape_cast %61 : vector<1x6x6xf32> to vector<6x6xf32>
    %cst_66 = arith.constant dense<0.000000e+00> : vector<16x6xf32>
    %63 = tpu.matmul %60, %62, %cst_66 {dimension_numbers = #tpu.dot_dimension_numbers<[1], [0], [0], [1], [0, 0, 1, 1], [], []>} : vector<16x6xf32>, vector<6x6xf32>, vector<16x6xf32> -> vector<16x6xf32>
    %64 = arith.addf %59, %63 : vector<16x6xf32>
    %c4_67 = arith.constant 4 : index
    %c0_68 = arith.constant 0 : index
    %65 = vector.load %arg11[%c4_67, %c0_68] : memref<24x6xf32, #tpu.memory_space<vmem>>, vector<16x6xf32>
    %c3_69 = arith.constant 3 : index
    %c0_70 = arith.constant 0 : index
    %c0_71 = arith.constant 0 : index
    %66 = vector.load %arg4[%c3_69, %c0_70, %c0_71] : memref<8x6x6xf32, #tpu.memory_space<vmem>>, vector<1x6x6xf32>
    %67 = vector.shape_cast %66 : vector<1x6x6xf32> to vector<6x6xf32>
    %cst_72 = arith.constant dense<0.000000e+00> : vector<16x6xf32>
    %68 = tpu.matmul %65, %67, %cst_72 {dimension_numbers = #tpu.dot_dimension_numbers<[1], [0], [0], [1], [0, 0, 1, 1], [], []>} : vector<16x6xf32>, vector<6x6xf32>, vector<16x6xf32> -> vector<16x6xf32>
    %69 = arith.addf %64, %68 : vector<16x6xf32>
    %c5_73 = arith.constant 5 : index
    %c0_74 = arith.constant 0 : index
    %70 = vector.load %arg11[%c5_73, %c0_74] : memref<24x6xf32, #tpu.memory_space<vmem>>, vector<16x6xf32>
    %c4_75 = arith.constant 4 : index
    %c0_76 = arith.constant 0 : index
    %c0_77 = arith.constant 0 : index
    %71 = vector.load %arg4[%c4_75, %c0_76, %c0_77] : memref<8x6x6xf32, #tpu.memory_space<vmem>>, vector<1x6x6xf32>
    %72 = vector.shape_cast %71 : vector<1x6x6xf32> to vector<6x6xf32>
    %cst_78 = arith.constant dense<0.000000e+00> : vector<16x6xf32>
    %73 = tpu.matmul %70, %72, %cst_78 {dimension_numbers = #tpu.dot_dimension_numbers<[1], [0], [0], [1], [0, 0, 1, 1], [], []>} : vector<16x6xf32>, vector<6x6xf32>, vector<16x6xf32> -> vector<16x6xf32>
    %74 = arith.addf %69, %73 : vector<16x6xf32>
    %c6_79 = arith.constant 6 : index
    %c0_80 = arith.constant 0 : index
    %75 = vector.load %arg11[%c6_79, %c0_80] : memref<24x6xf32, #tpu.memory_space<vmem>>, vector<16x6xf32>
    %c5_81 = arith.constant 5 : index
    %c0_82 = arith.constant 0 : index
    %c0_83 = arith.constant 0 : index
    %76 = vector.load %arg4[%c5_81, %c0_82, %c0_83] : memref<8x6x6xf32, #tpu.memory_space<vmem>>, vector<1x6x6xf32>
    %77 = vector.shape_cast %76 : vector<1x6x6xf32> to vector<6x6xf32>
    %cst_84 = arith.constant dense<0.000000e+00> : vector<16x6xf32>
    %78 = tpu.matmul %75, %77, %cst_84 {dimension_numbers = #tpu.dot_dimension_numbers<[1], [0], [0], [1], [0, 0, 1, 1], [], []>} : vector<16x6xf32>, vector<6x6xf32>, vector<16x6xf32> -> vector<16x6xf32>
    %79 = arith.addf %74, %78 : vector<16x6xf32>
    %c7_85 = arith.constant 7 : index
    %c0_86 = arith.constant 0 : index
    %80 = vector.load %arg11[%c7_85, %c0_86] : memref<24x6xf32, #tpu.memory_space<vmem>>, vector<16x6xf32>
    %c6_87 = arith.constant 6 : index
    %c0_88 = arith.constant 0 : index
    %c0_89 = arith.constant 0 : index
    %81 = vector.load %arg4[%c6_87, %c0_88, %c0_89] : memref<8x6x6xf32, #tpu.memory_space<vmem>>, vector<1x6x6xf32>
    %82 = vector.shape_cast %81 : vector<1x6x6xf32> to vector<6x6xf32>
    %cst_90 = arith.constant dense<0.000000e+00> : vector<16x6xf32>
    %83 = tpu.matmul %80, %82, %cst_90 {dimension_numbers = #tpu.dot_dimension_numbers<[1], [0], [0], [1], [0, 0, 1, 1], [], []>} : vector<16x6xf32>, vector<6x6xf32>, vector<16x6xf32> -> vector<16x6xf32>
    %84 = arith.addf %79, %83 : vector<16x6xf32>
    %c8_91 = arith.constant 8 : index
    %c0_92 = arith.constant 0 : index
    %85 = vector.load %arg11[%c8_91, %c0_92] : memref<24x6xf32, #tpu.memory_space<vmem>>, vector<16x6xf32>
    %c7_93 = arith.constant 7 : index
    %c0_94 = arith.constant 0 : index
    %c0_95 = arith.constant 0 : index
    %86 = vector.load %arg4[%c7_93, %c0_94, %c0_95] : memref<8x6x6xf32, #tpu.memory_space<vmem>>, vector<1x6x6xf32>
    %87 = vector.shape_cast %86 : vector<1x6x6xf32> to vector<6x6xf32>
    %cst_96 = arith.constant dense<0.000000e+00> : vector<16x6xf32>
    %88 = tpu.matmul %85, %87, %cst_96 {dimension_numbers = #tpu.dot_dimension_numbers<[1], [0], [0], [1], [0, 0, 1, 1], [], []>} : vector<16x6xf32>, vector<6x6xf32>, vector<16x6xf32> -> vector<16x6xf32>
    %89 = arith.addf %84, %88 : vector<16x6xf32>
    %c0_97 = arith.constant 0 : index
    %c0_98 = arith.constant 0 : index
    %90 = vector.load %arg5[%c0_97, %c0_98] : memref<1x6xf32, #tpu.memory_space<vmem>>, vector<1x6xf32>
    %91 = vector.broadcast %90 : vector<1x6xf32> to vector<16x6xf32>
    %92 = arith.addf %89, %91 : vector<16x6xf32>
    %cst_99 = arith.constant 0.000000e+00 : f32
    %93 = vector.broadcast %cst_99 : f32 to vector<16x6xf32>
    %94 = arith.maximumf %92, %93 : vector<16x6xf32>
    %c0_100 = arith.constant 0 : index
    %c0_101 = arith.constant 0 : index
    %c0_102 = arith.constant 0 : index
    %95 = vector.load %arg8[%c0_100, %c0_101, %c0_102] : memref<1x16x8xf32, #tpu.memory_space<vmem>>, vector<1x16x8xf32>
    %96 = vector.shape_cast %95 : vector<1x16x8xf32> to vector<16x8xf32>
    %c0_103 = arith.constant 0 : index
    %c0_104 = arith.constant 0 : index
    %97 = vector.load %arg6[%c0_103, %c0_104] : memref<8x6xf32, #tpu.memory_space<vmem>>, vector<8x6xf32>
    %cst_105 = arith.constant dense<0.000000e+00> : vector<16x6xf32>
    %98 = tpu.matmul %96, %97, %cst_105 {dimension_numbers = #tpu.dot_dimension_numbers<[1], [0], [0], [1], [0, 0, 1, 1], [], []>} : vector<16x8xf32>, vector<8x6xf32>, vector<16x6xf32> -> vector<16x6xf32>
    %c0_106 = arith.constant 0 : index
    %c0_107 = arith.constant 0 : index
    %99 = vector.load %arg7[%c0_106, %c0_107] : memref<1x6xf32, #tpu.memory_space<vmem>>, vector<1x6xf32>
    %100 = vector.broadcast %99 : vector<1x6xf32> to vector<16x6xf32>
    %101 = arith.addf %98, %100 : vector<16x6xf32>
    %102 = arith.addf %94, %101 : vector<16x6xf32>
    %cst_108 = arith.constant 0.000000e+00 : f32
    %103 = vector.broadcast %cst_108 : f32 to vector<16x6xf32>
    %104 = arith.maximumf %102, %103 : vector<16x6xf32>
    %c0_109 = arith.constant 0 : index
    %c0_110 = arith.constant 0 : index
    %c0_111 = arith.constant 0 : index
    %105 = vector.load %arg9[%c0_109, %c0_110, %c0_111] : memref<1x16x6xf32, #tpu.memory_space<vmem>>, vector<1x16x6xf32>
    %106 = vector.shape_cast %105 : vector<1x16x6xf32> to vector<16x6xf32>
    %107 = vector.shape_cast %104 : vector<16x6xf32> to vector<1x16x6xf32>
    tpu.vector_store %arg9[%c0_109, %c0_110, %c0_111], %107 {strides = array<i32>} : memref<1x16x6xf32, #tpu.memory_space<vmem>>, vector<1x16x6xf32>,
    %c0_i32_112 = arith.constant 0 : i32
    %108 = arith.cmpi ne, %arg1, %c0_i32_112 : i32
    %109 = arith.extui %108 : i1 to i32
    %c0_i32_113 = arith.constant 0 : i32
    %110 = arith.cmpi ne, %109, %c0_i32_113 : i32
    scf.if %110 {
      %c16 = arith.constant 16 : index
      %c0_114 = arith.constant 0 : index
      %111 = vector.load %arg10[%c16, %c0_114] : memref<24x8xf32, #tpu.memory_space<vmem>>, vector<8x8xf32>
      %c0_115 = arith.constant 0 : index
      %c0_116 = arith.constant 0 : index
      %112 = vector.load %arg10[%c0_115, %c0_116] : memref<24x8xf32, #tpu.memory_space<vmem>>, vector<8x8xf32>
      tpu.vector_store %arg10[%c0_115, %c0_116], %111 {strides = array<i32>} : memref<24x8xf32, #tpu.memory_space<vmem>>, vector<8x8xf32>,
      %c16_117 = arith.constant 16 : index
      %c0_118 = arith.constant 0 : index
      %113 = vector.load %arg11[%c16_117, %c0_118] : memref<24x6xf32, #tpu.memory_space<vmem>>, vector<8x6xf32>
      %c0_119 = arith.constant 0 : index
      %c0_120 = arith.constant 0 : index
      %114 = vector.load %arg11[%c0_119, %c0_120] : memref<24x6xf32, #tpu.memory_space<vmem>>, vector<8x6xf32>
      tpu.vector_store %arg11[%c0_119, %c0_120], %113 {strides = array<i32>} : memref<24x6xf32, #tpu.memory_space<vmem>>, vector<8x6xf32>,
    } else {
    }
    return
  }
  func.func @transform_0(%arg0: i32, %arg1: i32) -> (i32, i32, i32) {
    %c0_i32 = arith.constant 0 : i32
    %c0_i32_0 = arith.constant 0 : i32
    %c0_i32_1 = arith.constant 0 : i32
    %c0_i32_2 = arith.constant 0 : i32
    return %c0_i32, %c0_i32_0, %c0_i32_1 : i32, i32, i32
  }
  func.func @transform_1(%arg0: i32, %arg1: i32) -> (i32, i32) {
    %c0_i32 = arith.constant 0 : i32
    %c0_i32_0 = arith.constant 0 : i32
    %c0_i32_1 = arith.constant 0 : i32
    return %c0_i32, %c0_i32_0 : i32, i32
  }
  func.func @transform_2(%arg0: i32, %arg1: i32) -> (i32, i32, i32) {
    %c0_i32 = arith.constant 0 : i32
    %c0_i32_0 = arith.constant 0 : i32
    %c0_i32_1 = arith.constant 0 : i32
    %c0_i32_2 = arith.constant 0 : i32
    return %c0_i32, %c0_i32_0, %c0_i32_1 : i32, i32, i32
  }
  func.func @transform_3(%arg0: i32, %arg1: i32) -> (i32, i32) {
    %c0_i32 = arith.constant 0 : i32
    %c0_i32_0 = arith.constant 0 : i32
    %c0_i32_1 = arith.constant 0 : i32
    return %c0_i32, %c0_i32_0 : i32, i32
  }
  func.func @transform_4(%arg0: i32, %arg1: i32) -> (i32, i32) {
    %c0_i32 = arith.constant 0 : i32
    %c0_i32_0 = arith.constant 0 : i32
    %c0_i32_1 = arith.constant 0 : i32
    return %c0_i32, %c0_i32_0 : i32, i32
  }
  func.func @transform_5(%arg0: i32, %arg1: i32) -> (i32, i32) {
    %c0_i32 = arith.constant 0 : i32
    %c0_i32_0 = arith.constant 0 : i32
    %c0_i32_1 = arith.constant 0 : i32
    return %c0_i32, %c0_i32_0 : i32, i32
  }
  func.func @transform_6(%arg0: i32, %arg1: i32) -> (i32, i32, i32) {
    %c0_i32 = arith.constant 0 : i32
    %c0_i32_0 = arith.constant 0 : i32
    return %arg0, %arg1, %c0_i32 : i32, i32, i32
  }
  func.func @transform_7(%arg0: i32, %arg1: i32) -> (i32, i32, i32) {
    %c0_i32 = arith.constant 0 : i32
    %c0_i32_0 = arith.constant 0 : i32
    return %arg0, %arg1, %c0_i32 : i32, i32, i32
  }
}

</mosaic_0001>

<llo_original>
// kernel: _lambda_.3
$region0: #{_lambda_.3}
  #allocation0 [shape = 'u32[]', space=smem, size = 0x4, offset = 0x4, fixed_abs, tag = 'smem constant byte address 0x4 - core index']
  #allocation1 [shape = 'u32[144,128]{1,0:T(1,128)}', space=vmem, size = 0x12000, scoped, tag = 'internal scratch']
  #allocation2 [shape = 'f32[24,4]{1,0:T(8,128)}', space=vmem, size = 0x3000, scoped, tag = 'scratch operand']
  #allocation3 [shape = 'f32[24,8]{1,0:T(8,128)}', space=vmem, size = 0x3000, scoped, tag = 'scratch operand']
  %s0 = inlined_call_operand.vmem [shape: f32[2,4,8], index: 0, kind: input, shape index: {}]
  %s1 = inlined_call_operand.vmem [shape: f32[1,8], index: 1, kind: input, shape index: {}]
  %s2 = inlined_call_operand.vmem [shape: f32[2,8,8], index: 2, kind: input, shape index: {}]
  %s3 = inlined_call_operand.vmem [shape: f32[1,8], index: 3, kind: input, shape index: {}]
  %s4 = inlined_call_operand.vmem [shape: f32[4,8], index: 4, kind: input, shape index: {}]
  %s5 = inlined_call_operand.vmem [shape: f32[1,8], index: 5, kind: input, shape index: {}]
  %s6 = inlined_call_operand.vmem [shape: f32[2,16,4], index: 6, kind: input, shape index: {}]
  %s7 = inlined_call_operand.vmem [shape: f32[2,16,8], index: 7, kind: output, shape index: {}]
  %s8 = sld [smem:[#allocation0]]
  $region69: #{_lambda_.3} parent=0
    _
  %s10 = ssub.s32 1, %s8
  %s11 = scalar_select 0, %s10, %s8
  loop: start=0, step=1, limit=4
  $region2: #{_lambda_.3} parent=0 // loop_pre_header
    _
  $region3: #{_lambda_.3} parent=0 // loop_header
    %s13 = sphi 0, %s17
    %p14 = scmp.ge.s32.totalorder %s13, 4
    %s20 = sphi 0, %s32
    %s21 = sphi 0, %s28
    %s22 = sphi 0, %s20
    %s23 = sphi 0, %s21
    %s24 = sphi 0, %s22
    %s25 = sphi 0, %s23
    %s33 = sphi 0, %s33
    %s35 = sphi 0, %s33
    %s36 = sphi 0, %s35
    %s50 = sphi 0, %s36
    %s54 = sphi 0, %s54
    %s56 = sphi 0, %s54
    %s57 = sphi 0, %s56
    %s71 = sphi 0, %s57
    %s75 = sphi 0, %s75
    %s77 = sphi 0, %s75
    %s78 = sphi 0, %s77
    %s92 = sphi 0, %s78
    %s96 = sphi 0, %s96
    %s98 = sphi 0, %s96
    %s99 = sphi 0, %s98
    %s113 = sphi 0, %s99
    %s117 = sphi 0, %s117
    %s119 = sphi 0, %s117
    %s120 = sphi 0, %s119
    %s134 = sphi 0, %s120
    %s138 = sphi 0, %s138
    %s140 = sphi 0, %s138
    %s141 = sphi 0, %s140
    %s155 = sphi 0, %s141
    %s163 = sphi 0, %s165
    %s166 = sphi 0, %s163
    %s167 = sphi 0, %s166
    %s183 = sphi 0, %s167
    %s191 = sphi 0, %s193
    %s194 = sphi 0, %s191
    %s195 = sphi 0, %s194
    %s211 = sphi 0, %s195
  $region4: #{_lambda_.3} parent=0 // loop_header_branch
    %16 = sbr.rel (%p14) target = $region8
  $region5: #{_lambda_.3} parent=0 // loop_body
    %s18 = ssub.s32 %s13, 1
    %s19 = ssub.s32 %s13, 2
    %s26 = sadd.s32 1, %s21
    %p27 = scmp.ge.s32.totalorder %s26, 1
    %s28 = scalar_select %p27, 0, %s26
    %s29 = sadd.s32 1, %s20
    %s30 = scalar_select %p27, %s29, %s20
    %p31 = scmp.ge.s32.totalorder %s30, 2
    %s32 = scalar_select %p31, 0, %s30
    %s34 = sadd.s32 %s33, 1
    %p37 = scmp.eq.s32.totalorder %s13, 1
    %p38 = scmp.ne.s32.totalorder %s33, %s35
    %p39 = scmp.eq.s32.totalorder %s13, 0
    %p40 = por %p38, %p39
    %p41 = scmp.ne.s32.totalorder %s33, %s35
    %p42 = scmp.eq.s32.totalorder %s18, 1
    %p43 = por %p41, %p42
    %p44 = scmp.ne.s32.totalorder %s35, %s36
    %p45 = scmp.eq.s32.totalorder %s18, 0
    %p46 = por %p44, %p45
    %p47 = scmp.ne.s32.totalorder %s35, %s36
    %p48 = scmp.eq.s32.totalorder %s19, 1
    %p49 = por %p47, %p48
    %p51 = scmp.ne.s32.totalorder %s36, %s50
    %p52 = scmp.eq.s32.totalorder %s19, 0
    %p53 = por %p51, %p52
    %s55 = sadd.s32 %s54, 1
    %p58 = scmp.eq.s32.totalorder %s13, 1
    %p59 = scmp.ne.s32.totalorder %s54, %s56
    %p60 = scmp.eq.s32.totalorder %s13, 0
    %p61 = por %p59, %p60
    %p62 = scmp.ne.s32.totalorder %s54, %s56
    %p63 = scmp.eq.s32.totalorder %s18, 1
    %p64 = por %p62, %p63
    %p65 = scmp.ne.s32.totalorder %s56, %s57
    %p66 = scmp.eq.s32.totalorder %s18, 0
    %p67 = por %p65, %p66
    %p68 = scmp.ne.s32.totalorder %s56, %s57
    %p69 = scmp.eq.s32.totalorder %s19, 1
    %p70 = por %p68, %p69
    %p72 = scmp.ne.s32.totalorder %s57, %s71
    %p73 = scmp.eq.s32.totalorder %s19, 0
    %p74 = por %p72, %p73
    %s76 = sadd.s32 %s75, 1
    %p79 = scmp.eq.s32.totalorder %s13, 1
    %p80 = scmp.ne.s32.totalorder %s75, %s77
    %p81 = scmp.eq.s32.totalorder %s13, 0
    %p82 = por %p80, %p81
    %p83 = scmp.ne.s32.totalorder %s75, %s77
    %p84 = scmp.eq.s32.totalorder %s18, 1
    %p85 = por %p83, %p84
    %p86 = scmp.ne.s32.totalorder %s77, %s78
    %p87 = scmp.eq.s32.totalorder %s18, 0
    %p88 = por %p86, %p87
    %p89 = scmp.ne.s32.totalorder %s77, %s78
    %p90 = scmp.eq.s32.totalorder %s19, 1
    %p91 = por %p89, %p90
    %p93 = scmp.ne.s32.totalorder %s78, %s92
    %p94 = scmp.eq.s32.totalorder %s19, 0
    %p95 = por %p93, %p94
    %s97 = sadd.s32 %s96, 1
    %p100 = scmp.eq.s32.totalorder %s13, 1
    %p101 = scmp.ne.s32.totalorder %s96, %s98
    %p102 = scmp.eq.s32.totalorder %s13, 0
    %p103 = por %p101, %p102
    %p104 = scmp.ne.s32.totalorder %s96, %s98
    %p105 = scmp.eq.s32.totalorder %s18, 1
    %p106 = por %p104, %p105
    %p107 = scmp.ne.s32.totalorder %s98, %s99
    %p108 = scmp.eq.s32.totalorder %s18, 0
    %p109 = por %p107, %p108
    %p110 = scmp.ne.s32.totalorder %s98, %s99
    %p111 = scmp.eq.s32.totalorder %s19, 1
    %p112 = por %p110, %p111
    %p114 = scmp.ne.s32.totalorder %s99, %s113
    %p115 = scmp.eq.s32.totalorder %s19, 0
    %p116 = por %p114, %p115
    %s118 = sadd.s32 %s117, 1
    %p121 = scmp.eq.s32.totalorder %s13, 1
    %p122 = scmp.ne.s32.totalorder %s117, %s119
    %p123 = scmp.eq.s32.totalorder %s13, 0
    %p124 = por %p122, %p123
    %p125 = scmp.ne.s32.totalorder %s117, %s119
    %p126 = scmp.eq.s32.totalorder %s18, 1
    %p127 = por %p125, %p126
    %p128 = scmp.ne.s32.totalorder %s119, %s120
    %p129 = scmp.eq.s32.totalorder %s18, 0
    %p130 = por %p128, %p129
    %p131 = scmp.ne.s32.totalorder %s119, %s120
    %p132 = scmp.eq.s32.totalorder %s19, 1
    %p133 = por %p131, %p132
    %p135 = scmp.ne.s32.totalorder %s120, %s134
    %p136 = scmp.eq.s32.totalorder %s19, 0
    %p137 = por %p135, %p136
    %s139 = sadd.s32 %s138, 1
    %p142 = scmp.eq.s32.totalorder %s13, 1
    %p143 = scmp.ne.s32.totalorder %s138, %s140
    %p144 = scmp.eq.s32.totalorder %s13, 0
    %p145 = por %p143, %p144
    %p146 = scmp.ne.s32.totalorder %s138, %s140
    %p147 = scmp.eq.s32.totalorder %s18, 1
    %p148 = por %p146, %p147
    %p149 = scmp.ne.s32.totalorder %s140, %s141
    %p150 = scmp.eq.s32.totalorder %s18, 0
    %p151 = por %p149, %p150
    %p152 = scmp.ne.s32.totalorder %s140, %s141
    %p153 = scmp.eq.s32.totalorder %s19, 1
    %p154 = por %p152, %p153
    %p156 = scmp.ne.s32.totalorder %s141, %s155
    %p157 = scmp.eq.s32.totalorder %s19, 0
    %p158 = por %p156, %p157
    %s159 = ssub.s32 %s20, %s32
    %s160 = ssub.s32 %s21, %s28
    %s161 = sor.u32 %s159, %s160
    %p162 = scmp.eq.s32.totalorder %s161, 0
    %s164 = sadd.s32 %s163, 1
    %s165 = scalar_select %p162, %s163, %s164
    %p168 = pneg %p162
    %p169 = scmp.eq.s32.totalorder %s13, 1
    %p170 = por %p168, %p169
    %p171 = scmp.ne.s32.totalorder %s163, %s166
    %p172 = scmp.eq.s32.totalorder %s13, 0
    %p173 = por %p171, %p172
    %p174 = scmp.ne.s32.totalorder %s163, %s166
    %p175 = scmp.eq.s32.totalorder %s18, 1
    %p176 = por %p174, %p175
    %p177 = scmp.ne.s32.totalorder %s166, %s167
    %p178 = scmp.eq.s32.totalorder %s18, 0
    %p179 = por %p177, %p178
    %p180 = scmp.ne.s32.totalorder %s166, %s167
    %p181 = scmp.eq.s32.totalorder %s19, 1
    %p182 = por %p180, %p181
    %p184 = scmp.ne.s32.totalorder %s167, %s183
    %p185 = scmp.eq.s32.totalorder %s19, 0
    %p186 = por %p184, %p185
    %s187 = ssub.s32 %s20, %s32
    %s188 = ssub.s32 %s21, %s28
    %s189 = sor.u32 %s187, %s188
    %p190 = scmp.eq.s32.totalorder %s189, 0
    %s192 = sadd.s32 %s191, 1
    %s193 = scalar_select %p190, %s191, %s192
    %p196 = pneg %p190
    %p197 = scmp.eq.s32.totalorder %s13, 1
    %p198 = por %p196, %p197
    %p199 = scmp.ne.s32.totalorder %s191, %s194
    %p200 = scmp.eq.s32.totalorder %s13, 0
    %p201 = por %p199, %p200
    %p202 = scmp.ne.s32.totalorder %s191, %s194
    %p203 = scmp.eq.s32.totalorder %s18, 1
    %p204 = por %p202, %p203
    %p205 = scmp.ne.s32.totalorder %s194, %s195
    %p206 = scmp.eq.s32.totalorder %s18, 0
    %p207 = por %p205, %p206
    %p208 = scmp.ne.s32.totalorder %s194, %s195
    %p209 = scmp.eq.s32.totalorder %s19, 1
    %p210 = por %p208, %p209
    %p212 = scmp.ne.s32.totalorder %s195, %s211
    %p213 = scmp.eq.s32.totalorder %s19, 0
    %p214 = por %p212, %p213
    %p215 = scmp.le.s32.totalorder 1, %s13
    %p216 = scmp.lt.s32.totalorder %s13, 3
    %p217 = pnand %p215, %p216
    %p218 = pneg %p217
    // Predicated region
    $region9: #{_lambda_.3} parent=5 // pred_check
      _
    $region10: #{_lambda_.3} parent=5 // pred_check_branch
      %220 = sbr.rel (%p217) target = $region12
    $region11: #{_lambda_.3} parent=5 // pred_region
      %s221 = ssub.s32 %s13, 1
      // Predicated region
      $region13: #{_lambda_.3} parent=11 // pred_check
        %p222 = pneg %p46
      $region14: #{_lambda_.3} parent=11 // pred_check_branch
        %224 = sbr.rel (%p222) target = $region16
      $region15: #{_lambda_.3} parent=11 // pred_region
        _
      $region16: #{_lambda_.3} parent=11 // pred_fallthru
        _
      // Predicated region
      $region17: #{_lambda_.3} parent=11 // pred_check
        %p225 = pneg %p67
      $region18: #{_lambda_.3} parent=11 // pred_check_branch
        %227 = sbr.rel (%p225) target = $region20
      $region19: #{_lambda_.3} parent=11 // pred_region
        _
      $region20: #{_lambda_.3} parent=11 // pred_fallthru
        _
      // Predicated region
      $region21: #{_lambda_.3} parent=11 // pred_check
        %p228 = pneg %p88
      $region22: #{_lambda_.3} parent=11 // pred_check_branch
        %230 = sbr.rel (%p228) target = $region24
      $region23: #{_lambda_.3} parent=11 // pred_region
        _
      $region24: #{_lambda_.3} parent=11 // pred_fallthru
        _
      // Predicated region
      $region25: #{_lambda_.3} parent=11 // pred_check
        %p231 = pneg %p109
      $region26: #{_lambda_.3} parent=11 // pred_check_branch
        %233 = sbr.rel (%p231) target = $region28
      $region27: #{_lambda_.3} parent=11 // pred_region
        _
      $region28: #{_lambda_.3} parent=11 // pred_fallthru
        _
      // Predicated region
      $region29: #{_lambda_.3} parent=11 // pred_check
        %p234 = pneg %p130
      $region30: #{_lambda_.3} parent=11 // pred_check_branch
        %236 = sbr.rel (%p234) target = $region32
      $region31: #{_lambda_.3} parent=11 // pred_region
        _
      $region32: #{_lambda_.3} parent=11 // pred_fallthru
        _
      // Predicated region
      $region33: #{_lambda_.3} parent=11 // pred_check
        %p237 = pneg %p151
      $region34: #{_lambda_.3} parent=11 // pred_check_branch
        %239 = sbr.rel (%p237) target = $region36
      $region35: #{_lambda_.3} parent=11 // pred_region
        _
      $region36: #{_lambda_.3} parent=11 // pred_fallthru
        _
    $region12: #{_lambda_.3} parent=5 // pred_fallthru
      _
    %p240 = scmp.lt.s32.totalorder %s13, 2
    // Predicated region
    $region37: #{_lambda_.3} parent=5 // pred_check
      %p241 = pneg %p240
    $region38: #{_lambda_.3} parent=5 // pred_check_branch
      %243 = sbr.rel (%p241) target = $region40
    $region39: #{_lambda_.3} parent=5 // pred_region
      // Predicated region
      $region41: #{_lambda_.3} parent=39 // pred_check
        %p244 = pneg %p173
      $region42: #{_lambda_.3} parent=39 // pred_check_branch
        %246 = sbr.rel (%p244) target = $region44
      $region43: #{_lambda_.3} parent=39 // pred_region
        %s247 = smul.u32 2, %s21
        %p248 = scmp.lt.s32.totalorder %s20, 1
        %s249 = scalar_select %p248, %s20, 1
        %p250 = scmp.lt.s32.totalorder %s247, 1
        %s251 = scalar_select %p250, %s247, 1
        %s252 = smul.addr %s249, 2
        %s253 = sadd.s32 %s251, %s252
        %s254 = smul.addr %s253, 8
        %s255 = scalar_lea.vmem %s6, %s254
        %s256 = smul.u32 2, %s21
      $region44: #{_lambda_.3} parent=39 // pred_fallthru
        _
    $region40: #{_lambda_.3} parent=5 // pred_fallthru
      _
    %p257 = scmp.le.s32.totalorder 1, %s13
    %p258 = scmp.lt.s32.totalorder %s13, 3
    %p259 = pnand %p257, %p258
    %p260 = pneg %p259
    // Predicated region
    $region45: #{_lambda_.3} parent=5 // pred_check
      _
    $region46: #{_lambda_.3} parent=5 // pred_check_branch
      %262 = sbr.rel (%p259) target = $region48
    $region47: #{_lambda_.3} parent=5 // pred_region
      %s263 = ssub.s32 %s13, 1
      %p264 = pneg %p46
      %p265 = pneg %p43
      %p266 = pneg %p67
      %p267 = pneg %p64
      %p268 = pneg %p88
      %p269 = pneg %p85
      %p270 = pneg %p109
      %p271 = pneg %p106
      %p272 = pneg %p130
      %p273 = pneg %p127
      %p274 = pneg %p151
      %p275 = pneg %p148
      %s276 = smul.u32 2, %s23
      %p277 = scmp.lt.s32.totalorder %s22, 1
      %s278 = scalar_select %p277, %s22, 1
      %p279 = scmp.lt.s32.totalorder %s276, 1
      %s280 = scalar_select %p279, %s276, 1
      %s281 = smul.addr %s278, 2
      %s282 = sadd.s32 %s280, %s281
      %s283 = smul.addr %s282, 8
      %s284 = scalar_lea.vmem %s6, %s283
      %p285 = pneg %p179
      %p286 = pneg %p176
      %p287 = pneg %p207
      %p288 = pneg %p204
      %s289 = smul.u32 2, %s23
      %p290 = scmp.lt.s32.totalorder %s22, 1
      %s291 = scalar_select %p290, %s22, 1
      %p292 = scmp.lt.s32.totalorder %s289, 1
      %s293 = scalar_select %p292, %s289, 1
      %s294 = smul.addr %s291, 2
      %s295 = sadd.s32 %s293, %s294
      %s296 = smul.addr %s295, 8
      %s297 = scalar_lea.vmem %s7, %s296
      %s298 = smul.u32 2, %s23
      %p299 = scmp.lt.s32.totalorder %s22, 1
      %s300 = scalar_select %p299, %s22, 1
      %p301 = scmp.lt.s32.totalorder %s298, 1
      %s302 = scalar_select %p301, %s298, 1
      %s303 = smul.addr %s300, 2
      %s304 = sadd.s32 %s302, %s303
      %s305 = smul.addr %s304, 8
      %s306 = scalar_lea.vmem %s6, %s305
      %s307 = smul.u32 2, %s23
      %s308 = smul.u32 2, %s23
      %p309 = scmp.lt.s32.totalorder %s22, 1
      %s310 = scalar_select %p309, %s22, 1
      %p311 = scmp.lt.s32.totalorder %s308, 1
      %s312 = scalar_select %p311, %s308, 1
      %s313 = smul.addr %s310, 2
      %s314 = sadd.s32 %s312, %s313
      %s315 = smul.addr %s314, 8
      %s316 = scalar_lea.vmem %s7, %s315
      %s317 = smul.u32 2, %s23
      %p318 = scmp.eq.s32.totalorder %s23, 0
      // Predicated region
      $region49: #{_lambda_.3} parent=47 // pred_check
        %p319 = pneg %p318
      $region50: #{_lambda_.3} parent=47 // pred_check_branch
        %321 = sbr.rel (%p319) target = $region52
      $region51: #{_lambda_.3} parent=47 // pred_region
        %vm322 = vcmask 31744
        %323 = vst.msk [vmem:[#allocation2] sm:$0xff] %vm322, 0.0
        %324 = vst.msk [vmem:[#allocation2 + $0x8] sm:$0xff] %vm322, 0.0
        %325 = vst.msk [vmem:[#allocation2 + $0x10] sm:$0xff] %vm322, 0.0
        %vm326 = vcmask 64512
        %327 = vst.msk [vmem:[#allocation3] sm:$0xff] %vm326, 0.0
        %328 = vst.msk [vmem:[#allocation3 + $0x8] sm:$0xff] %vm326, 0.0
        %329 = vst.msk [vmem:[#allocation3 + $0x10] sm:$0xff] %vm326, 0.0
      $region52: #{_lambda_.3} parent=47 // pred_fallthru
        _
      %v330 = vld [vmem:[%s306] sm:$0xff]
      %v331 = vld [vmem:[%s306 + $0x8] sm:$0xff]
      %vm332 = vcmask 31744
      %333 = vst.msk [vmem:[#allocation2 + $0x8] sm:$0xff] %vm332, %v330
      %334 = vst.msk [vmem:[#allocation2 + $0x10] sm:$0xff] %vm332, %v331
      %v335 = vld [vmem:[#allocation2 + $0x7] sm:$0xff]
      %v336 = vld [vmem:[#allocation2 + $0xf] sm:$0xff]
      %v337 = vld [vmem:[%s0] sm:$0xf]
      %v338 = vld [vmem:[#allocation2 + $0x8] sm:$0xff]
      %v339 = vld [vmem:[#allocation2 + $0x10] sm:$0xff]
      %s340 = scalar_lea.vmem %s0, 4
      %v341 = vld [vmem:[%s340] sm:$0xf]
      %v343 = vsel %vm332, %v338, 0
      %v346 = vsel %vm332, %v339, 0
      %vm348 = vcmask 1043456
      %v350 = vsel %vm348, %v341, 0
      %352 = vmatprep.subr.mxu0 0.0
      %353 = vmatpush1.msra.mxu0 0.0
      %354 = vmatprep.subr.mxu0 0.0
      %355 = vmatpush1.msra.mxu0 0.0
      %356 = vmatprep.subr.mxu0 0.0
      %357 = vmatpush1.msra.mxu0 0.0
      %358 = vmatprep.subr.mxu0 0.0
      %359 = vmatpush1.msra.mxu0 0.0
      %360 = vmatprep.subr.mxu0 0.0
      %361 = vmatpush1.msra.mxu0 0.0
      %362 = vmatprep.subr.mxu0 0.0
      %363 = vmatpush1.msra.mxu0 0.0
      %364 = vmatprep.subr.mxu0 0.0
      %365 = vmatpush1.msra.mxu0 0.0
      %366 = vmatprep.subr.mxu0 0.0
      %367 = vmatpush1.msra.mxu0 0.0
      %368 = vmatprep.subr.mxu0 0.0
      %369 = vmatpush1.msra.mxu0 0.0
      %370 = vmatprep.subr.mxu0 0.0
      %371 = vmatpush1.msra.mxu0 0.0
      %372 = vmatprep.subr.mxu0 0.0
      %373 = vmatpush1.msra.mxu0 0.0
      %374 = vmatprep.subr.mxu0 0.0
      %375 = vmatpush1.msra.mxu0 0.0
      %376 = vmatprep.subr.mxu0 0.0
      %377 = vmatpush1.msra.mxu0 0.0
      %378 = vmatprep.subr.mxu0 0.0
      %379 = vmatpush1.msra.mxu0 0.0
      %380 = vmatprep.subr.mxu0 0.0
      %381 = vmatpush1.msra.mxu0 0.0
      %382 = vmatprep.subr.mxu0 0.0
      %383 = vmatpush1.msra.mxu0 %v350
      %384 = vmatprep.subr.mxu0 0.0
      %385 = vmatpush2.msra.mxu0 0.0
      %386 = vmatprep.subr.mxu0 0.0
      %387 = vmatpush2.msra.mxu0 0.0
      %388 = vmatprep.subr.mxu0 0.0
      %389 = vmatpush2.msra.mxu0 0.0
      %390 = vmatprep.subr.mxu0 0.0
      %391 = vmatpush2.msra.mxu0 0.0
      %392 = vmatprep.subr.mxu0 0.0
      %393 = vmatpush2.msra.mxu0 0.0
      %394 = vmatprep.subr.mxu0 0.0
      %395 = vmatpush2.msra.mxu0 0.0
      %396 = vmatprep.subr.mxu0 0.0
      %397 = vmatpush2.msra.mxu0 0.0
      %398 = vmatprep.subr.mxu0 0.0
      %399 = vmatpush2.msra.mxu0 0.0
      %400 = vmatprep.subr.mxu0 0.0
      %401 = vmatpush2.msra.mxu0 0.0
      %402 = vmatprep.subr.mxu0 0.0
      %403 = vmatpush2.msra.mxu0 0.0
      %404 = vmatprep.subr.mxu0 0.0
      %405 = vmatpush2.msra.mxu0 0.0
      %406 = vmatprep.subr.mxu0 0.0
      %407 = vmatpush2.msra.mxu0 0.0
      %408 = vmatprep.subr.mxu0 0.0
      %409 = vmatpush2.msra.mxu0 0.0
      %410 = vmatprep.subr.mxu0 0.0
      %411 = vmatpush2.msra.mxu0 0.0
      %412 = vmatprep.subr.mxu0 0.0
      %413 = vmatpush2.msra.mxu0 0.0
      %414 = vmatprep.subr.mxu0 0.0
      %415 = vmatpush2.msra.mxu0 0.0
      %416 = vmatprep.mubr.f32.mxu0 0.0
      %417 = vmatmul.mubr.f32.gmra.mxu0 %v343
      %v418 = vpop.f32.mrf.mxu0
      %v419 = vadd.f32 0.0, %v418
      %v420 = vpop.f32.mrf.mxu0
      %421 = vmatprep.mubr.f32.mxu0 0.0
      %422 = vmatmul.mubr.f32.gmra.mxu0 %v346
      %v423 = vpop.f32.mrf.mxu0
      %v424 = vadd.f32 0.0, %v423
      %v425 = vpop.f32.mrf.mxu0
      %426 = vdwg.mxu0
      %v428 = vsel %vm332, %v335, 0
      %v431 = vsel %vm332, %v336, 0
      %v434 = vsel %vm348, %v337, 0
      %436 = vmatprep.subr.mxu0 0.0
      %437 = vmatpush1.msra.mxu0 0.0
      %438 = vmatprep.subr.mxu0 0.0
      %439 = vmatpush1.msra.mxu0 0.0
      %440 = vmatprep.subr.mxu0 0.0
      %441 = vmatpush1.msra.mxu0 0.0
      %442 = vmatprep.subr.mxu0 0.0
      %443 = vmatpush1.msra.mxu0 0.0
      %444 = vmatprep.subr.mxu0 0.0
      %445 = vmatpush1.msra.mxu0 0.0
      %446 = vmatprep.subr.mxu0 0.0
      %447 = vmatpush1.msra.mxu0 0.0
      %448 = vmatprep.subr.mxu0 0.0
      %449 = vmatpush1.msra.mxu0 0.0
      %450 = vmatprep.subr.mxu0 0.0
      %451 = vmatpush1.msra.mxu0 0.0
      %452 = vmatprep.subr.mxu0 0.0
      %453 = vmatpush1.msra.mxu0 0.0
      %454 = vmatprep.subr.mxu0 0.0
      %455 = vmatpush1.msra.mxu0 0.0
      %456 = vmatprep.subr.mxu0 0.0
      %457 = vmatpush1.msra.mxu0 0.0
      %458 = vmatprep.subr.mxu0 0.0
      %459 = vmatpush1.msra.mxu0 0.0
      %460 = vmatprep.subr.mxu0 0.0
      %461 = vmatpush1.msra.mxu0 0.0
      %462 = vmatprep.subr.mxu0 0.0
      %463 = vmatpush1.msra.mxu0 0.0
      %464 = vmatprep.subr.mxu0 0.0
      %465 = vmatpush1.msra.mxu0 0.0
      %466 = vmatprep.subr.mxu0 0.0
      %467 = vmatpush1.msra.mxu0 %v434
      %468 = vmatprep.subr.mxu0 0.0
      %469 = vmatpush2.msra.mxu0 0.0
      %470 = vmatprep.subr.mxu0 0.0
      %471 = vmatpush2.msra.mxu0 0.0
      %472 = vmatprep.subr.mxu0 0.0
      %473 = vmatpush2.msra.mxu0 0.0
      %474 = vmatprep.subr.mxu0 0.0
      %475 = vmatpush2.msra.mxu0 0.0
      %476 = vmatprep.subr.mxu0 0.0
      %477 = vmatpush2.msra.mxu0 0.0
      %478 = vmatprep.subr.mxu0 0.0
      %479 = vmatpush2.msra.mxu0 0.0
      %480 = vmatprep.subr.mxu0 0.0
      %481 = vmatpush2.msra.mxu0 0.0
      %482 = vmatprep.subr.mxu0 0.0
      %483 = vmatpush2.msra.mxu0 0.0
      %484 = vmatprep.subr.mxu0 0.0
      %485 = vmatpush2.msra.mxu0 0.0
      %486 = vmatprep.subr.mxu0 0.0
      %487 = vmatpush2.msra.mxu0 0.0
      %488 = vmatprep.subr.mxu0 0.0
      %489 = vmatpush2.msra.mxu0 0.0
      %490 = vmatprep.subr.mxu0 0.0
      %491 = vmatpush2.msra.mxu0 0.0
      %492 = vmatprep.subr.mxu0 0.0
      %493 = vmatpush2.msra.mxu0 0.0
      %494 = vmatprep.subr.mxu0 0.0
      %495 = vmatpush2.msra.mxu0 0.0
      %496 = vmatprep.subr.mxu0 0.0
      %497 = vmatpush2.msra.mxu0 0.0
      %498 = vmatprep.subr.mxu0 0.0
      %499 = vmatpush2.msra.mxu0 0.0
      %500 = vmatprep.mubr.f32.mxu0 0.0
      %501 = vmatmul.mubr.f32.gmra.mxu0 %v428
      %v502 = vpop.f32.mrf.mxu0
      %v503 = vadd.f32 %v419, %v502
      %v504 = vpop.f32.mrf.mxu0
      %505 = vmatprep.mubr.f32.mxu0 0.0
      %506 = vmatmul.mubr.f32.gmra.mxu0 %v431
      %v507 = vpop.f32.mrf.mxu0
      %v508 = vadd.f32 %v424, %v507
      %v509 = vpop.f32.mrf.mxu0
      %510 = vdwg.mxu0
      %v511 = vld [vmem:[%s1] sm:$0x1]
      %v513 = vlaneseq
      %v514 = vshrl.u32 %v513, 7
      %v515 = vsub.s32 0, %v514
      %v516 = vrot.slane %v511, %v515
      %v518 = vadd.f32 %v503, %v516
      %v519 = vadd.f32 %v508, %v516
      %v520 = vmax.f32 %v518, 0.0
      %v521 = vmax.f32 %v519, 0.0
      %vm522 = vcmask 64512
      %523 = vst.msk [vmem:[#allocation3 + $0x8] sm:$0xff] %vm522, %v520
      %524 = vst.msk [vmem:[#allocation3 + $0x10] sm:$0xff] %vm522, %v521
      %v525 = vld [vmem:[#allocation3 + $0x7] sm:$0xff]
      %v526 = vld [vmem:[#allocation3 + $0xf] sm:$0xff]
      %v527 = vld [vmem:[%s2] sm:$0xff]
      %v528 = vld [vmem:[#allocation3 + $0x8] sm:$0xff]
      %v529 = vld [vmem:[#allocation3 + $0x10] sm:$0xff]
      %s530 = scalar_lea.vmem %s2, 8
      %v531 = vld [vmem:[%s530] sm:$0xff]
      %v533 = vsel %vm522, %v528, 0
      %v536 = vsel %vm522, %v529, 0
      %538 = vmatprep.subr.mxu0 0.0
      %539 = vmatpush1.msra.mxu0 0.0
      %540 = vmatprep.subr.mxu0 0.0
      %541 = vmatpush1.msra.mxu0 0.0
      %542 = vmatprep.subr.mxu0 0.0
      %543 = vmatpush1.msra.mxu0 0.0
      %544 = vmatprep.subr.mxu0 0.0
      %545 = vmatpush1.msra.mxu0 0.0
      %546 = vmatprep.subr.mxu0 0.0
      %547 = vmatpush1.msra.mxu0 0.0
      %548 = vmatprep.subr.mxu0 0.0
      %549 = vmatpush1.msra.mxu0 0.0
      %550 = vmatprep.subr.mxu0 0.0
      %551 = vmatpush1.msra.mxu0 0.0
      %552 = vmatprep.subr.mxu0 0.0
      %553 = vmatpush1.msra.mxu0 0.0
      %554 = vmatprep.subr.mxu0 0.0
      %555 = vmatpush1.msra.mxu0 0.0
      %556 = vmatprep.subr.mxu0 0.0
      %557 = vmatpush1.msra.mxu0 0.0
      %558 = vmatprep.subr.mxu0 0.0
      %559 = vmatpush1.msra.mxu0 0.0
      %560 = vmatprep.subr.mxu0 0.0
      %561 = vmatpush1.msra.mxu0 0.0
      %562 = vmatprep.subr.mxu0 0.0
      %563 = vmatpush1.msra.mxu0 0.0
      %564 = vmatprep.subr.mxu0 0.0
      %565 = vmatpush1.msra.mxu0 0.0
      %566 = vmatprep.subr.mxu0 0.0
      %567 = vmatpush1.msra.mxu0 0.0
      %568 = vmatprep.subr.mxu0 0.0
      %569 = vmatpush1.msra.mxu0 %v531
      %570 = vmatprep.subr.mxu0 0.0
      %571 = vmatpush2.msra.mxu0 0.0
      %572 = vmatprep.subr.mxu0 0.0
      %573 = vmatpush2.msra.mxu0 0.0
      %574 = vmatprep.subr.mxu0 0.0
      %575 = vmatpush2.msra.mxu0 0.0
      %576 = vmatprep.subr.mxu0 0.0
      %577 = vmatpush2.msra.mxu0 0.0
      %578 = vmatprep.subr.mxu0 0.0
      %579 = vmatpush2.msra.mxu0 0.0
      %580 = vmatprep.subr.mxu0 0.0
      %581 = vmatpush2.msra.mxu0 0.0
      %582 = vmatprep.subr.mxu0 0.0
      %583 = vmatpush2.msra.mxu0 0.0
      %584 = vmatprep.subr.mxu0 0.0
      %585 = vmatpush2.msra.mxu0 0.0
      %586 = vmatprep.subr.mxu0 0.0
      %587 = vmatpush2.msra.mxu0 0.0
      %588 = vmatprep.subr.mxu0 0.0
      %589 = vmatpush2.msra.mxu0 0.0
      %590 = vmatprep.subr.mxu0 0.0
      %591 = vmatpush2.msra.mxu0 0.0
      %592 = vmatprep.subr.mxu0 0.0
      %593 = vmatpush2.msra.mxu0 0.0
      %594 = vmatprep.subr.mxu0 0.0
      %595 = vmatpush2.msra.mxu0 0.0
      %596 = vmatprep.subr.mxu0 0.0
      %597 = vmatpush2.msra.mxu0 0.0
      %598 = vmatprep.subr.mxu0 0.0
      %599 = vmatpush2.msra.mxu0 0.0
      %600 = vmatprep.subr.mxu0 0.0
      %601 = vmatpush2.msra.mxu0 0.0
      %602 = vmatprep.mubr.f32.mxu0 0.0
      %603 = vmatmul.mubr.f32.gmra.mxu0 %v533
      %v604 = vpop.f32.mrf.mxu0
      %v605 = vadd.f32 0.0, %v604
      %v606 = vpop.f32.mrf.mxu0
      %607 = vmatprep.mubr.f32.mxu0 0.0
      %608 = vmatmul.mubr.f32.gmra.mxu0 %v536
      %v609 = vpop.f32.mrf.mxu0
      %v610 = vadd.f32 0.0, %v609
      %v611 = vpop.f32.mrf.mxu0
      %612 = vdwg.mxu0
      %v614 = vsel %vm522, %v525, 0
      %v617 = vsel %vm522, %v526, 0
      %619 = vmatprep.subr.mxu0 0.0
      %620 = vmatpush1.msra.mxu0 0.0
      %621 = vmatprep.subr.mxu0 0.0
      %622 = vmatpush1.msra.mxu0 0.0
      %623 = vmatprep.subr.mxu0 0.0
      %624 = vmatpush1.msra.mxu0 0.0
      %625 = vmatprep.subr.mxu0 0.0
      %626 = vmatpush1.msra.mxu0 0.0
      %627 = vmatprep.subr.mxu0 0.0
      %628 = vmatpush1.msra.mxu0 0.0
      %629 = vmatprep.subr.mxu0 0.0
      %630 = vmatpush1.msra.mxu0 0.0
      %631 = vmatprep.subr.mxu0 0.0
      %632 = vmatpush1.msra.mxu0 0.0
      %633 = vmatprep.subr.mxu0 0.0
      %634 = vmatpush1.msra.mxu0 0.0
      %635 = vmatprep.subr.mxu0 0.0
      %636 = vmatpush1.msra.mxu0 0.0
      %637 = vmatprep.subr.mxu0 0.0
      %638 = vmatpush1.msra.mxu0 0.0
      %639 = vmatprep.subr.mxu0 0.0
      %640 = vmatpush1.msra.mxu0 0.0
      %641 = vmatprep.subr.mxu0 0.0
      %642 = vmatpush1.msra.mxu0 0.0
      %643 = vmatprep.subr.mxu0 0.0
      %644 = vmatpush1.msra.mxu0 0.0
      %645 = vmatprep.subr.mxu0 0.0
      %646 = vmatpush1.msra.mxu0 0.0
      %647 = vmatprep.subr.mxu0 0.0
      %648 = vmatpush1.msra.mxu0 0.0
      %649 = vmatprep.subr.mxu0 0.0
      %650 = vmatpush1.msra.mxu0 %v527
      %651 = vmatprep.subr.mxu0 0.0
      %652 = vmatpush2.msra.mxu0 0.0
      %653 = vmatprep.subr.mxu0 0.0
      %654 = vmatpush2.msra.mxu0 0.0
      %655 = vmatprep.subr.mxu0 0.0
      %656 = vmatpush2.msra.mxu0 0.0
      %657 = vmatprep.subr.mxu0 0.0
      %658 = vmatpush2.msra.mxu0 0.0
      %659 = vmatprep.subr.mxu0 0.0
      %660 = vmatpush2.msra.mxu0 0.0
      %661 = vmatprep.subr.mxu0 0.0
      %662 = vmatpush2.msra.mxu0 0.0
      %663 = vmatprep.subr.mxu0 0.0
      %664 = vmatpush2.msra.mxu0 0.0
      %665 = vmatprep.subr.mxu0 0.0
      %666 = vmatpush2.msra.mxu0 0.0
      %667 = vmatprep.subr.mxu0 0.0
      %668 = vmatpush2.msra.mxu0 0.0
      %669 = vmatprep.subr.mxu0 0.0
      %670 = vmatpush2.msra.mxu0 0.0
      %671 = vmatprep.subr.mxu0 0.0
      %672 = vmatpush2.msra.mxu0 0.0
      %673 = vmatprep.subr.mxu0 0.0
      %674 = vmatpush2.msra.mxu0 0.0
      %675 = vmatprep.subr.mxu0 0.0
      %676 = vmatpush2.msra.mxu0 0.0
      %677 = vmatprep.subr.mxu0 0.0
      %678 = vmatpush2.msra.mxu0 0.0
      %679 = vmatprep.subr.mxu0 0.0
      %680 = vmatpush2.msra.mxu0 0.0
      %681 = vmatprep.subr.mxu0 0.0
      %682 = vmatpush2.msra.mxu0 0.0
      %683 = vmatprep.mubr.f32.mxu0 0.0
      %684 = vmatmul.mubr.f32.gmra.mxu0 %v614
      %v685 = vpop.f32.mrf.mxu0
      %v686 = vadd.f32 %v605, %v685
      %v687 = vpop.f32.mrf.mxu0
      %688 = vmatprep.mubr.f32.mxu0 0.0
      %689 = vmatmul.mubr.f32.gmra.mxu0 %v617
      %v690 = vpop.f32.mrf.mxu0
      %v691 = vadd.f32 %v610, %v690
      %v692 = vpop.f32.mrf.mxu0
      %693 = vdwg.mxu0
      %v694 = vld [vmem:[%s3] sm:$0x1]
      %v696 = vlaneseq
      %v697 = vshrl.u32 %v696, 7
      %v698 = vsub.s32 0, %v697
      %v699 = vrot.slane %v694, %v698
      %v701 = vadd.f32 %v686, %v699
      %v702 = vadd.f32 %v691, %v699
      %v703 = vmax.f32 %v701, 0.0
      %v704 = vmax.f32 %v702, 0.0
      %v705 = vld [vmem:[%s306] sm:$0xff]
      %v706 = vld [vmem:[%s306 + $0x8] sm:$0xff]
      %v707 = vld [vmem:[%s4] sm:$0xf]
      %v708 = vld [vmem:[%s5] sm:$0x1]
      %v710 = vlaneseq
      %v711 = vshrl.u32 %v710, 7
      %v712 = vsub.s32 0, %v711
      %v713 = vrot.slane %v708, %v712
      %v716 = vsel %vm332, %v705, 0
      %v719 = vsel %vm332, %v706, 0
      %v722 = vsel %vm348, %v707, 0
      %724 = vmatprep.subr.mxu0 0.0
      %725 = vmatpush1.msra.mxu0 0.0
      %726 = vmatprep.subr.mxu0 0.0
      %727 = vmatpush1.msra.mxu0 0.0
      %728 = vmatprep.subr.mxu0 0.0
      %729 = vmatpush1.msra.mxu0 0.0
      %730 = vmatprep.subr.mxu0 0.0
      %731 = vmatpush1.msra.mxu0 0.0
      %732 = vmatprep.subr.mxu0 0.0
      %733 = vmatpush1.msra.mxu0 0.0
      %734 = vmatprep.subr.mxu0 0.0
      %735 = vmatpush1.msra.mxu0 0.0
      %736 = vmatprep.subr.mxu0 0.0
      %737 = vmatpush1.msra.mxu0 0.0
      %738 = vmatprep.subr.mxu0 0.0
      %739 = vmatpush1.msra.mxu0 0.0
      %740 = vmatprep.subr.mxu0 0.0
      %741 = vmatpush1.msra.mxu0 0.0
      %742 = vmatprep.subr.mxu0 0.0
      %743 = vmatpush1.msra.mxu0 0.0
      %744 = vmatprep.subr.mxu0 0.0
      %745 = vmatpush1.msra.mxu0 0.0
      %746 = vmatprep.subr.mxu0 0.0
      %747 = vmatpush1.msra.mxu0 0.0
      %748 = vmatprep.subr.mxu0 0.0
      %749 = vmatpush1.msra.mxu0 0.0
      %750 = vmatprep.subr.mxu0 0.0
      %751 = vmatpush1.msra.mxu0 0.0
      %752 = vmatprep.subr.mxu0 0.0
      %753 = vmatpush1.msra.mxu0 0.0
      %754 = vmatprep.subr.mxu0 0.0
      %755 = vmatpush1.msra.mxu0 %v722
      %756 = vmatprep.subr.mxu0 0.0
      %757 = vmatpush2.msra.mxu0 0.0
      %758 = vmatprep.subr.mxu0 0.0
      %759 = vmatpush2.msra.mxu0 0.0
      %760 = vmatprep.subr.mxu0 0.0
      %761 = vmatpush2.msra.mxu0 0.0
      %762 = vmatprep.subr.mxu0 0.0
      %763 = vmatpush2.msra.mxu0 0.0
      %764 = vmatprep.subr.mxu0 0.0
      %765 = vmatpush2.msra.mxu0 0.0
      %766 = vmatprep.subr.mxu0 0.0
      %767 = vmatpush2.msra.mxu0 0.0
      %768 = vmatprep.subr.mxu0 0.0
      %769 = vmatpush2.msra.mxu0 0.0
      %770 = vmatprep.subr.mxu0 0.0
      %771 = vmatpush2.msra.mxu0 0.0
      %772 = vmatprep.subr.mxu0 0.0
      %773 = vmatpush2.msra.mxu0 0.0
      %774 = vmatprep.subr.mxu0 0.0
      %775 = vmatpush2.msra.mxu0 0.0
      %776 = vmatprep.subr.mxu0 0.0
      %777 = vmatpush2.msra.mxu0 0.0
      %778 = vmatprep.subr.mxu0 0.0
      %779 = vmatpush2.msra.mxu0 0.0
      %780 = vmatprep.subr.mxu0 0.0
      %781 = vmatpush2.msra.mxu0 0.0
      %782 = vmatprep.subr.mxu0 0.0
      %783 = vmatpush2.msra.mxu0 0.0
      %784 = vmatprep.subr.mxu0 0.0
      %785 = vmatpush2.msra.mxu0 0.0
      %786 = vmatprep.subr.mxu0 0.0
      %787 = vmatpush2.msra.mxu0 0.0
      %788 = vmatprep.mubr.f32.mxu0 0.0
      %789 = vmatmul.mubr.f32.gmra.mxu0 %v716
      %v790 = vpop.f32.mrf.mxu0
      %v791 = vadd.f32 %v713, %v790
      %v792 = vpop.f32.mrf.mxu0
      %793 = vmatprep.mubr.f32.mxu0 0.0
      %794 = vmatmul.mubr.f32.gmra.mxu0 %v719
      %v795 = vpop.f32.mrf.mxu0
      %v796 = vadd.f32 %v713, %v795
      %v797 = vpop.f32.mrf.mxu0
      %798 = vdwg.mxu0
      %v799 = vadd.f32 %v703, %v791
      %v800 = vadd.f32 %v704, %v796
      %v801 = vmax.f32 %v799, 0.0
      %v802 = vmax.f32 %v800, 0.0
      %803 = vst.msk [vmem:[%s316] sm:$0xff] %vm522, %v801
      %804 = vst.msk [vmem:[%s316 + $0x8] sm:$0xff] %vm522, %v802
      %p805 = scmp.ne.s32.totalorder %s23, 0
      // Predicated region
      $region53: #{_lambda_.3} parent=47 // pred_check
        %p806 = pneg %p805
      $region54: #{_lambda_.3} parent=47 // pred_check_branch
        %808 = sbr.rel (%p806) target = $region56
      $region55: #{_lambda_.3} parent=47 // pred_region
        %v809 = vld [vmem:[#allocation2 + $0x10] sm:$0xff]
        %810 = vst.msk [vmem:[#allocation2] sm:$0xff] %vm332, %v809
        %v811 = vld [vmem:[#allocation3 + $0x10] sm:$0xff]
        %812 = vst.msk [vmem:[#allocation3] sm:$0xff] %vm522, %v811
      $region56: #{_lambda_.3} parent=47 // pred_fallthru
        _
      %s813 = smul.u32 2, %s23
      %p814 = scmp.lt.s32.totalorder %s22, 1
      %s815 = scalar_select %p814, %s22, 1
      %p816 = scmp.lt.s32.totalorder %s813, 1
      %s817 = scalar_select %p816, %s813, 1
      %s818 = smul.addr %s815, 2
      %s819 = sadd.s32 %s817, %s818
      %s820 = smul.addr %s819, 8
      %s821 = scalar_lea.vmem %s7, %s820
      // Predicated region
      $region57: #{_lambda_.3} parent=47 // pred_check
        %p822 = pneg %p204
      $region58: #{_lambda_.3} parent=47 // pred_check_branch
        %824 = sbr.rel (%p822) target = $region60
      $region59: #{_lambda_.3} parent=47 // pred_region
        %s825 = smul.u32 2, %s23
      $region60: #{_lambda_.3} parent=47 // pred_fallthru
        _
    $region48: #{_lambda_.3} parent=5 // pred_fallthru
      _
    %p826 = scmp.le.s32.totalorder 2, %s13
    // Predicated region
    $region61: #{_lambda_.3} parent=5 // pred_check
      %p827 = pneg %p826
    $region62: #{_lambda_.3} parent=5 // pred_check_branch
      %829 = sbr.rel (%p827) target = $region64
    $region63: #{_lambda_.3} parent=5 // pred_region
      %s830 = ssub.s32 %s13, 2
      // Predicated region
      $region65: #{_lambda_.3} parent=63 // pred_check
        %p831 = pneg %p210
      $region66: #{_lambda_.3} parent=63 // pred_check_branch
        %833 = sbr.rel (%p831) target = $region68
      $region67: #{_lambda_.3} parent=63 // pred_region
        %s834 = smul.u32 2, %s25
        %p835 = scmp.lt.s32.totalorder %s24, 1
        %s836 = scalar_select %p835, %s24, 1
        %p837 = scmp.lt.s32.totalorder %s834, 1
        %s838 = scalar_select %p837, %s834, 1
        %s839 = smul.addr %s836, 2
        %s840 = sadd.s32 %s838, %s839
        %s841 = smul.addr %s840, 8
        %s842 = scalar_lea.vmem %s7, %s841
      $region68: #{_lambda_.3} parent=63 // pred_fallthru
        _
    $region64: #{_lambda_.3} parent=5 // pred_fallthru
      _
  $region6: #{_lambda_.3} parent=0 // loop_footer
    %s17 = sadd.s32 1, %s13
  $region7: #{_lambda_.3} parent=0 // loop_footer_branch
    %12 = sbr.rel target = $region3
  $region8: #{_lambda_.3} parent=0 // loop_exit
    _

// kernel: _lambda_.4
$region0: #{_lambda_.4}
  #allocation0 [shape = 'u32[]', space=smem, size = 0x4, offset = 0x4, fixed_abs, tag = 'smem constant byte address 0x4 - core index']
  #allocation1 [shape = 'u32[144,128]{1,0:T(1,128)}', space=vmem, size = 0x12000, scoped, tag = 'internal scratch']
  #allocation2 [shape = 'f32[24,8]{1,0:T(8,128)}', space=vmem, size = 0x3000, scoped, tag = 'scratch operand']
  #allocation3 [shape = 'f32[24,8]{1,0:T(8,128)}', space=vmem, size = 0x3000, scoped, tag = 'scratch operand']
  %s0 = inlined_call_operand.vmem [shape: f32[4,8,8], index: 0, kind: input, shape index: {}]
  %s1 = inlined_call_operand.vmem [shape: f32[1,8], index: 1, kind: input, shape index: {}]
  %s2 = inlined_call_operand.vmem [shape: f32[4,8,8], index: 2, kind: input, shape index: {}]
  %s3 = inlined_call_operand.vmem [shape: f32[1,8], index: 3, kind: input, shape index: {}]
  %s4 = inlined_call_operand.vmem [shape: f32[2,16,8], index: 4, kind: input, shape index: {}]
  %s5 = inlined_call_operand.vmem [shape: f32[2,16,8], index: 5, kind: output, shape index: {}]
  %s6 = sld [smem:[#allocation0]]
  $region61: #{_lambda_.4} parent=0
    _
  %s8 = ssub.s32 1, %s6
  %s9 = scalar_select 0, %s8, %s6
  loop: start=0, step=1, limit=4
  $region2: #{_lambda_.4} parent=0 // loop_pre_header
    _
  $region3: #{_lambda_.4} parent=0 // loop_header
    %s11 = sphi 0, %s15
    %p12 = scmp.ge.s32.totalorder %s11, 4
    %s18 = sphi 0, %s30
    %s19 = sphi 0, %s26
    %s20 = sphi 0, %s18
    %s21 = sphi 0, %s19
    %s22 = sphi 0, %s20
    %s23 = sphi 0, %s21
    %s31 = sphi 0, %s31
    %s33 = sphi 0, %s31
    %s34 = sphi 0, %s33
    %s48 = sphi 0, %s34
    %s52 = sphi 0, %s52
    %s54 = sphi 0, %s52
    %s55 = sphi 0, %s54
    %s69 = sphi 0, %s55
    %s73 = sphi 0, %s73
    %s75 = sphi 0, %s73
    %s76 = sphi 0, %s75
    %s90 = sphi 0, %s76
    %s94 = sphi 0, %s94
    %s96 = sphi 0, %s94
    %s97 = sphi 0, %s96
    %s111 = sphi 0, %s97
    %s119 = sphi 0, %s121
    %s122 = sphi 0, %s119
    %s123 = sphi 0, %s122
    %s139 = sphi 0, %s123
    %s147 = sphi 0, %s149
    %s150 = sphi 0, %s147
    %s151 = sphi 0, %s150
    %s167 = sphi 0, %s151
  $region4: #{_lambda_.4} parent=0 // loop_header_branch
    %14 = sbr.rel (%p12) target = $region8
  $region5: #{_lambda_.4} parent=0 // loop_body
    %s16 = ssub.s32 %s11, 1
    %s17 = ssub.s32 %s11, 2
    %s24 = sadd.s32 1, %s19
    %p25 = scmp.ge.s32.totalorder %s24, 1
    %s26 = scalar_select %p25, 0, %s24
    %s27 = sadd.s32 1, %s18
    %s28 = scalar_select %p25, %s27, %s18
    %p29 = scmp.ge.s32.totalorder %s28, 2
    %s30 = scalar_select %p29, 0, %s28
    %s32 = sadd.s32 %s31, 1
    %p35 = scmp.eq.s32.totalorder %s11, 1
    %p36 = scmp.ne.s32.totalorder %s31, %s33
    %p37 = scmp.eq.s32.totalorder %s11, 0
    %p38 = por %p36, %p37
    %p39 = scmp.ne.s32.totalorder %s31, %s33
    %p40 = scmp.eq.s32.totalorder %s16, 1
    %p41 = por %p39, %p40
    %p42 = scmp.ne.s32.totalorder %s33, %s34
    %p43 = scmp.eq.s32.totalorder %s16, 0
    %p44 = por %p42, %p43
    %p45 = scmp.ne.s32.totalorder %s33, %s34
    %p46 = scmp.eq.s32.totalorder %s17, 1
    %p47 = por %p45, %p46
    %p49 = scmp.ne.s32.totalorder %s34, %s48
    %p50 = scmp.eq.s32.totalorder %s17, 0
    %p51 = por %p49, %p50
    %s53 = sadd.s32 %s52, 1
    %p56 = scmp.eq.s32.totalorder %s11, 1
    %p57 = scmp.ne.s32.totalorder %s52, %s54
    %p58 = scmp.eq.s32.totalorder %s11, 0
    %p59 = por %p57, %p58
    %p60 = scmp.ne.s32.totalorder %s52, %s54
    %p61 = scmp.eq.s32.totalorder %s16, 1
    %p62 = por %p60, %p61
    %p63 = scmp.ne.s32.totalorder %s54, %s55
    %p64 = scmp.eq.s32.totalorder %s16, 0
    %p65 = por %p63, %p64
    %p66 = scmp.ne.s32.totalorder %s54, %s55
    %p67 = scmp.eq.s32.totalorder %s17, 1
    %p68 = por %p66, %p67
    %p70 = scmp.ne.s32.totalorder %s55, %s69
    %p71 = scmp.eq.s32.totalorder %s17, 0
    %p72 = por %p70, %p71
    %s74 = sadd.s32 %s73, 1
    %p77 = scmp.eq.s32.totalorder %s11, 1
    %p78 = scmp.ne.s32.totalorder %s73, %s75
    %p79 = scmp.eq.s32.totalorder %s11, 0
    %p80 = por %p78, %p79
    %p81 = scmp.ne.s32.totalorder %s73, %s75
    %p82 = scmp.eq.s32.totalorder %s16, 1
    %p83 = por %p81, %p82
    %p84 = scmp.ne.s32.totalorder %s75, %s76
    %p85 = scmp.eq.s32.totalorder %s16, 0
    %p86 = por %p84, %p85
    %p87 = scmp.ne.s32.totalorder %s75, %s76
    %p88 = scmp.eq.s32.totalorder %s17, 1
    %p89 = por %p87, %p88
    %p91 = scmp.ne.s32.totalorder %s76, %s90
    %p92 = scmp.eq.s32.totalorder %s17, 0
    %p93 = por %p91, %p92
    %s95 = sadd.s32 %s94, 1
    %p98 = scmp.eq.s32.totalorder %s11, 1
    %p99 = scmp.ne.s32.totalorder %s94, %s96
    %p100 = scmp.eq.s32.totalorder %s11, 0
    %p101 = por %p99, %p100
    %p102 = scmp.ne.s32.totalorder %s94, %s96
    %p103 = scmp.eq.s32.totalorder %s16, 1
    %p104 = por %p102, %p103
    %p105 = scmp.ne.s32.totalorder %s96, %s97
    %p106 = scmp.eq.s32.totalorder %s16, 0
    %p107 = por %p105, %p106
    %p108 = scmp.ne.s32.totalorder %s96, %s97
    %p109 = scmp.eq.s32.totalorder %s17, 1
    %p110 = por %p108, %p109
    %p112 = scmp.ne.s32.totalorder %s97, %s111
    %p113 = scmp.eq.s32.totalorder %s17, 0
    %p114 = por %p112, %p113
    %s115 = ssub.s32 %s18, %s30
    %s116 = ssub.s32 %s19, %s26
    %s117 = sor.u32 %s115, %s116
    %p118 = scmp.eq.s32.totalorder %s117, 0
    %s120 = sadd.s32 %s119, 1
    %s121 = scalar_select %p118, %s119, %s120
    %p124 = pneg %p118
    %p125 = scmp.eq.s32.totalorder %s11, 1
    %p126 = por %p124, %p125
    %p127 = scmp.ne.s32.totalorder %s119, %s122
    %p128 = scmp.eq.s32.totalorder %s11, 0
    %p129 = por %p127, %p128
    %p130 = scmp.ne.s32.totalorder %s119, %s122
    %p131 = scmp.eq.s32.totalorder %s16, 1
    %p132 = por %p130, %p131
    %p133 = scmp.ne.s32.totalorder %s122, %s123
    %p134 = scmp.eq.s32.totalorder %s16, 0
    %p135 = por %p133, %p134
    %p136 = scmp.ne.s32.totalorder %s122, %s123
    %p137 = scmp.eq.s32.totalorder %s17, 1
    %p138 = por %p136, %p137
    %p140 = scmp.ne.s32.totalorder %s123, %s139
    %p141 = scmp.eq.s32.totalorder %s17, 0
    %p142 = por %p140, %p141
    %s143 = ssub.s32 %s18, %s30
    %s144 = ssub.s32 %s19, %s26
    %s145 = sor.u32 %s143, %s144
    %p146 = scmp.eq.s32.totalorder %s145, 0
    %s148 = sadd.s32 %s147, 1
    %s149 = scalar_select %p146, %s147, %s148
    %p152 = pneg %p146
    %p153 = scmp.eq.s32.totalorder %s11, 1
    %p154 = por %p152, %p153
    %p155 = scmp.ne.s32.totalorder %s147, %s150
    %p156 = scmp.eq.s32.totalorder %s11, 0
    %p157 = por %p155, %p156
    %p158 = scmp.ne.s32.totalorder %s147, %s150
    %p159 = scmp.eq.s32.totalorder %s16, 1
    %p160 = por %p158, %p159
    %p161 = scmp.ne.s32.totalorder %s150, %s151
    %p162 = scmp.eq.s32.totalorder %s16, 0
    %p163 = por %p161, %p162
    %p164 = scmp.ne.s32.totalorder %s150, %s151
    %p165 = scmp.eq.s32.totalorder %s17, 1
    %p166 = por %p164, %p165
    %p168 = scmp.ne.s32.totalorder %s151, %s167
    %p169 = scmp.eq.s32.totalorder %s17, 0
    %p170 = por %p168, %p169
    %p171 = scmp.le.s32.totalorder 1, %s11
    %p172 = scmp.lt.s32.totalorder %s11, 3
    %p173 = pnand %p171, %p172
    %p174 = pneg %p173
    // Predicated region
    $region9: #{_lambda_.4} parent=5 // pred_check
      _
    $region10: #{_lambda_.4} parent=5 // pred_check_branch
      %176 = sbr.rel (%p173) target = $region12
    $region11: #{_lambda_.4} parent=5 // pred_region
      %s177 = ssub.s32 %s11, 1
      // Predicated region
      $region13: #{_lambda_.4} parent=11 // pred_check
        %p178 = pneg %p44
      $region14: #{_lambda_.4} parent=11 // pred_check_branch
        %180 = sbr.rel (%p178) target = $region16
      $region15: #{_lambda_.4} parent=11 // pred_region
        _
      $region16: #{_lambda_.4} parent=11 // pred_fallthru
        _
      // Predicated region
      $region17: #{_lambda_.4} parent=11 // pred_check
        %p181 = pneg %p65
      $region18: #{_lambda_.4} parent=11 // pred_check_branch
        %183 = sbr.rel (%p181) target = $region20
      $region19: #{_lambda_.4} parent=11 // pred_region
        _
      $region20: #{_lambda_.4} parent=11 // pred_fallthru
        _
      // Predicated region
      $region21: #{_lambda_.4} parent=11 // pred_check
        %p184 = pneg %p86
      $region22: #{_lambda_.4} parent=11 // pred_check_branch
        %186 = sbr.rel (%p184) target = $region24
      $region23: #{_lambda_.4} parent=11 // pred_region
        _
      $region24: #{_lambda_.4} parent=11 // pred_fallthru
        _
      // Predicated region
      $region25: #{_lambda_.4} parent=11 // pred_check
        %p187 = pneg %p107
      $region26: #{_lambda_.4} parent=11 // pred_check_branch
        %189 = sbr.rel (%p187) target = $region28
      $region27: #{_lambda_.4} parent=11 // pred_region
        _
      $region28: #{_lambda_.4} parent=11 // pred_fallthru
        _
    $region12: #{_lambda_.4} parent=5 // pred_fallthru
      _
    %p190 = scmp.lt.s32.totalorder %s11, 2
    // Predicated region
    $region29: #{_lambda_.4} parent=5 // pred_check
      %p191 = pneg %p190
    $region30: #{_lambda_.4} parent=5 // pred_check_branch
      %193 = sbr.rel (%p191) target = $region32
    $region31: #{_lambda_.4} parent=5 // pred_region
      // Predicated region
      $region33: #{_lambda_.4} parent=31 // pred_check
        %p194 = pneg %p129
      $region34: #{_lambda_.4} parent=31 // pred_check_branch
        %196 = sbr.rel (%p194) target = $region36
      $region35: #{_lambda_.4} parent=31 // pred_region
        %s197 = smul.u32 2, %s19
        %p198 = scmp.lt.s32.totalorder %s18, 1
        %s199 = scalar_select %p198, %s18, 1
        %p200 = scmp.lt.s32.totalorder %s197, 1
        %s201 = scalar_select %p200, %s197, 1
        %s202 = smul.addr %s199, 2
        %s203 = sadd.s32 %s201, %s202
        %s204 = smul.addr %s203, 8
        %s205 = scalar_lea.vmem %s4, %s204
        %s206 = smul.u32 2, %s19
      $region36: #{_lambda_.4} parent=31 // pred_fallthru
        _
    $region32: #{_lambda_.4} parent=5 // pred_fallthru
      _
    %p207 = scmp.le.s32.totalorder 1, %s11
    %p208 = scmp.lt.s32.totalorder %s11, 3
    %p209 = pnand %p207, %p208
    %p210 = pneg %p209
    // Predicated region
    $region37: #{_lambda_.4} parent=5 // pred_check
      _
    $region38: #{_lambda_.4} parent=5 // pred_check_branch
      %212 = sbr.rel (%p209) target = $region40
    $region39: #{_lambda_.4} parent=5 // pred_region
      %s213 = ssub.s32 %s11, 1
      %p214 = pneg %p44
      %p215 = pneg %p41
      %p216 = pneg %p65
      %p217 = pneg %p62
      %p218 = pneg %p86
      %p219 = pneg %p83
      %p220 = pneg %p107
      %p221 = pneg %p104
      %s222 = smul.u32 2, %s21
      %p223 = scmp.lt.s32.totalorder %s20, 1
      %s224 = scalar_select %p223, %s20, 1
      %p225 = scmp.lt.s32.totalorder %s222, 1
      %s226 = scalar_select %p225, %s222, 1
      %s227 = smul.addr %s224, 2
      %s228 = sadd.s32 %s226, %s227
      %s229 = smul.addr %s228, 8
      %s230 = scalar_lea.vmem %s4, %s229
      %p231 = pneg %p135
      %p232 = pneg %p132
      %p233 = pneg %p163
      %p234 = pneg %p160
      %s235 = smul.u32 2, %s21
      %p236 = scmp.lt.s32.totalorder %s20, 1
      %s237 = scalar_select %p236, %s20, 1
      %p238 = scmp.lt.s32.totalorder %s235, 1
      %s239 = scalar_select %p238, %s235, 1
      %s240 = smul.addr %s237, 2
      %s241 = sadd.s32 %s239, %s240
      %s242 = smul.addr %s241, 8
      %s243 = scalar_lea.vmem %s5, %s242
      %s244 = smul.u32 2, %s21
      %p245 = scmp.lt.s32.totalorder %s20, 1
      %s246 = scalar_select %p245, %s20, 1
      %p247 = scmp.lt.s32.totalorder %s244, 1
      %s248 = scalar_select %p247, %s244, 1
      %s249 = smul.addr %s246, 2
      %s250 = sadd.s32 %s248, %s249
      %s251 = smul.addr %s250, 8
      %s252 = scalar_lea.vmem %s4, %s251
      %s253 = smul.u32 2, %s21
      %s254 = smul.u32 2, %s21
      %p255 = scmp.lt.s32.totalorder %s20, 1
      %s256 = scalar_select %p255, %s20, 1
      %p257 = scmp.lt.s32.totalorder %s254, 1
      %s258 = scalar_select %p257, %s254, 1
      %s259 = smul.addr %s256, 2
      %s260 = sadd.s32 %s258, %s259
      %s261 = smul.addr %s260, 8
      %s262 = scalar_lea.vmem %s5, %s261
      %s263 = smul.u32 2, %s21
      %p264 = scmp.eq.s32.totalorder %s21, 0
      // Predicated region
      $region41: #{_lambda_.4} parent=39 // pred_check
        %p265 = pneg %p264
      $region42: #{_lambda_.4} parent=39 // pred_check_branch
        %267 = sbr.rel (%p265) target = $region44
      $region43: #{_lambda_.4} parent=39 // pred_region
        %vm268 = vcmask 64512
        %269 = vst.msk [vmem:[#allocation2] sm:$0xff] %vm268, 0.0
        %270 = vst.msk [vmem:[#allocation2 + $0x8] sm:$0xff] %vm268, 0.0
        %271 = vst.msk [vmem:[#allocation2 + $0x10] sm:$0xff] %vm268, 0.0
        %272 = vst.msk [vmem:[#allocation3] sm:$0xff] %vm268, 0.0
        %273 = vst.msk [vmem:[#allocation3 + $0x8] sm:$0xff] %vm268, 0.0
        %274 = vst.msk [vmem:[#allocation3 + $0x10] sm:$0xff] %vm268, 0.0
      $region44: #{_lambda_.4} parent=39 // pred_fallthru
        _
      %v275 = vld [vmem:[%s252] sm:$0xff]
      %v276 = vld [vmem:[%s252 + $0x8] sm:$0xff]
      %vm277 = vcmask 64512
      %278 = vst.msk [vmem:[#allocation2 + $0x8] sm:$0xff] %vm277, %v275
      %279 = vst.msk [vmem:[#allocation2 + $0x10] sm:$0xff] %vm277, %v276
      %v280 = vld [vmem:[#allocation2 + $0x5] sm:$0xff]
      %v281 = vld [vmem:[#allocation2 + $0xd] sm:$0xff]
      %v282 = vld [vmem:[%s0] sm:$0xff]
      %v283 = vld [vmem:[#allocation2 + $0x6] sm:$0xff]
      %v284 = vld [vmem:[#allocation2 + $0xe] sm:$0xff]
      %s285 = scalar_lea.vmem %s0, 8
      %v286 = vld [vmem:[%s285] sm:$0xff]
      %v288 = vsel %vm277, %v283, 0
      %v291 = vsel %vm277, %v284, 0
      %293 = vmatprep.subr.mxu0 0.0
      %294 = vmatpush1.msra.mxu0 0.0
      %295 = vmatprep.subr.mxu0 0.0
      %296 = vmatpush1.msra.mxu0 0.0
      %297 = vmatprep.subr.mxu0 0.0
      %298 = vmatpush1.msra.mxu0 0.0
      %299 = vmatprep.subr.mxu0 0.0
      %300 = vmatpush1.msra.mxu0 0.0
      %301 = vmatprep.subr.mxu0 0.0
      %302 = vmatpush1.msra.mxu0 0.0
      %303 = vmatprep.subr.mxu0 0.0
      %304 = vmatpush1.msra.mxu0 0.0
      %305 = vmatprep.subr.mxu0 0.0
      %306 = vmatpush1.msra.mxu0 0.0
      %307 = vmatprep.subr.mxu0 0.0
      %308 = vmatpush1.msra.mxu0 0.0
      %309 = vmatprep.subr.mxu0 0.0
      %310 = vmatpush1.msra.mxu0 0.0
      %311 = vmatprep.subr.mxu0 0.0
      %312 = vmatpush1.msra.mxu0 0.0
      %313 = vmatprep.subr.mxu0 0.0
      %314 = vmatpush1.msra.mxu0 0.0
      %315 = vmatprep.subr.mxu0 0.0
      %316 = vmatpush1.msra.mxu0 0.0
      %317 = vmatprep.subr.mxu0 0.0
      %318 = vmatpush1.msra.mxu0 0.0
      %319 = vmatprep.subr.mxu0 0.0
      %320 = vmatpush1.msra.mxu0 0.0
      %321 = vmatprep.subr.mxu0 0.0
      %322 = vmatpush1.msra.mxu0 0.0
      %323 = vmatprep.subr.mxu0 0.0
      %324 = vmatpush1.msra.mxu0 %v286
      %325 = vmatprep.subr.mxu0 0.0
      %326 = vmatpush2.msra.mxu0 0.0
      %327 = vmatprep.subr.mxu0 0.0
      %328 = vmatpush2.msra.mxu0 0.0
      %329 = vmatprep.subr.mxu0 0.0
      %330 = vmatpush2.msra.mxu0 0.0
      %331 = vmatprep.subr.mxu0 0.0
      %332 = vmatpush2.msra.mxu0 0.0
      %333 = vmatprep.subr.mxu0 0.0
      %334 = vmatpush2.msra.mxu0 0.0
      %335 = vmatprep.subr.mxu0 0.0
      %336 = vmatpush2.msra.mxu0 0.0
      %337 = vmatprep.subr.mxu0 0.0
      %338 = vmatpush2.msra.mxu0 0.0
      %339 = vmatprep.subr.mxu0 0.0
      %340 = vmatpush2.msra.mxu0 0.0
      %341 = vmatprep.subr.mxu0 0.0
      %342 = vmatpush2.msra.mxu0 0.0
      %343 = vmatprep.subr.mxu0 0.0
      %344 = vmatpush2.msra.mxu0 0.0
      %345 = vmatprep.subr.mxu0 0.0
      %346 = vmatpush2.msra.mxu0 0.0
      %347 = vmatprep.subr.mxu0 0.0
      %348 = vmatpush2.msra.mxu0 0.0
      %349 = vmatprep.subr.mxu0 0.0
      %350 = vmatpush2.msra.mxu0 0.0
      %351 = vmatprep.subr.mxu0 0.0
      %352 = vmatpush2.msra.mxu0 0.0
      %353 = vmatprep.subr.mxu0 0.0
      %354 = vmatpush2.msra.mxu0 0.0
      %355 = vmatprep.subr.mxu0 0.0
      %356 = vmatpush2.msra.mxu0 0.0
      %357 = vmatprep.mubr.f32.mxu0 0.0
      %358 = vmatmul.mubr.f32.gmra.mxu0 %v288
      %v359 = vpop.f32.mrf.mxu0
      %v360 = vadd.f32 0.0, %v359
      %v361 = vpop.f32.mrf.mxu0
      %362 = vmatprep.mubr.f32.mxu0 0.0
      %363 = vmatmul.mubr.f32.gmra.mxu0 %v291
      %v364 = vpop.f32.mrf.mxu0
      %v365 = vadd.f32 0.0, %v364
      %v366 = vpop.f32.mrf.mxu0
      %367 = vdwg.mxu0
      %v369 = vsel %vm277, %v280, 0
      %v372 = vsel %vm277, %v281, 0
      %374 = vmatprep.subr.mxu0 0.0
      %375 = vmatpush1.msra.mxu0 0.0
      %376 = vmatprep.subr.mxu0 0.0
      %377 = vmatpush1.msra.mxu0 0.0
      %378 = vmatprep.subr.mxu0 0.0
      %379 = vmatpush1.msra.mxu0 0.0
      %380 = vmatprep.subr.mxu0 0.0
      %381 = vmatpush1.msra.mxu0 0.0
      %382 = vmatprep.subr.mxu0 0.0
      %383 = vmatpush1.msra.mxu0 0.0
      %384 = vmatprep.subr.mxu0 0.0
      %385 = vmatpush1.msra.mxu0 0.0
      %386 = vmatprep.subr.mxu0 0.0
      %387 = vmatpush1.msra.mxu0 0.0
      %388 = vmatprep.subr.mxu0 0.0
      %389 = vmatpush1.msra.mxu0 0.0
      %390 = vmatprep.subr.mxu0 0.0
      %391 = vmatpush1.msra.mxu0 0.0
      %392 = vmatprep.subr.mxu0 0.0
      %393 = vmatpush1.msra.mxu0 0.0
      %394 = vmatprep.subr.mxu0 0.0
      %395 = vmatpush1.msra.mxu0 0.0
      %396 = vmatprep.subr.mxu0 0.0
      %397 = vmatpush1.msra.mxu0 0.0
      %398 = vmatprep.subr.mxu0 0.0
      %399 = vmatpush1.msra.mxu0 0.0
      %400 = vmatprep.subr.mxu0 0.0
      %401 = vmatpush1.msra.mxu0 0.0
      %402 = vmatprep.subr.mxu0 0.0
      %403 = vmatpush1.msra.mxu0 0.0
      %404 = vmatprep.subr.mxu0 0.0
      %405 = vmatpush1.msra.mxu0 %v282
      %406 = vmatprep.subr.mxu0 0.0
      %407 = vmatpush2.msra.mxu0 0.0
      %408 = vmatprep.subr.mxu0 0.0
      %409 = vmatpush2.msra.mxu0 0.0
      %410 = vmatprep.subr.mxu0 0.0
      %411 = vmatpush2.msra.mxu0 0.0
      %412 = vmatprep.subr.mxu0 0.0
      %413 = vmatpush2.msra.mxu0 0.0
      %414 = vmatprep.subr.mxu0 0.0
      %415 = vmatpush2.msra.mxu0 0.0
      %416 = vmatprep.subr.mxu0 0.0
      %417 = vmatpush2.msra.mxu0 0.0
      %418 = vmatprep.subr.mxu0 0.0
      %419 = vmatpush2.msra.mxu0 0.0
      %420 = vmatprep.subr.mxu0 0.0
      %421 = vmatpush2.msra.mxu0 0.0
      %422 = vmatprep.subr.mxu0 0.0
      %423 = vmatpush2.msra.mxu0 0.0
      %424 = vmatprep.subr.mxu0 0.0
      %425 = vmatpush2.msra.mxu0 0.0
      %426 = vmatprep.subr.mxu0 0.0
      %427 = vmatpush2.msra.mxu0 0.0
      %428 = vmatprep.subr.mxu0 0.0
      %429 = vmatpush2.msra.mxu0 0.0
      %430 = vmatprep.subr.mxu0 0.0
      %431 = vmatpush2.msra.mxu0 0.0
      %432 = vmatprep.subr.mxu0 0.0
      %433 = vmatpush2.msra.mxu0 0.0
      %434 = vmatprep.subr.mxu0 0.0
      %435 = vmatpush2.msra.mxu0 0.0
      %436 = vmatprep.subr.mxu0 0.0
      %437 = vmatpush2.msra.mxu0 0.0
      %438 = vmatprep.mubr.f32.mxu0 0.0
      %439 = vmatmul.mubr.f32.gmra.mxu0 %v369
      %v440 = vpop.f32.mrf.mxu0
      %v441 = vadd.f32 %v360, %v440
      %v442 = vpop.f32.mrf.mxu0
      %443 = vmatprep.mubr.f32.mxu0 0.0
      %444 = vmatmul.mubr.f32.gmra.mxu0 %v372
      %v445 = vpop.f32.mrf.mxu0
      %v446 = vadd.f32 %v365, %v445
      %v447 = vpop.f32.mrf.mxu0
      %448 = vdwg.mxu0
      %v449 = vld [vmem:[#allocation2 + $0x7] sm:$0xff]
      %v450 = vld [vmem:[#allocation2 + $0xf] sm:$0xff]
      %s451 = scalar_lea.vmem %s0, 16
      %v452 = vld [vmem:[%s451] sm:$0xff]
      %v454 = vsel %vm277, %v449, 0
      %v457 = vsel %vm277, %v450, 0
      %459 = vmatprep.subr.mxu0 0.0
      %460 = vmatpush1.msra.mxu0 0.0
      %461 = vmatprep.subr.mxu0 0.0
      %462 = vmatpush1.msra.mxu0 0.0
      %463 = vmatprep.subr.mxu0 0.0
      %464 = vmatpush1.msra.mxu0 0.0
      %465 = vmatprep.subr.mxu0 0.0
      %466 = vmatpush1.msra.mxu0 0.0
      %467 = vmatprep.subr.mxu0 0.0
      %468 = vmatpush1.msra.mxu0 0.0
      %469 = vmatprep.subr.mxu0 0.0
      %470 = vmatpush1.msra.mxu0 0.0
      %471 = vmatprep.subr.mxu0 0.0
      %472 = vmatpush1.msra.mxu0 0.0
      %473 = vmatprep.subr.mxu0 0.0
      %474 = vmatpush1.msra.mxu0 0.0
      %475 = vmatprep.subr.mxu0 0.0
      %476 = vmatpush1.msra.mxu0 0.0
      %477 = vmatprep.subr.mxu0 0.0
      %478 = vmatpush1.msra.mxu0 0.0
      %479 = vmatprep.subr.mxu0 0.0
      %480 = vmatpush1.msra.mxu0 0.0
      %481 = vmatprep.subr.mxu0 0.0
      %482 = vmatpush1.msra.mxu0 0.0
      %483 = vmatprep.subr.mxu0 0.0
      %484 = vmatpush1.msra.mxu0 0.0
      %485 = vmatprep.subr.mxu0 0.0
      %486 = vmatpush1.msra.mxu0 0.0
      %487 = vmatprep.subr.mxu0 0.0
      %488 = vmatpush1.msra.mxu0 0.0
      %489 = vmatprep.subr.mxu0 0.0
      %490 = vmatpush1.msra.mxu0 %v452
      %491 = vmatprep.subr.mxu0 0.0
      %492 = vmatpush2.msra.mxu0 0.0
      %493 = vmatprep.subr.mxu0 0.0
      %494 = vmatpush2.msra.mxu0 0.0
      %495 = vmatprep.subr.mxu0 0.0
      %496 = vmatpush2.msra.mxu0 0.0
      %497 = vmatprep.subr.mxu0 0.0
      %498 = vmatpush2.msra.mxu0 0.0
      %499 = vmatprep.subr.mxu0 0.0
      %500 = vmatpush2.msra.mxu0 0.0
      %501 = vmatprep.subr.mxu0 0.0
      %502 = vmatpush2.msra.mxu0 0.0
      %503 = vmatprep.subr.mxu0 0.0
      %504 = vmatpush2.msra.mxu0 0.0
      %505 = vmatprep.subr.mxu0 0.0
      %506 = vmatpush2.msra.mxu0 0.0
      %507 = vmatprep.subr.mxu0 0.0
      %508 = vmatpush2.msra.mxu0 0.0
      %509 = vmatprep.subr.mxu0 0.0
      %510 = vmatpush2.msra.mxu0 0.0
      %511 = vmatprep.subr.mxu0 0.0
      %512 = vmatpush2.msra.mxu0 0.0
      %513 = vmatprep.subr.mxu0 0.0
      %514 = vmatpush2.msra.mxu0 0.0
      %515 = vmatprep.subr.mxu0 0.0
      %516 = vmatpush2.msra.mxu0 0.0
      %517 = vmatprep.subr.mxu0 0.0
      %518 = vmatpush2.msra.mxu0 0.0
      %519 = vmatprep.subr.mxu0 0.0
      %520 = vmatpush2.msra.mxu0 0.0
      %521 = vmatprep.subr.mxu0 0.0
      %522 = vmatpush2.msra.mxu0 0.0
      %523 = vmatprep.mubr.f32.mxu0 0.0
      %524 = vmatmul.mubr.f32.gmra.mxu0 %v454
      %v525 = vpop.f32.mrf.mxu0
      %v526 = vadd.f32 0.0, %v525
      %v527 = vpop.f32.mrf.mxu0
      %528 = vmatprep.mubr.f32.mxu0 0.0
      %529 = vmatmul.mubr.f32.gmra.mxu0 %v457
      %v530 = vpop.f32.mrf.mxu0
      %v531 = vadd.f32 0.0, %v530
      %v532 = vpop.f32.mrf.mxu0
      %533 = vdwg.mxu0
      %v534 = vadd.f32 %v441, %v526
      %v535 = vadd.f32 %v446, %v531
      %v536 = vld [vmem:[#allocation2 + $0x8] sm:$0xff]
      %v537 = vld [vmem:[#allocation2 + $0x10] sm:$0xff]
      %s538 = scalar_lea.vmem %s0, 24
      %v539 = vld [vmem:[%s538] sm:$0xff]
      %v541 = vsel %vm277, %v536, 0
      %v544 = vsel %vm277, %v537, 0
      %546 = vmatprep.subr.mxu0 0.0
      %547 = vmatpush1.msra.mxu0 0.0
      %548 = vmatprep.subr.mxu0 0.0
      %549 = vmatpush1.msra.mxu0 0.0
      %550 = vmatprep.subr.mxu0 0.0
      %551 = vmatpush1.msra.mxu0 0.0
      %552 = vmatprep.subr.mxu0 0.0
      %553 = vmatpush1.msra.mxu0 0.0
      %554 = vmatprep.subr.mxu0 0.0
      %555 = vmatpush1.msra.mxu0 0.0
      %556 = vmatprep.subr.mxu0 0.0
      %557 = vmatpush1.msra.mxu0 0.0
      %558 = vmatprep.subr.mxu0 0.0
      %559 = vmatpush1.msra.mxu0 0.0
      %560 = vmatprep.subr.mxu0 0.0
      %561 = vmatpush1.msra.mxu0 0.0
      %562 = vmatprep.subr.mxu0 0.0
      %563 = vmatpush1.msra.mxu0 0.0
      %564 = vmatprep.subr.mxu0 0.0
      %565 = vmatpush1.msra.mxu0 0.0
      %566 = vmatprep.subr.mxu0 0.0
      %567 = vmatpush1.msra.mxu0 0.0
      %568 = vmatprep.subr.mxu0 0.0
      %569 = vmatpush1.msra.mxu0 0.0
      %570 = vmatprep.subr.mxu0 0.0
      %571 = vmatpush1.msra.mxu0 0.0
      %572 = vmatprep.subr.mxu0 0.0
      %573 = vmatpush1.msra.mxu0 0.0
      %574 = vmatprep.subr.mxu0 0.0
      %575 = vmatpush1.msra.mxu0 0.0
      %576 = vmatprep.subr.mxu0 0.0
      %577 = vmatpush1.msra.mxu0 %v539
      %578 = vmatprep.subr.mxu0 0.0
      %579 = vmatpush2.msra.mxu0 0.0
      %580 = vmatprep.subr.mxu0 0.0
      %581 = vmatpush2.msra.mxu0 0.0
      %582 = vmatprep.subr.mxu0 0.0
      %583 = vmatpush2.msra.mxu0 0.0
      %584 = vmatprep.subr.mxu0 0.0
      %585 = vmatpush2.msra.mxu0 0.0
      %586 = vmatprep.subr.mxu0 0.0
      %587 = vmatpush2.msra.mxu0 0.0
      %588 = vmatprep.subr.mxu0 0.0
      %589 = vmatpush2.msra.mxu0 0.0
      %590 = vmatprep.subr.mxu0 0.0
      %591 = vmatpush2.msra.mxu0 0.0
      %592 = vmatprep.subr.mxu0 0.0
      %593 = vmatpush2.msra.mxu0 0.0
      %594 = vmatprep.subr.mxu0 0.0
      %595 = vmatpush2.msra.mxu0 0.0
      %596 = vmatprep.subr.mxu0 0.0
      %597 = vmatpush2.msra.mxu0 0.0
      %598 = vmatprep.subr.mxu0 0.0
      %599 = vmatpush2.msra.mxu0 0.0
      %600 = vmatprep.subr.mxu0 0.0
      %601 = vmatpush2.msra.mxu0 0.0
      %602 = vmatprep.subr.mxu0 0.0
      %603 = vmatpush2.msra.mxu0 0.0
      %604 = vmatprep.subr.mxu0 0.0
      %605 = vmatpush2.msra.mxu0 0.0
      %606 = vmatprep.subr.mxu0 0.0
      %607 = vmatpush2.msra.mxu0 0.0
      %608 = vmatprep.subr.mxu0 0.0
      %609 = vmatpush2.msra.mxu0 0.0
      %610 = vmatprep.mubr.f32.mxu0 0.0
      %611 = vmatmul.mubr.f32.gmra.mxu0 %v541
      %v612 = vpop.f32.mrf.mxu0
      %v613 = vadd.f32 0.0, %v612
      %v614 = vpop.f32.mrf.mxu0
      %615 = vmatprep.mubr.f32.mxu0 0.0
      %616 = vmatmul.mubr.f32.gmra.mxu0 %v544
      %v617 = vpop.f32.mrf.mxu0
      %v618 = vadd.f32 0.0, %v617
      %v619 = vpop.f32.mrf.mxu0
      %620 = vdwg.mxu0
      %v621 = vadd.f32 %v534, %v613
      %v622 = vadd.f32 %v535, %v618
      %v623 = vld [vmem:[%s1] sm:$0x1]
      %v625 = vlaneseq
      %v626 = vshrl.u32 %v625, 7
      %v627 = vsub.s32 0, %v626
      %v628 = vrot.slane %v623, %v627
      %v630 = vadd.f32 %v621, %v628
      %v631 = vadd.f32 %v622, %v628
      %v632 = vmax.f32 %v630, 0.0
      %v633 = vmax.f32 %v631, 0.0
      %634 = vst.msk [vmem:[#allocation3 + $0x8] sm:$0xff] %vm277, %v632
      %635 = vst.msk [vmem:[#allocation3 + $0x10] sm:$0xff] %vm277, %v633
      %v636 = vld [vmem:[#allocation3 + $0x5] sm:$0xff]
      %v637 = vld [vmem:[#allocation3 + $0xd] sm:$0xff]
      %v638 = vld [vmem:[%s2] sm:$0xff]
      %v639 = vld [vmem:[#allocation3 + $0x6] sm:$0xff]
      %v640 = vld [vmem:[#allocation3 + $0xe] sm:$0xff]
      %s641 = scalar_lea.vmem %s2, 8
      %v642 = vld [vmem:[%s641] sm:$0xff]
      %v644 = vsel %vm277, %v639, 0
      %v647 = vsel %vm277, %v640, 0
      %649 = vmatprep.subr.mxu0 0.0
      %650 = vmatpush1.msra.mxu0 0.0
      %651 = vmatprep.subr.mxu0 0.0
      %652 = vmatpush1.msra.mxu0 0.0
      %653 = vmatprep.subr.mxu0 0.0
      %654 = vmatpush1.msra.mxu0 0.0
      %655 = vmatprep.subr.mxu0 0.0
      %656 = vmatpush1.msra.mxu0 0.0
      %657 = vmatprep.subr.mxu0 0.0
      %658 = vmatpush1.msra.mxu0 0.0
      %659 = vmatprep.subr.mxu0 0.0
      %660 = vmatpush1.msra.mxu0 0.0
      %661 = vmatprep.subr.mxu0 0.0
      %662 = vmatpush1.msra.mxu0 0.0
      %663 = vmatprep.subr.mxu0 0.0
      %664 = vmatpush1.msra.mxu0 0.0
      %665 = vmatprep.subr.mxu0 0.0
      %666 = vmatpush1.msra.mxu0 0.0
      %667 = vmatprep.subr.mxu0 0.0
      %668 = vmatpush1.msra.mxu0 0.0
      %669 = vmatprep.subr.mxu0 0.0
      %670 = vmatpush1.msra.mxu0 0.0
      %671 = vmatprep.subr.mxu0 0.0
      %672 = vmatpush1.msra.mxu0 0.0
      %673 = vmatprep.subr.mxu0 0.0
      %674 = vmatpush1.msra.mxu0 0.0
      %675 = vmatprep.subr.mxu0 0.0
      %676 = vmatpush1.msra.mxu0 0.0
      %677 = vmatprep.subr.mxu0 0.0
      %678 = vmatpush1.msra.mxu0 0.0
      %679 = vmatprep.subr.mxu0 0.0
      %680 = vmatpush1.msra.mxu0 %v642
      %681 = vmatprep.subr.mxu0 0.0
      %682 = vmatpush2.msra.mxu0 0.0
      %683 = vmatprep.subr.mxu0 0.0
      %684 = vmatpush2.msra.mxu0 0.0
      %685 = vmatprep.subr.mxu0 0.0
      %686 = vmatpush2.msra.mxu0 0.0
      %687 = vmatprep.subr.mxu0 0.0
      %688 = vmatpush2.msra.mxu0 0.0
      %689 = vmatprep.subr.mxu0 0.0
      %690 = vmatpush2.msra.mxu0 0.0
      %691 = vmatprep.subr.mxu0 0.0
      %692 = vmatpush2.msra.mxu0 0.0
      %693 = vmatprep.subr.mxu0 0.0
      %694 = vmatpush2.msra.mxu0 0.0
      %695 = vmatprep.subr.mxu0 0.0
      %696 = vmatpush2.msra.mxu0 0.0
      %697 = vmatprep.subr.mxu0 0.0
      %698 = vmatpush2.msra.mxu0 0.0
      %699 = vmatprep.subr.mxu0 0.0
      %700 = vmatpush2.msra.mxu0 0.0
      %701 = vmatprep.subr.mxu0 0.0
      %702 = vmatpush2.msra.mxu0 0.0
      %703 = vmatprep.subr.mxu0 0.0
      %704 = vmatpush2.msra.mxu0 0.0
      %705 = vmatprep.subr.mxu0 0.0
      %706 = vmatpush2.msra.mxu0 0.0
      %707 = vmatprep.subr.mxu0 0.0
      %708 = vmatpush2.msra.mxu0 0.0
      %709 = vmatprep.subr.mxu0 0.0
      %710 = vmatpush2.msra.mxu0 0.0
      %711 = vmatprep.subr.mxu0 0.0
      %712 = vmatpush2.msra.mxu0 0.0
      %713 = vmatprep.mubr.f32.mxu0 0.0
      %714 = vmatmul.mubr.f32.gmra.mxu0 %v644
      %v715 = vpop.f32.mrf.mxu0
      %v716 = vadd.f32 0.0, %v715
      %v717 = vpop.f32.mrf.mxu0
      %718 = vmatprep.mubr.f32.mxu0 0.0
      %719 = vmatmul.mubr.f32.gmra.mxu0 %v647
      %v720 = vpop.f32.mrf.mxu0
      %v721 = vadd.f32 0.0, %v720
      %v722 = vpop.f32.mrf.mxu0
      %723 = vdwg.mxu0
      %v725 = vsel %vm277, %v636, 0
      %v728 = vsel %vm277, %v637, 0
      %730 = vmatprep.subr.mxu0 0.0
      %731 = vmatpush1.msra.mxu0 0.0
      %732 = vmatprep.subr.mxu0 0.0
      %733 = vmatpush1.msra.mxu0 0.0
      %734 = vmatprep.subr.mxu0 0.0
      %735 = vmatpush1.msra.mxu0 0.0
      %736 = vmatprep.subr.mxu0 0.0
      %737 = vmatpush1.msra.mxu0 0.0
      %738 = vmatprep.subr.mxu0 0.0
      %739 = vmatpush1.msra.mxu0 0.0
      %740 = vmatprep.subr.mxu0 0.0
      %741 = vmatpush1.msra.mxu0 0.0
      %742 = vmatprep.subr.mxu0 0.0
      %743 = vmatpush1.msra.mxu0 0.0
      %744 = vmatprep.subr.mxu0 0.0
      %745 = vmatpush1.msra.mxu0 0.0
      %746 = vmatprep.subr.mxu0 0.0
      %747 = vmatpush1.msra.mxu0 0.0
      %748 = vmatprep.subr.mxu0 0.0
      %749 = vmatpush1.msra.mxu0 0.0
      %750 = vmatprep.subr.mxu0 0.0
      %751 = vmatpush1.msra.mxu0 0.0
      %752 = vmatprep.subr.mxu0 0.0
      %753 = vmatpush1.msra.mxu0 0.0
      %754 = vmatprep.subr.mxu0 0.0
      %755 = vmatpush1.msra.mxu0 0.0
      %756 = vmatprep.subr.mxu0 0.0
      %757 = vmatpush1.msra.mxu0 0.0
      %758 = vmatprep.subr.mxu0 0.0
      %759 = vmatpush1.msra.mxu0 0.0
      %760 = vmatprep.subr.mxu0 0.0
      %761 = vmatpush1.msra.mxu0 %v638
      %762 = vmatprep.subr.mxu0 0.0
      %763 = vmatpush2.msra.mxu0 0.0
      %764 = vmatprep.subr.mxu0 0.0
      %765 = vmatpush2.msra.mxu0 0.0
      %766 = vmatprep.subr.mxu0 0.0
      %767 = vmatpush2.msra.mxu0 0.0
      %768 = vmatprep.subr.mxu0 0.0
      %769 = vmatpush2.msra.mxu0 0.0
      %770 = vmatprep.subr.mxu0 0.0
      %771 = vmatpush2.msra.mxu0 0.0
      %772 = vmatprep.subr.mxu0 0.0
      %773 = vmatpush2.msra.mxu0 0.0
      %774 = vmatprep.subr.mxu0 0.0
      %775 = vmatpush2.msra.mxu0 0.0
      %776 = vmatprep.subr.mxu0 0.0
      %777 = vmatpush2.msra.mxu0 0.0
      %778 = vmatprep.subr.mxu0 0.0
      %779 = vmatpush2.msra.mxu0 0.0
      %780 = vmatprep.subr.mxu0 0.0
      %781 = vmatpush2.msra.mxu0 0.0
      %782 = vmatprep.subr.mxu0 0.0
      %783 = vmatpush2.msra.mxu0 0.0
      %784 = vmatprep.subr.mxu0 0.0
      %785 = vmatpush2.msra.mxu0 0.0
      %786 = vmatprep.subr.mxu0 0.0
      %787 = vmatpush2.msra.mxu0 0.0
      %788 = vmatprep.subr.mxu0 0.0
      %789 = vmatpush2.msra.mxu0 0.0
      %790 = vmatprep.subr.mxu0 0.0
      %791 = vmatpush2.msra.mxu0 0.0
      %792 = vmatprep.subr.mxu0 0.0
      %793 = vmatpush2.msra.mxu0 0.0
      %794 = vmatprep.mubr.f32.mxu0 0.0
      %795 = vmatmul.mubr.f32.gmra.mxu0 %v725
      %v796 = vpop.f32.mrf.mxu0
      %v797 = vadd.f32 %v716, %v796
      %v798 = vpop.f32.mrf.mxu0
      %799 = vmatprep.mubr.f32.mxu0 0.0
      %800 = vmatmul.mubr.f32.gmra.mxu0 %v728
      %v801 = vpop.f32.mrf.mxu0
      %v802 = vadd.f32 %v721, %v801
      %v803 = vpop.f32.mrf.mxu0
      %804 = vdwg.mxu0
      %v805 = vld [vmem:[#allocation3 + $0x7] sm:$0xff]
      %v806 = vld [vmem:[#allocation3 + $0xf] sm:$0xff]
      %s807 = scalar_lea.vmem %s2, 16
      %v808 = vld [vmem:[%s807] sm:$0xff]
      %v810 = vsel %vm277, %v805, 0
      %v813 = vsel %vm277, %v806, 0
      %815 = vmatprep.subr.mxu0 0.0
      %816 = vmatpush1.msra.mxu0 0.0
      %817 = vmatprep.subr.mxu0 0.0
      %818 = vmatpush1.msra.mxu0 0.0
      %819 = vmatprep.subr.mxu0 0.0
      %820 = vmatpush1.msra.mxu0 0.0
      %821 = vmatprep.subr.mxu0 0.0
      %822 = vmatpush1.msra.mxu0 0.0
      %823 = vmatprep.subr.mxu0 0.0
      %824 = vmatpush1.msra.mxu0 0.0
      %825 = vmatprep.subr.mxu0 0.0
      %826 = vmatpush1.msra.mxu0 0.0
      %827 = vmatprep.subr.mxu0 0.0
      %828 = vmatpush1.msra.mxu0 0.0
      %829 = vmatprep.subr.mxu0 0.0
      %830 = vmatpush1.msra.mxu0 0.0
      %831 = vmatprep.subr.mxu0 0.0
      %832 = vmatpush1.msra.mxu0 0.0
      %833 = vmatprep.subr.mxu0 0.0
      %834 = vmatpush1.msra.mxu0 0.0
      %835 = vmatprep.subr.mxu0 0.0
      %836 = vmatpush1.msra.mxu0 0.0
      %837 = vmatprep.subr.mxu0 0.0
      %838 = vmatpush1.msra.mxu0 0.0
      %839 = vmatprep.subr.mxu0 0.0
      %840 = vmatpush1.msra.mxu0 0.0
      %841 = vmatprep.subr.mxu0 0.0
      %842 = vmatpush1.msra.mxu0 0.0
      %843 = vmatprep.subr.mxu0 0.0
      %844 = vmatpush1.msra.mxu0 0.0
      %845 = vmatprep.subr.mxu0 0.0
      %846 = vmatpush1.msra.mxu0 %v808
      %847 = vmatprep.subr.mxu0 0.0
      %848 = vmatpush2.msra.mxu0 0.0
      %849 = vmatprep.subr.mxu0 0.0
      %850 = vmatpush2.msra.mxu0 0.0
      %851 = vmatprep.subr.mxu0 0.0
      %852 = vmatpush2.msra.mxu0 0.0
      %853 = vmatprep.subr.mxu0 0.0
      %854 = vmatpush2.msra.mxu0 0.0
      %855 = vmatprep.subr.mxu0 0.0
      %856 = vmatpush2.msra.mxu0 0.0
      %857 = vmatprep.subr.mxu0 0.0
      %858 = vmatpush2.msra.mxu0 0.0
      %859 = vmatprep.subr.mxu0 0.0
      %860 = vmatpush2.msra.mxu0 0.0
      %861 = vmatprep.subr.mxu0 0.0
      %862 = vmatpush2.msra.mxu0 0.0
      %863 = vmatprep.subr.mxu0 0.0
      %864 = vmatpush2.msra.mxu0 0.0
      %865 = vmatprep.subr.mxu0 0.0
      %866 = vmatpush2.msra.mxu0 0.0
      %867 = vmatprep.subr.mxu0 0.0
      %868 = vmatpush2.msra.mxu0 0.0
      %869 = vmatprep.subr.mxu0 0.0
      %870 = vmatpush2.msra.mxu0 0.0
      %871 = vmatprep.subr.mxu0 0.0
      %872 = vmatpush2.msra.mxu0 0.0
      %873 = vmatprep.subr.mxu0 0.0
      %874 = vmatpush2.msra.mxu0 0.0
      %875 = vmatprep.subr.mxu0 0.0
      %876 = vmatpush2.msra.mxu0 0.0
      %877 = vmatprep.subr.mxu0 0.0
      %878 = vmatpush2.msra.mxu0 0.0
      %879 = vmatprep.mubr.f32.mxu0 0.0
      %880 = vmatmul.mubr.f32.gmra.mxu0 %v810
      %v881 = vpop.f32.mrf.mxu0
      %v882 = vadd.f32 0.0, %v881
      %v883 = vpop.f32.mrf.mxu0
      %884 = vmatprep.mubr.f32.mxu0 0.0
      %885 = vmatmul.mubr.f32.gmra.mxu0 %v813
      %v886 = vpop.f32.mrf.mxu0
      %v887 = vadd.f32 0.0, %v886
      %v888 = vpop.f32.mrf.mxu0
      %889 = vdwg.mxu0
      %v890 = vadd.f32 %v797, %v882
      %v891 = vadd.f32 %v802, %v887
      %v892 = vld [vmem:[#allocation3 + $0x8] sm:$0xff]
      %v893 = vld [vmem:[#allocation3 + $0x10] sm:$0xff]
      %s894 = scalar_lea.vmem %s2, 24
      %v895 = vld [vmem:[%s894] sm:$0xff]
      %v897 = vsel %vm277, %v892, 0
      %v900 = vsel %vm277, %v893, 0
      %902 = vmatprep.subr.mxu0 0.0
      %903 = vmatpush1.msra.mxu0 0.0
      %904 = vmatprep.subr.mxu0 0.0
      %905 = vmatpush1.msra.mxu0 0.0
      %906 = vmatprep.subr.mxu0 0.0
      %907 = vmatpush1.msra.mxu0 0.0
      %908 = vmatprep.subr.mxu0 0.0
      %909 = vmatpush1.msra.mxu0 0.0
      %910 = vmatprep.subr.mxu0 0.0
      %911 = vmatpush1.msra.mxu0 0.0
      %912 = vmatprep.subr.mxu0 0.0
      %913 = vmatpush1.msra.mxu0 0.0
      %914 = vmatprep.subr.mxu0 0.0
      %915 = vmatpush1.msra.mxu0 0.0
      %916 = vmatprep.subr.mxu0 0.0
      %917 = vmatpush1.msra.mxu0 0.0
      %918 = vmatprep.subr.mxu0 0.0
      %919 = vmatpush1.msra.mxu0 0.0
      %920 = vmatprep.subr.mxu0 0.0
      %921 = vmatpush1.msra.mxu0 0.0
      %922 = vmatprep.subr.mxu0 0.0
      %923 = vmatpush1.msra.mxu0 0.0
      %924 = vmatprep.subr.mxu0 0.0
      %925 = vmatpush1.msra.mxu0 0.0
      %926 = vmatprep.subr.mxu0 0.0
      %927 = vmatpush1.msra.mxu0 0.0
      %928 = vmatprep.subr.mxu0 0.0
      %929 = vmatpush1.msra.mxu0 0.0
      %930 = vmatprep.subr.mxu0 0.0
      %931 = vmatpush1.msra.mxu0 0.0
      %932 = vmatprep.subr.mxu0 0.0
      %933 = vmatpush1.msra.mxu0 %v895
      %934 = vmatprep.subr.mxu0 0.0
      %935 = vmatpush2.msra.mxu0 0.0
      %936 = vmatprep.subr.mxu0 0.0
      %937 = vmatpush2.msra.mxu0 0.0
      %938 = vmatprep.subr.mxu0 0.0
      %939 = vmatpush2.msra.mxu0 0.0
      %940 = vmatprep.subr.mxu0 0.0
      %941 = vmatpush2.msra.mxu0 0.0
      %942 = vmatprep.subr.mxu0 0.0
      %943 = vmatpush2.msra.mxu0 0.0
      %944 = vmatprep.subr.mxu0 0.0
      %945 = vmatpush2.msra.mxu0 0.0
      %946 = vmatprep.subr.mxu0 0.0
      %947 = vmatpush2.msra.mxu0 0.0
      %948 = vmatprep.subr.mxu0 0.0
      %949 = vmatpush2.msra.mxu0 0.0
      %950 = vmatprep.subr.mxu0 0.0
      %951 = vmatpush2.msra.mxu0 0.0
      %952 = vmatprep.subr.mxu0 0.0
      %953 = vmatpush2.msra.mxu0 0.0
      %954 = vmatprep.subr.mxu0 0.0
      %955 = vmatpush2.msra.mxu0 0.0
      %956 = vmatprep.subr.mxu0 0.0
      %957 = vmatpush2.msra.mxu0 0.0
      %958 = vmatprep.subr.mxu0 0.0
      %959 = vmatpush2.msra.mxu0 0.0
      %960 = vmatprep.subr.mxu0 0.0
      %961 = vmatpush2.msra.mxu0 0.0
      %962 = vmatprep.subr.mxu0 0.0
      %963 = vmatpush2.msra.mxu0 0.0
      %964 = vmatprep.subr.mxu0 0.0
      %965 = vmatpush2.msra.mxu0 0.0
      %966 = vmatprep.mubr.f32.mxu0 0.0
      %967 = vmatmul.mubr.f32.gmra.mxu0 %v897
      %v968 = vpop.f32.mrf.mxu0
      %v969 = vadd.f32 0.0, %v968
      %v970 = vpop.f32.mrf.mxu0
      %971 = vmatprep.mubr.f32.mxu0 0.0
      %972 = vmatmul.mubr.f32.gmra.mxu0 %v900
      %v973 = vpop.f32.mrf.mxu0
      %v974 = vadd.f32 0.0, %v973
      %v975 = vpop.f32.mrf.mxu0
      %976 = vdwg.mxu0
      %v977 = vadd.f32 %v890, %v969
      %v978 = vadd.f32 %v891, %v974
      %v979 = vld [vmem:[%s3] sm:$0x1]
      %v981 = vlaneseq
      %v982 = vshrl.u32 %v981, 7
      %v983 = vsub.s32 0, %v982
      %v984 = vrot.slane %v979, %v983
      %v986 = vadd.f32 %v977, %v984
      %v987 = vadd.f32 %v978, %v984
      %v988 = vmax.f32 %v986, 0.0
      %v989 = vmax.f32 %v987, 0.0
      %v990 = vld [vmem:[%s252] sm:$0xff]
      %v991 = vld [vmem:[%s252 + $0x8] sm:$0xff]
      %v992 = vadd.f32 %v988, %v990
      %v993 = vadd.f32 %v989, %v991
      %v994 = vmax.f32 %v992, 0.0
      %v995 = vmax.f32 %v993, 0.0
      %996 = vst.msk [vmem:[%s262] sm:$0xff] %vm277, %v994
      %997 = vst.msk [vmem:[%s262 + $0x8] sm:$0xff] %vm277, %v995
      %p998 = scmp.ne.s32.totalorder %s21, 0
      // Predicated region
      $region45: #{_lambda_.4} parent=39 // pred_check
        %p999 = pneg %p998
      $region46: #{_lambda_.4} parent=39 // pred_check_branch
        %1001 = sbr.rel (%p999) target = $region48
      $region47: #{_lambda_.4} parent=39 // pred_region
        %v1002 = vld [vmem:[#allocation2 + $0x10] sm:$0xff]
        %1003 = vst.msk [vmem:[#allocation2] sm:$0xff] %vm277, %v1002
        %v1004 = vld [vmem:[#allocation3 + $0x10] sm:$0xff]
        %1005 = vst.msk [vmem:[#allocation3] sm:$0xff] %vm277, %v1004
      $region48: #{_lambda_.4} parent=39 // pred_fallthru
        _
      %s1006 = smul.u32 2, %s21
      %p1007 = scmp.lt.s32.totalorder %s20, 1
      %s1008 = scalar_select %p1007, %s20, 1
      %p1009 = scmp.lt.s32.totalorder %s1006, 1
      %s1010 = scalar_select %p1009, %s1006, 1
      %s1011 = smul.addr %s1008, 2
      %s1012 = sadd.s32 %s1010, %s1011
      %s1013 = smul.addr %s1012, 8
      %s1014 = scalar_lea.vmem %s5, %s1013
      // Predicated region
      $region49: #{_lambda_.4} parent=39 // pred_check
        %p1015 = pneg %p160
      $region50: #{_lambda_.4} parent=39 // pred_check_branch
        %1017 = sbr.rel (%p1015) target = $region52
      $region51: #{_lambda_.4} parent=39 // pred_region
        %s1018 = smul.u32 2, %s21
      $region52: #{_lambda_.4} parent=39 // pred_fallthru
        _
    $region40: #{_lambda_.4} parent=5 // pred_fallthru
      _
    %p1019 = scmp.le.s32.totalorder 2, %s11
    // Predicated region
    $region53: #{_lambda_.4} parent=5 // pred_check
      %p1020 = pneg %p1019
    $region54: #{_lambda_.4} parent=5 // pred_check_branch
      %1022 = sbr.rel (%p1020) target = $region56
    $region55: #{_lambda_.4} parent=5 // pred_region
      %s1023 = ssub.s32 %s11, 2
      // Predicated region
      $region57: #{_lambda_.4} parent=55 // pred_check
        %p1024 = pneg %p166
      $region58: #{_lambda_.4} parent=55 // pred_check_branch
        %1026 = sbr.rel (%p1024) target = $region60
      $region59: #{_lambda_.4} parent=55 // pred_region
        %s1027 = smul.u32 2, %s23
        %p1028 = scmp.lt.s32.totalorder %s22, 1
        %s1029 = scalar_select %p1028, %s22, 1
        %p1030 = scmp.lt.s32.totalorder %s1027, 1
        %s1031 = scalar_select %p1030, %s1027, 1
        %s1032 = smul.addr %s1029, 2
        %s1033 = sadd.s32 %s1031, %s1032
        %s1034 = smul.addr %s1033, 8
        %s1035 = scalar_lea.vmem %s5, %s1034
      $region60: #{_lambda_.4} parent=55 // pred_fallthru
        _
    $region56: #{_lambda_.4} parent=5 // pred_fallthru
      _
  $region6: #{_lambda_.4} parent=0 // loop_footer
    %s15 = sadd.s32 1, %s11
  $region7: #{_lambda_.4} parent=0 // loop_footer_branch
    %10 = sbr.rel target = $region3
  $region8: #{_lambda_.4} parent=0 // loop_exit
    _

// kernel: _lambda_.5
$region0: #{_lambda_.5}
  #allocation0 [shape = 'u32[]', space=smem, size = 0x4, offset = 0x4, fixed_abs, tag = 'smem constant byte address 0x4 - core index']
  #allocation1 [shape = 'u32[144,128]{1,0:T(1,128)}', space=vmem, size = 0x12000, scoped, tag = 'internal scratch']
  #allocation2 [shape = 'f32[24,8]{1,0:T(8,128)}', space=vmem, size = 0x3000, scoped, tag = 'scratch operand']
  #allocation3 [shape = 'f32[24,6]{1,0:T(8,128)}', space=vmem, size = 0x3000, scoped, tag = 'scratch operand']
  %s0 = inlined_call_operand.vmem [shape: f32[8,8,6], index: 0, kind: input, shape index: {}]
  %s1 = inlined_call_operand.vmem [shape: f32[1,6], index: 1, kind: input, shape index: {}]
  %s2 = inlined_call_operand.vmem [shape: f32[8,6,6], index: 2, kind: input, shape index: {}]
  %s3 = inlined_call_operand.vmem [shape: f32[1,6], index: 3, kind: input, shape index: {}]
  %s4 = inlined_call_operand.vmem [shape: f32[8,6], index: 4, kind: input, shape index: {}]
  %s5 = inlined_call_operand.vmem [shape: f32[1,6], index: 5, kind: input, shape index: {}]
  %s6 = inlined_call_operand.vmem [shape: f32[2,16,8], index: 6, kind: input, shape index: {}]
  %s7 = inlined_call_operand.vmem [shape: f32[2,16,6], index: 7, kind: output, shape index: {}]
  %s8 = sld [smem:[#allocation0]]
  $region69: #{_lambda_.5} parent=0
    _
  %s10 = ssub.s32 1, %s8
  %s11 = scalar_select 0, %s10, %s8
  loop: start=0, step=1, limit=4
  $region2: #{_lambda_.5} parent=0 // loop_pre_header
    _
  $region3: #{_lambda_.5} parent=0 // loop_header
    %s13 = sphi 0, %s17
    %p14 = scmp.ge.s32.totalorder %s13, 4
    %s20 = sphi 0, %s32
    %s21 = sphi 0, %s28
    %s22 = sphi 0, %s20
    %s23 = sphi 0, %s21
    %s24 = sphi 0, %s22
    %s25 = sphi 0, %s23
    %s33 = sphi 0, %s33
    %s35 = sphi 0, %s33
    %s36 = sphi 0, %s35
    %s50 = sphi 0, %s36
    %s54 = sphi 0, %s54
    %s56 = sphi 0, %s54
    %s57 = sphi 0, %s56
    %s71 = sphi 0, %s57
    %s75 = sphi 0, %s75
    %s77 = sphi 0, %s75
    %s78 = sphi 0, %s77
    %s92 = sphi 0, %s78
    %s96 = sphi 0, %s96
    %s98 = sphi 0, %s96
    %s99 = sphi 0, %s98
    %s113 = sphi 0, %s99
    %s117 = sphi 0, %s117
    %s119 = sphi 0, %s117
    %s120 = sphi 0, %s119
    %s134 = sphi 0, %s120
    %s138 = sphi 0, %s138
    %s140 = sphi 0, %s138
    %s141 = sphi 0, %s140
    %s155 = sphi 0, %s141
    %s163 = sphi 0, %s165
    %s166 = sphi 0, %s163
    %s167 = sphi 0, %s166
    %s183 = sphi 0, %s167
    %s191 = sphi 0, %s193
    %s194 = sphi 0, %s191
    %s195 = sphi 0, %s194
    %s211 = sphi 0, %s195
  $region4: #{_lambda_.5} parent=0 // loop_header_branch
    %16 = sbr.rel (%p14) target = $region8
  $region5: #{_lambda_.5} parent=0 // loop_body
    %s18 = ssub.s32 %s13, 1
    %s19 = ssub.s32 %s13, 2
    %s26 = sadd.s32 1, %s21
    %p27 = scmp.ge.s32.totalorder %s26, 1
    %s28 = scalar_select %p27, 0, %s26
    %s29 = sadd.s32 1, %s20
    %s30 = scalar_select %p27, %s29, %s20
    %p31 = scmp.ge.s32.totalorder %s30, 2
    %s32 = scalar_select %p31, 0, %s30
    %s34 = sadd.s32 %s33, 1
    %p37 = scmp.eq.s32.totalorder %s13, 1
    %p38 = scmp.ne.s32.totalorder %s33, %s35
    %p39 = scmp.eq.s32.totalorder %s13, 0
    %p40 = por %p38, %p39
    %p41 = scmp.ne.s32.totalorder %s33, %s35
    %p42 = scmp.eq.s32.totalorder %s18, 1
    %p43 = por %p41, %p42
    %p44 = scmp.ne.s32.totalorder %s35, %s36
    %p45 = scmp.eq.s32.totalorder %s18, 0
    %p46 = por %p44, %p45
    %p47 = scmp.ne.s32.totalorder %s35, %s36
    %p48 = scmp.eq.s32.totalorder %s19, 1
    %p49 = por %p47, %p48
    %p51 = scmp.ne.s32.totalorder %s36, %s50
    %p52 = scmp.eq.s32.totalorder %s19, 0
    %p53 = por %p51, %p52
    %s55 = sadd.s32 %s54, 1
    %p58 = scmp.eq.s32.totalorder %s13, 1
    %p59 = scmp.ne.s32.totalorder %s54, %s56
    %p60 = scmp.eq.s32.totalorder %s13, 0
    %p61 = por %p59, %p60
    %p62 = scmp.ne.s32.totalorder %s54, %s56
    %p63 = scmp.eq.s32.totalorder %s18, 1
    %p64 = por %p62, %p63
    %p65 = scmp.ne.s32.totalorder %s56, %s57
    %p66 = scmp.eq.s32.totalorder %s18, 0
    %p67 = por %p65, %p66
    %p68 = scmp.ne.s32.totalorder %s56, %s57
    %p69 = scmp.eq.s32.totalorder %s19, 1
    %p70 = por %p68, %p69
    %p72 = scmp.ne.s32.totalorder %s57, %s71
    %p73 = scmp.eq.s32.totalorder %s19, 0
    %p74 = por %p72, %p73
    %s76 = sadd.s32 %s75, 1
    %p79 = scmp.eq.s32.totalorder %s13, 1
    %p80 = scmp.ne.s32.totalorder %s75, %s77
    %p81 = scmp.eq.s32.totalorder %s13, 0
    %p82 = por %p80, %p81
    %p83 = scmp.ne.s32.totalorder %s75, %s77
    %p84 = scmp.eq.s32.totalorder %s18, 1
    %p85 = por %p83, %p84
    %p86 = scmp.ne.s32.totalorder %s77, %s78
    %p87 = scmp.eq.s32.totalorder %s18, 0
    %p88 = por %p86, %p87
    %p89 = scmp.ne.s32.totalorder %s77, %s78
    %p90 = scmp.eq.s32.totalorder %s19, 1
    %p91 = por %p89, %p90
    %p93 = scmp.ne.s32.totalorder %s78, %s92
    %p94 = scmp.eq.s32.totalorder %s19, 0
    %p95 = por %p93, %p94
    %s97 = sadd.s32 %s96, 1
    %p100 = scmp.eq.s32.totalorder %s13, 1
    %p101 = scmp.ne.s32.totalorder %s96, %s98
    %p102 = scmp.eq.s32.totalorder %s13, 0
    %p103 = por %p101, %p102
    %p104 = scmp.ne.s32.totalorder %s96, %s98
    %p105 = scmp.eq.s32.totalorder %s18, 1
    %p106 = por %p104, %p105
    %p107 = scmp.ne.s32.totalorder %s98, %s99
    %p108 = scmp.eq.s32.totalorder %s18, 0
    %p109 = por %p107, %p108
    %p110 = scmp.ne.s32.totalorder %s98, %s99
    %p111 = scmp.eq.s32.totalorder %s19, 1
    %p112 = por %p110, %p111
    %p114 = scmp.ne.s32.totalorder %s99, %s113
    %p115 = scmp.eq.s32.totalorder %s19, 0
    %p116 = por %p114, %p115
    %s118 = sadd.s32 %s117, 1
    %p121 = scmp.eq.s32.totalorder %s13, 1
    %p122 = scmp.ne.s32.totalorder %s117, %s119
    %p123 = scmp.eq.s32.totalorder %s13, 0
    %p124 = por %p122, %p123
    %p125 = scmp.ne.s32.totalorder %s117, %s119
    %p126 = scmp.eq.s32.totalorder %s18, 1
    %p127 = por %p125, %p126
    %p128 = scmp.ne.s32.totalorder %s119, %s120
    %p129 = scmp.eq.s32.totalorder %s18, 0
    %p130 = por %p128, %p129
    %p131 = scmp.ne.s32.totalorder %s119, %s120
    %p132 = scmp.eq.s32.totalorder %s19, 1
    %p133 = por %p131, %p132
    %p135 = scmp.ne.s32.totalorder %s120, %s134
    %p136 = scmp.eq.s32.totalorder %s19, 0
    %p137 = por %p135, %p136
    %s139 = sadd.s32 %s138, 1
    %p142 = scmp.eq.s32.totalorder %s13, 1
    %p143 = scmp.ne.s32.totalorder %s138, %s140
    %p144 = scmp.eq.s32.totalorder %s13, 0
    %p145 = por %p143, %p144
    %p146 = scmp.ne.s32.totalorder %s138, %s140
    %p147 = scmp.eq.s32.totalorder %s18, 1
    %p148 = por %p146, %p147
    %p149 = scmp.ne.s32.totalorder %s140, %s141
    %p150 = scmp.eq.s32.totalorder %s18, 0
    %p151 = por %p149, %p150
    %p152 = scmp.ne.s32.totalorder %s140, %s141
    %p153 = scmp.eq.s32.totalorder %s19, 1
    %p154 = por %p152, %p153
    %p156 = scmp.ne.s32.totalorder %s141, %s155
    %p157 = scmp.eq.s32.totalorder %s19, 0
    %p158 = por %p156, %p157
    %s159 = ssub.s32 %s20, %s32
    %s160 = ssub.s32 %s21, %s28
    %s161 = sor.u32 %s159, %s160
    %p162 = scmp.eq.s32.totalorder %s161, 0
    %s164 = sadd.s32 %s163, 1
    %s165 = scalar_select %p162, %s163, %s164
    %p168 = pneg %p162
    %p169 = scmp.eq.s32.totalorder %s13, 1
    %p170 = por %p168, %p169
    %p171 = scmp.ne.s32.totalorder %s163, %s166
    %p172 = scmp.eq.s32.totalorder %s13, 0
    %p173 = por %p171, %p172
    %p174 = scmp.ne.s32.totalorder %s163, %s166
    %p175 = scmp.eq.s32.totalorder %s18, 1
    %p176 = por %p174, %p175
    %p177 = scmp.ne.s32.totalorder %s166, %s167
    %p178 = scmp.eq.s32.totalorder %s18, 0
    %p179 = por %p177, %p178
    %p180 = scmp.ne.s32.totalorder %s166, %s167
    %p181 = scmp.eq.s32.totalorder %s19, 1
    %p182 = por %p180, %p181
    %p184 = scmp.ne.s32.totalorder %s167, %s183
    %p185 = scmp.eq.s32.totalorder %s19, 0
    %p186 = por %p184, %p185
    %s187 = ssub.s32 %s20, %s32
    %s188 = ssub.s32 %s21, %s28
    %s189 = sor.u32 %s187, %s188
    %p190 = scmp.eq.s32.totalorder %s189, 0
    %s192 = sadd.s32 %s191, 1
    %s193 = scalar_select %p190, %s191, %s192
    %p196 = pneg %p190
    %p197 = scmp.eq.s32.totalorder %s13, 1
    %p198 = por %p196, %p197
    %p199 = scmp.ne.s32.totalorder %s191, %s194
    %p200 = scmp.eq.s32.totalorder %s13, 0
    %p201 = por %p199, %p200
    %p202 = scmp.ne.s32.totalorder %s191, %s194
    %p203 = scmp.eq.s32.totalorder %s18, 1
    %p204 = por %p202, %p203
    %p205 = scmp.ne.s32.totalorder %s194, %s195
    %p206 = scmp.eq.s32.totalorder %s18, 0
    %p207 = por %p205, %p206
    %p208 = scmp.ne.s32.totalorder %s194, %s195
    %p209 = scmp.eq.s32.totalorder %s19, 1
    %p210 = por %p208, %p209
    %p212 = scmp.ne.s32.totalorder %s195, %s211
    %p213 = scmp.eq.s32.totalorder %s19, 0
    %p214 = por %p212, %p213
    %p215 = scmp.le.s32.totalorder 1, %s13
    %p216 = scmp.lt.s32.totalorder %s13, 3
    %p217 = pnand %p215, %p216
    %p218 = pneg %p217
    // Predicated region
    $region9: #{_lambda_.5} parent=5 // pred_check
      _
    $region10: #{_lambda_.5} parent=5 // pred_check_branch
      %220 = sbr.rel (%p217) target = $region12
    $region11: #{_lambda_.5} parent=5 // pred_region
      %s221 = ssub.s32 %s13, 1
      // Predicated region
      $region13: #{_lambda_.5} parent=11 // pred_check
        %p222 = pneg %p46
      $region14: #{_lambda_.5} parent=11 // pred_check_branch
        %224 = sbr.rel (%p222) target = $region16
      $region15: #{_lambda_.5} parent=11 // pred_region
        _
      $region16: #{_lambda_.5} parent=11 // pred_fallthru
        _
      // Predicated region
      $region17: #{_lambda_.5} parent=11 // pred_check
        %p225 = pneg %p67
      $region18: #{_lambda_.5} parent=11 // pred_check_branch
        %227 = sbr.rel (%p225) target = $region20
      $region19: #{_lambda_.5} parent=11 // pred_region
        _
      $region20: #{_lambda_.5} parent=11 // pred_fallthru
        _
      // Predicated region
      $region21: #{_lambda_.5} parent=11 // pred_check
        %p228 = pneg %p88
      $region22: #{_lambda_.5} parent=11 // pred_check_branch
        %230 = sbr.rel (%p228) target = $region24
      $region23: #{_lambda_.5} parent=11 // pred_region
        _
      $region24: #{_lambda_.5} parent=11 // pred_fallthru
        _
      // Predicated region
      $region25: #{_lambda_.5} parent=11 // pred_check
        %p231 = pneg %p109
      $region26: #{_lambda_.5} parent=11 // pred_check_branch
        %233 = sbr.rel (%p231) target = $region28
      $region27: #{_lambda_.5} parent=11 // pred_region
        _
      $region28: #{_lambda_.5} parent=11 // pred_fallthru
        _
      // Predicated region
      $region29: #{_lambda_.5} parent=11 // pred_check
        %p234 = pneg %p130
      $region30: #{_lambda_.5} parent=11 // pred_check_branch
        %236 = sbr.rel (%p234) target = $region32
      $region31: #{_lambda_.5} parent=11 // pred_region
        _
      $region32: #{_lambda_.5} parent=11 // pred_fallthru
        _
      // Predicated region
      $region33: #{_lambda_.5} parent=11 // pred_check
        %p237 = pneg %p151
      $region34: #{_lambda_.5} parent=11 // pred_check_branch
        %239 = sbr.rel (%p237) target = $region36
      $region35: #{_lambda_.5} parent=11 // pred_region
        _
      $region36: #{_lambda_.5} parent=11 // pred_fallthru
        _
    $region12: #{_lambda_.5} parent=5 // pred_fallthru
      _
    %p240 = scmp.lt.s32.totalorder %s13, 2
    // Predicated region
    $region37: #{_lambda_.5} parent=5 // pred_check
      %p241 = pneg %p240
    $region38: #{_lambda_.5} parent=5 // pred_check_branch
      %243 = sbr.rel (%p241) target = $region40
    $region39: #{_lambda_.5} parent=5 // pred_region
      // Predicated region
      $region41: #{_lambda_.5} parent=39 // pred_check
        %p244 = pneg %p173
      $region42: #{_lambda_.5} parent=39 // pred_check_branch
        %246 = sbr.rel (%p244) target = $region44
      $region43: #{_lambda_.5} parent=39 // pred_region
        %s247 = smul.u32 2, %s21
        %p248 = scmp.lt.s32.totalorder %s20, 1
        %s249 = scalar_select %p248, %s20, 1
        %p250 = scmp.lt.s32.totalorder %s247, 1
        %s251 = scalar_select %p250, %s247, 1
        %s252 = smul.addr %s249, 2
        %s253 = sadd.s32 %s251, %s252
        %s254 = smul.addr %s253, 8
        %s255 = scalar_lea.vmem %s6, %s254
        %s256 = smul.u32 2, %s21
      $region44: #{_lambda_.5} parent=39 // pred_fallthru
        _
    $region40: #{_lambda_.5} parent=5 // pred_fallthru
      _
    %p257 = scmp.le.s32.totalorder 1, %s13
    %p258 = scmp.lt.s32.totalorder %s13, 3
    %p259 = pnand %p257, %p258
    %p260 = pneg %p259
    // Predicated region
    $region45: #{_lambda_.5} parent=5 // pred_check
      _
    $region46: #{_lambda_.5} parent=5 // pred_check_branch
      %262 = sbr.rel (%p259) target = $region48
    $region47: #{_lambda_.5} parent=5 // pred_region
      %s263 = ssub.s32 %s13, 1
      %p264 = pneg %p46
      %p265 = pneg %p43
      %p266 = pneg %p67
      %p267 = pneg %p64
      %p268 = pneg %p88
      %p269 = pneg %p85
      %p270 = pneg %p109
      %p271 = pneg %p106
      %p272 = pneg %p130
      %p273 = pneg %p127
      %p274 = pneg %p151
      %p275 = pneg %p148
      %s276 = smul.u32 2, %s23
      %p277 = scmp.lt.s32.totalorder %s22, 1
      %s278 = scalar_select %p277, %s22, 1
      %p279 = scmp.lt.s32.totalorder %s276, 1
      %s280 = scalar_select %p279, %s276, 1
      %s281 = smul.addr %s278, 2
      %s282 = sadd.s32 %s280, %s281
      %s283 = smul.addr %s282, 8
      %s284 = scalar_lea.vmem %s6, %s283
      %p285 = pneg %p179
      %p286 = pneg %p176
      %p287 = pneg %p207
      %p288 = pneg %p204
      %s289 = smul.u32 2, %s23
      %p290 = scmp.lt.s32.totalorder %s22, 1
      %s291 = scalar_select %p290, %s22, 1
      %p292 = scmp.lt.s32.totalorder %s289, 1
      %s293 = scalar_select %p292, %s289, 1
      %s294 = smul.addr %s291, 2
      %s295 = sadd.s32 %s293, %s294
      %s296 = smul.addr %s295, 8
      %s297 = scalar_lea.vmem %s7, %s296
      %s298 = smul.u32 2, %s23
      %p299 = scmp.lt.s32.totalorder %s22, 1
      %s300 = scalar_select %p299, %s22, 1
      %p301 = scmp.lt.s32.totalorder %s298, 1
      %s302 = scalar_select %p301, %s298, 1
      %s303 = smul.addr %s300, 2
      %s304 = sadd.s32 %s302, %s303
      %s305 = smul.addr %s304, 8
      %s306 = scalar_lea.vmem %s6, %s305
      %s307 = smul.u32 2, %s23
      %s308 = smul.u32 2, %s23
      %p309 = scmp.lt.s32.totalorder %s22, 1
      %s310 = scalar_select %p309, %s22, 1
      %p311 = scmp.lt.s32.totalorder %s308, 1
      %s312 = scalar_select %p311, %s308, 1
      %s313 = smul.addr %s310, 2
      %s314 = sadd.s32 %s312, %s313
      %s315 = smul.addr %s314, 8
      %s316 = scalar_lea.vmem %s7, %s315
      %s317 = smul.u32 2, %s23
      %p318 = scmp.eq.s32.totalorder %s23, 0
      // Predicated region
      $region49: #{_lambda_.5} parent=47 // pred_check
        %p319 = pneg %p318
      $region50: #{_lambda_.5} parent=47 // pred_check_branch
        %321 = sbr.rel (%p319) target = $region52
      $region51: #{_lambda_.5} parent=47 // pred_region
        %vm322 = vcmask 64512
        %323 = vst.msk [vmem:[#allocation2] sm:$0xff] %vm322, 0.0
        %324 = vst.msk [vmem:[#allocation2 + $0x8] sm:$0xff] %vm322, 0.0
        %325 = vst.msk [vmem:[#allocation2 + $0x10] sm:$0xff] %vm322, 0.0
        %vm326 = vcmask 48128
        %327 = vst.msk [vmem:[#allocation3] sm:$0xff] %vm326, 0.0
        %328 = vst.msk [vmem:[#allocation3 + $0x8] sm:$0xff] %vm326, 0.0
        %329 = vst.msk [vmem:[#allocation3 + $0x10] sm:$0xff] %vm326, 0.0
      $region52: #{_lambda_.5} parent=47 // pred_fallthru
        _
      %v330 = vld [vmem:[%s306] sm:$0xff]
      %v331 = vld [vmem:[%s306 + $0x8] sm:$0xff]
      %vm332 = vcmask 64512
      %333 = vst.msk [vmem:[#allocation2 + $0x8] sm:$0xff] %vm332, %v330
      %334 = vst.msk [vmem:[#allocation2 + $0x10] sm:$0xff] %vm332, %v331
      %v335 = vld [vmem:[#allocation2 + $0x1] sm:$0xff]
      %v336 = vld [vmem:[#allocation2 + $0x9] sm:$0xff]
      %v337 = vld [vmem:[%s0] sm:$0xff]
      %v338 = vld [vmem:[#allocation2 + $0x2] sm:$0xff]
      %v339 = vld [vmem:[#allocation2 + $0xa] sm:$0xff]
      %s340 = scalar_lea.vmem %s0, 8
      %v341 = vld [vmem:[%s340] sm:$0xff]
      %v343 = vsel %vm332, %v338, 0
      %v346 = vsel %vm332, %v339, 0
      %348 = vmatprep.subr.mxu0 0.0
      %349 = vmatpush1.msra.mxu0 0.0
      %350 = vmatprep.subr.mxu0 0.0
      %351 = vmatpush1.msra.mxu0 0.0
      %352 = vmatprep.subr.mxu0 0.0
      %353 = vmatpush1.msra.mxu0 0.0
      %354 = vmatprep.subr.mxu0 0.0
      %355 = vmatpush1.msra.mxu0 0.0
      %356 = vmatprep.subr.mxu0 0.0
      %357 = vmatpush1.msra.mxu0 0.0
      %358 = vmatprep.subr.mxu0 0.0
      %359 = vmatpush1.msra.mxu0 0.0
      %360 = vmatprep.subr.mxu0 0.0
      %361 = vmatpush1.msra.mxu0 0.0
      %362 = vmatprep.subr.mxu0 0.0
      %363 = vmatpush1.msra.mxu0 0.0
      %364 = vmatprep.subr.mxu0 0.0
      %365 = vmatpush1.msra.mxu0 0.0
      %366 = vmatprep.subr.mxu0 0.0
      %367 = vmatpush1.msra.mxu0 0.0
      %368 = vmatprep.subr.mxu0 0.0
      %369 = vmatpush1.msra.mxu0 0.0
      %370 = vmatprep.subr.mxu0 0.0
      %371 = vmatpush1.msra.mxu0 0.0
      %372 = vmatprep.subr.mxu0 0.0
      %373 = vmatpush1.msra.mxu0 0.0
      %374 = vmatprep.subr.mxu0 0.0
      %375 = vmatpush1.msra.mxu0 0.0
      %376 = vmatprep.subr.mxu0 0.0
      %377 = vmatpush1.msra.mxu0 0.0
      %378 = vmatprep.subr.mxu0 0.0
      %379 = vmatpush1.msra.mxu0 %v341
      %380 = vmatprep.subr.mxu0 0.0
      %381 = vmatpush2.msra.mxu0 0.0
      %382 = vmatprep.subr.mxu0 0.0
      %383 = vmatpush2.msra.mxu0 0.0
      %384 = vmatprep.subr.mxu0 0.0
      %385 = vmatpush2.msra.mxu0 0.0
      %386 = vmatprep.subr.mxu0 0.0
      %387 = vmatpush2.msra.mxu0 0.0
      %388 = vmatprep.subr.mxu0 0.0
      %389 = vmatpush2.msra.mxu0 0.0
      %390 = vmatprep.subr.mxu0 0.0
      %391 = vmatpush2.msra.mxu0 0.0
      %392 = vmatprep.subr.mxu0 0.0
      %393 = vmatpush2.msra.mxu0 0.0
      %394 = vmatprep.subr.mxu0 0.0
      %395 = vmatpush2.msra.mxu0 0.0
      %396 = vmatprep.subr.mxu0 0.0
      %397 = vmatpush2.msra.mxu0 0.0
      %398 = vmatprep.subr.mxu0 0.0
      %399 = vmatpush2.msra.mxu0 0.0
      %400 = vmatprep.subr.mxu0 0.0
      %401 = vmatpush2.msra.mxu0 0.0
      %402 = vmatprep.subr.mxu0 0.0
      %403 = vmatpush2.msra.mxu0 0.0
      %404 = vmatprep.subr.mxu0 0.0
      %405 = vmatpush2.msra.mxu0 0.0
      %406 = vmatprep.subr.mxu0 0.0
      %407 = vmatpush2.msra.mxu0 0.0
      %408 = vmatprep.subr.mxu0 0.0
      %409 = vmatpush2.msra.mxu0 0.0
      %410 = vmatprep.subr.mxu0 0.0
      %411 = vmatpush2.msra.mxu0 0.0
      %412 = vmatprep.mubr.f32.mxu0 0.0
      %413 = vmatmul.mubr.f32.gmra.mxu0 %v343
      %v414 = vpop.f32.mrf.mxu0
      %v415 = vadd.f32 0.0, %v414
      %v416 = vpop.f32.mrf.mxu0
      %417 = vmatprep.mubr.f32.mxu0 0.0
      %418 = vmatmul.mubr.f32.gmra.mxu0 %v346
      %v419 = vpop.f32.mrf.mxu0
      %v420 = vadd.f32 0.0, %v419
      %v421 = vpop.f32.mrf.mxu0
      %422 = vdwg.mxu0
      %v424 = vsel %vm332, %v335, 0
      %v427 = vsel %vm332, %v336, 0
      %429 = vmatprep.subr.mxu0 0.0
      %430 = vmatpush1.msra.mxu0 0.0
      %431 = vmatprep.subr.mxu0 0.0
      %432 = vmatpush1.msra.mxu0 0.0
      %433 = vmatprep.subr.mxu0 0.0
      %434 = vmatpush1.msra.mxu0 0.0
      %435 = vmatprep.subr.mxu0 0.0
      %436 = vmatpush1.msra.mxu0 0.0
      %437 = vmatprep.subr.mxu0 0.0
      %438 = vmatpush1.msra.mxu0 0.0
      %439 = vmatprep.subr.mxu0 0.0
      %440 = vmatpush1.msra.mxu0 0.0
      %441 = vmatprep.subr.mxu0 0.0
      %442 = vmatpush1.msra.mxu0 0.0
      %443 = vmatprep.subr.mxu0 0.0
      %444 = vmatpush1.msra.mxu0 0.0
      %445 = vmatprep.subr.mxu0 0.0
      %446 = vmatpush1.msra.mxu0 0.0
      %447 = vmatprep.subr.mxu0 0.0
      %448 = vmatpush1.msra.mxu0 0.0
      %449 = vmatprep.subr.mxu0 0.0
      %450 = vmatpush1.msra.mxu0 0.0
      %451 = vmatprep.subr.mxu0 0.0
      %452 = vmatpush1.msra.mxu0 0.0
      %453 = vmatprep.subr.mxu0 0.0
      %454 = vmatpush1.msra.mxu0 0.0
      %455 = vmatprep.subr.mxu0 0.0
      %456 = vmatpush1.msra.mxu0 0.0
      %457 = vmatprep.subr.mxu0 0.0
      %458 = vmatpush1.msra.mxu0 0.0
      %459 = vmatprep.subr.mxu0 0.0
      %460 = vmatpush1.msra.mxu0 %v337
      %461 = vmatprep.subr.mxu0 0.0
      %462 = vmatpush2.msra.mxu0 0.0
      %463 = vmatprep.subr.mxu0 0.0
      %464 = vmatpush2.msra.mxu0 0.0
      %465 = vmatprep.subr.mxu0 0.0
      %466 = vmatpush2.msra.mxu0 0.0
      %467 = vmatprep.subr.mxu0 0.0
      %468 = vmatpush2.msra.mxu0 0.0
      %469 = vmatprep.subr.mxu0 0.0
      %470 = vmatpush2.msra.mxu0 0.0
      %471 = vmatprep.subr.mxu0 0.0
      %472 = vmatpush2.msra.mxu0 0.0
      %473 = vmatprep.subr.mxu0 0.0
      %474 = vmatpush2.msra.mxu0 0.0
      %475 = vmatprep.subr.mxu0 0.0
      %476 = vmatpush2.msra.mxu0 0.0
      %477 = vmatprep.subr.mxu0 0.0
      %478 = vmatpush2.msra.mxu0 0.0
      %479 = vmatprep.subr.mxu0 0.0
      %480 = vmatpush2.msra.mxu0 0.0
      %481 = vmatprep.subr.mxu0 0.0
      %482 = vmatpush2.msra.mxu0 0.0
      %483 = vmatprep.subr.mxu0 0.0
      %484 = vmatpush2.msra.mxu0 0.0
      %485 = vmatprep.subr.mxu0 0.0
      %486 = vmatpush2.msra.mxu0 0.0
      %487 = vmatprep.subr.mxu0 0.0
      %488 = vmatpush2.msra.mxu0 0.0
      %489 = vmatprep.subr.mxu0 0.0
      %490 = vmatpush2.msra.mxu0 0.0
      %491 = vmatprep.subr.mxu0 0.0
      %492 = vmatpush2.msra.mxu0 0.0
      %493 = vmatprep.mubr.f32.mxu0 0.0
      %494 = vmatmul.mubr.f32.gmra.mxu0 %v424
      %v495 = vpop.f32.mrf.mxu0
      %v496 = vadd.f32 %v415, %v495
      %v497 = vpop.f32.mrf.mxu0
      %498 = vmatprep.mubr.f32.mxu0 0.0
      %499 = vmatmul.mubr.f32.gmra.mxu0 %v427
      %v500 = vpop.f32.mrf.mxu0
      %v501 = vadd.f32 %v420, %v500
      %v502 = vpop.f32.mrf.mxu0
      %503 = vdwg.mxu0
      %v504 = vld [vmem:[#allocation2 + $0x3] sm:$0xff]
      %v505 = vld [vmem:[#allocation2 + $0xb] sm:$0xff]
      %s506 = scalar_lea.vmem %s0, 16
      %v507 = vld [vmem:[%s506] sm:$0xff]
      %v509 = vsel %vm332, %v504, 0
      %v512 = vsel %vm332, %v505, 0
      %514 = vmatprep.subr.mxu0 0.0
      %515 = vmatpush1.msra.mxu0 0.0
      %516 = vmatprep.subr.mxu0 0.0
      %517 = vmatpush1.msra.mxu0 0.0
      %518 = vmatprep.subr.mxu0 0.0
      %519 = vmatpush1.msra.mxu0 0.0
      %520 = vmatprep.subr.mxu0 0.0
      %521 = vmatpush1.msra.mxu0 0.0
      %522 = vmatprep.subr.mxu0 0.0
      %523 = vmatpush1.msra.mxu0 0.0
      %524 = vmatprep.subr.mxu0 0.0
      %525 = vmatpush1.msra.mxu0 0.0
      %526 = vmatprep.subr.mxu0 0.0
      %527 = vmatpush1.msra.mxu0 0.0
      %528 = vmatprep.subr.mxu0 0.0
      %529 = vmatpush1.msra.mxu0 0.0
      %530 = vmatprep.subr.mxu0 0.0
      %531 = vmatpush1.msra.mxu0 0.0
      %532 = vmatprep.subr.mxu0 0.0
      %533 = vmatpush1.msra.mxu0 0.0
      %534 = vmatprep.subr.mxu0 0.0
      %535 = vmatpush1.msra.mxu0 0.0
      %536 = vmatprep.subr.mxu0 0.0
      %537 = vmatpush1.msra.mxu0 0.0
      %538 = vmatprep.subr.mxu0 0.0
      %539 = vmatpush1.msra.mxu0 0.0
      %540 = vmatprep.subr.mxu0 0.0
      %541 = vmatpush1.msra.mxu0 0.0
      %542 = vmatprep.subr.mxu0 0.0
      %543 = vmatpush1.msra.mxu0 0.0
      %544 = vmatprep.subr.mxu0 0.0
      %545 = vmatpush1.msra.mxu0 %v507
      %546 = vmatprep.subr.mxu0 0.0
      %547 = vmatpush2.msra.mxu0 0.0
      %548 = vmatprep.subr.mxu0 0.0
      %549 = vmatpush2.msra.mxu0 0.0
      %550 = vmatprep.subr.mxu0 0.0
      %551 = vmatpush2.msra.mxu0 0.0
      %552 = vmatprep.subr.mxu0 0.0
      %553 = vmatpush2.msra.mxu0 0.0
      %554 = vmatprep.subr.mxu0 0.0
      %555 = vmatpush2.msra.mxu0 0.0
      %556 = vmatprep.subr.mxu0 0.0
      %557 = vmatpush2.msra.mxu0 0.0
      %558 = vmatprep.subr.mxu0 0.0
      %559 = vmatpush2.msra.mxu0 0.0
      %560 = vmatprep.subr.mxu0 0.0
      %561 = vmatpush2.msra.mxu0 0.0
      %562 = vmatprep.subr.mxu0 0.0
      %563 = vmatpush2.msra.mxu0 0.0
      %564 = vmatprep.subr.mxu0 0.0
      %565 = vmatpush2.msra.mxu0 0.0
      %566 = vmatprep.subr.mxu0 0.0
      %567 = vmatpush2.msra.mxu0 0.0
      %568 = vmatprep.subr.mxu0 0.0
      %569 = vmatpush2.msra.mxu0 0.0
      %570 = vmatprep.subr.mxu0 0.0
      %571 = vmatpush2.msra.mxu0 0.0
      %572 = vmatprep.subr.mxu0 0.0
      %573 = vmatpush2.msra.mxu0 0.0
      %574 = vmatprep.subr.mxu0 0.0
      %575 = vmatpush2.msra.mxu0 0.0
      %576 = vmatprep.subr.mxu0 0.0
      %577 = vmatpush2.msra.mxu0 0.0
      %578 = vmatprep.mubr.f32.mxu0 0.0
      %579 = vmatmul.mubr.f32.gmra.mxu0 %v509
      %v580 = vpop.f32.mrf.mxu0
      %v581 = vadd.f32 0.0, %v580
      %v582 = vpop.f32.mrf.mxu0
      %583 = vmatprep.mubr.f32.mxu0 0.0
      %584 = vmatmul.mubr.f32.gmra.mxu0 %v512
      %v585 = vpop.f32.mrf.mxu0
      %v586 = vadd.f32 0.0, %v585
      %v587 = vpop.f32.mrf.mxu0
      %588 = vdwg.mxu0
      %v589 = vadd.f32 %v496, %v581
      %v590 = vadd.f32 %v501, %v586
      %v591 = vld [vmem:[#allocation2 + $0x4] sm:$0xff]
      %v592 = vld [vmem:[#allocation2 + $0xc] sm:$0xff]
      %s593 = scalar_lea.vmem %s0, 24
      %v594 = vld [vmem:[%s593] sm:$0xff]
      %v596 = vsel %vm332, %v591, 0
      %v599 = vsel %vm332, %v592, 0
      %601 = vmatprep.subr.mxu0 0.0
      %602 = vmatpush1.msra.mxu0 0.0
      %603 = vmatprep.subr.mxu0 0.0
      %604 = vmatpush1.msra.mxu0 0.0
      %605 = vmatprep.subr.mxu0 0.0
      %606 = vmatpush1.msra.mxu0 0.0
      %607 = vmatprep.subr.mxu0 0.0
      %608 = vmatpush1.msra.mxu0 0.0
      %609 = vmatprep.subr.mxu0 0.0
      %610 = vmatpush1.msra.mxu0 0.0
      %611 = vmatprep.subr.mxu0 0.0
      %612 = vmatpush1.msra.mxu0 0.0
      %613 = vmatprep.subr.mxu0 0.0
      %614 = vmatpush1.msra.mxu0 0.0
      %615 = vmatprep.subr.mxu0 0.0
      %616 = vmatpush1.msra.mxu0 0.0
      %617 = vmatprep.subr.mxu0 0.0
      %618 = vmatpush1.msra.mxu0 0.0
      %619 = vmatprep.subr.mxu0 0.0
      %620 = vmatpush1.msra.mxu0 0.0
      %621 = vmatprep.subr.mxu0 0.0
      %622 = vmatpush1.msra.mxu0 0.0
      %623 = vmatprep.subr.mxu0 0.0
      %624 = vmatpush1.msra.mxu0 0.0
      %625 = vmatprep.subr.mxu0 0.0
      %626 = vmatpush1.msra.mxu0 0.0
      %627 = vmatprep.subr.mxu0 0.0
      %628 = vmatpush1.msra.mxu0 0.0
      %629 = vmatprep.subr.mxu0 0.0
      %630 = vmatpush1.msra.mxu0 0.0
      %631 = vmatprep.subr.mxu0 0.0
      %632 = vmatpush1.msra.mxu0 %v594
      %633 = vmatprep.subr.mxu0 0.0
      %634 = vmatpush2.msra.mxu0 0.0
      %635 = vmatprep.subr.mxu0 0.0
      %636 = vmatpush2.msra.mxu0 0.0
      %637 = vmatprep.subr.mxu0 0.0
      %638 = vmatpush2.msra.mxu0 0.0
      %639 = vmatprep.subr.mxu0 0.0
      %640 = vmatpush2.msra.mxu0 0.0
      %641 = vmatprep.subr.mxu0 0.0
      %642 = vmatpush2.msra.mxu0 0.0
      %643 = vmatprep.subr.mxu0 0.0
      %644 = vmatpush2.msra.mxu0 0.0
      %645 = vmatprep.subr.mxu0 0.0
      %646 = vmatpush2.msra.mxu0 0.0
      %647 = vmatprep.subr.mxu0 0.0
      %648 = vmatpush2.msra.mxu0 0.0
      %649 = vmatprep.subr.mxu0 0.0
      %650 = vmatpush2.msra.mxu0 0.0
      %651 = vmatprep.subr.mxu0 0.0
      %652 = vmatpush2.msra.mxu0 0.0
      %653 = vmatprep.subr.mxu0 0.0
      %654 = vmatpush2.msra.mxu0 0.0
      %655 = vmatprep.subr.mxu0 0.0
      %656 = vmatpush2.msra.mxu0 0.0
      %657 = vmatprep.subr.mxu0 0.0
      %658 = vmatpush2.msra.mxu0 0.0
      %659 = vmatprep.subr.mxu0 0.0
      %660 = vmatpush2.msra.mxu0 0.0
      %661 = vmatprep.subr.mxu0 0.0
      %662 = vmatpush2.msra.mxu0 0.0
      %663 = vmatprep.subr.mxu0 0.0
      %664 = vmatpush2.msra.mxu0 0.0
      %665 = vmatprep.mubr.f32.mxu0 0.0
      %666 = vmatmul.mubr.f32.gmra.mxu0 %v596
      %v667 = vpop.f32.mrf.mxu0
      %v668 = vadd.f32 0.0, %v667
      %v669 = vpop.f32.mrf.mxu0
      %670 = vmatprep.mubr.f32.mxu0 0.0
      %671 = vmatmul.mubr.f32.gmra.mxu0 %v599
      %v672 = vpop.f32.mrf.mxu0
      %v673 = vadd.f32 0.0, %v672
      %v674 = vpop.f32.mrf.mxu0
      %675 = vdwg.mxu0
      %v676 = vadd.f32 %v589, %v668
      %v677 = vadd.f32 %v590, %v673
      %v678 = vld [vmem:[#allocation2 + $0x5] sm:$0xff]
      %v679 = vld [vmem:[#allocation2 + $0xd] sm:$0xff]
      %s680 = scalar_lea.vmem %s0, 32
      %v681 = vld [vmem:[%s680] sm:$0xff]
      %v683 = vsel %vm332, %v678, 0
      %v686 = vsel %vm332, %v679, 0
      %688 = vmatprep.subr.mxu0 0.0
      %689 = vmatpush1.msra.mxu0 0.0
      %690 = vmatprep.subr.mxu0 0.0
      %691 = vmatpush1.msra.mxu0 0.0
      %692 = vmatprep.subr.mxu0 0.0
      %693 = vmatpush1.msra.mxu0 0.0
      %694 = vmatprep.subr.mxu0 0.0
      %695 = vmatpush1.msra.mxu0 0.0
      %696 = vmatprep.subr.mxu0 0.0
      %697 = vmatpush1.msra.mxu0 0.0
      %698 = vmatprep.subr.mxu0 0.0
      %699 = vmatpush1.msra.mxu0 0.0
      %700 = vmatprep.subr.mxu0 0.0
      %701 = vmatpush1.msra.mxu0 0.0
      %702 = vmatprep.subr.mxu0 0.0
      %703 = vmatpush1.msra.mxu0 0.0
      %704 = vmatprep.subr.mxu0 0.0
      %705 = vmatpush1.msra.mxu0 0.0
      %706 = vmatprep.subr.mxu0 0.0
      %707 = vmatpush1.msra.mxu0 0.0
      %708 = vmatprep.subr.mxu0 0.0
      %709 = vmatpush1.msra.mxu0 0.0
      %710 = vmatprep.subr.mxu0 0.0
      %711 = vmatpush1.msra.mxu0 0.0
      %712 = vmatprep.subr.mxu0 0.0
      %713 = vmatpush1.msra.mxu0 0.0
      %714 = vmatprep.subr.mxu0 0.0
      %715 = vmatpush1.msra.mxu0 0.0
      %716 = vmatprep.subr.mxu0 0.0
      %717 = vmatpush1.msra.mxu0 0.0
      %718 = vmatprep.subr.mxu0 0.0
      %719 = vmatpush1.msra.mxu0 %v681
      %720 = vmatprep.subr.mxu0 0.0
      %721 = vmatpush2.msra.mxu0 0.0
      %722 = vmatprep.subr.mxu0 0.0
      %723 = vmatpush2.msra.mxu0 0.0
      %724 = vmatprep.subr.mxu0 0.0
      %725 = vmatpush2.msra.mxu0 0.0
      %726 = vmatprep.subr.mxu0 0.0
      %727 = vmatpush2.msra.mxu0 0.0
      %728 = vmatprep.subr.mxu0 0.0
      %729 = vmatpush2.msra.mxu0 0.0
      %730 = vmatprep.subr.mxu0 0.0
      %731 = vmatpush2.msra.mxu0 0.0
      %732 = vmatprep.subr.mxu0 0.0
      %733 = vmatpush2.msra.mxu0 0.0
      %734 = vmatprep.subr.mxu0 0.0
      %735 = vmatpush2.msra.mxu0 0.0
      %736 = vmatprep.subr.mxu0 0.0
      %737 = vmatpush2.msra.mxu0 0.0
      %738 = vmatprep.subr.mxu0 0.0
      %739 = vmatpush2.msra.mxu0 0.0
      %740 = vmatprep.subr.mxu0 0.0
      %741 = vmatpush2.msra.mxu0 0.0
      %742 = vmatprep.subr.mxu0 0.0
      %743 = vmatpush2.msra.mxu0 0.0
      %744 = vmatprep.subr.mxu0 0.0
      %745 = vmatpush2.msra.mxu0 0.0
      %746 = vmatprep.subr.mxu0 0.0
      %747 = vmatpush2.msra.mxu0 0.0
      %748 = vmatprep.subr.mxu0 0.0
      %749 = vmatpush2.msra.mxu0 0.0
      %750 = vmatprep.subr.mxu0 0.0
      %751 = vmatpush2.msra.mxu0 0.0
      %752 = vmatprep.mubr.f32.mxu0 0.0
      %753 = vmatmul.mubr.f32.gmra.mxu0 %v683
      %v754 = vpop.f32.mrf.mxu0
      %v755 = vadd.f32 0.0, %v754
      %v756 = vpop.f32.mrf.mxu0
      %757 = vmatprep.mubr.f32.mxu0 0.0
      %758 = vmatmul.mubr.f32.gmra.mxu0 %v686
      %v759 = vpop.f32.mrf.mxu0
      %v760 = vadd.f32 0.0, %v759
      %v761 = vpop.f32.mrf.mxu0
      %762 = vdwg.mxu0
      %v763 = vadd.f32 %v676, %v755
      %v764 = vadd.f32 %v677, %v760
      %v765 = vld [vmem:[#allocation2 + $0x6] sm:$0xff]
      %v766 = vld [vmem:[#allocation2 + $0xe] sm:$0xff]
      %s767 = scalar_lea.vmem %s0, 40
      %v768 = vld [vmem:[%s767] sm:$0xff]
      %v770 = vsel %vm332, %v765, 0
      %v773 = vsel %vm332, %v766, 0
      %775 = vmatprep.subr.mxu0 0.0
      %776 = vmatpush1.msra.mxu0 0.0
      %777 = vmatprep.subr.mxu0 0.0
      %778 = vmatpush1.msra.mxu0 0.0
      %779 = vmatprep.subr.mxu0 0.0
      %780 = vmatpush1.msra.mxu0 0.0
      %781 = vmatprep.subr.mxu0 0.0
      %782 = vmatpush1.msra.mxu0 0.0
      %783 = vmatprep.subr.mxu0 0.0
      %784 = vmatpush1.msra.mxu0 0.0
      %785 = vmatprep.subr.mxu0 0.0
      %786 = vmatpush1.msra.mxu0 0.0
      %787 = vmatprep.subr.mxu0 0.0
      %788 = vmatpush1.msra.mxu0 0.0
      %789 = vmatprep.subr.mxu0 0.0
      %790 = vmatpush1.msra.mxu0 0.0
      %791 = vmatprep.subr.mxu0 0.0
      %792 = vmatpush1.msra.mxu0 0.0
      %793 = vmatprep.subr.mxu0 0.0
      %794 = vmatpush1.msra.mxu0 0.0
      %795 = vmatprep.subr.mxu0 0.0
      %796 = vmatpush1.msra.mxu0 0.0
      %797 = vmatprep.subr.mxu0 0.0
      %798 = vmatpush1.msra.mxu0 0.0
      %799 = vmatprep.subr.mxu0 0.0
      %800 = vmatpush1.msra.mxu0 0.0
      %801 = vmatprep.subr.mxu0 0.0
      %802 = vmatpush1.msra.mxu0 0.0
      %803 = vmatprep.subr.mxu0 0.0
      %804 = vmatpush1.msra.mxu0 0.0
      %805 = vmatprep.subr.mxu0 0.0
      %806 = vmatpush1.msra.mxu0 %v768
      %807 = vmatprep.subr.mxu0 0.0
      %808 = vmatpush2.msra.mxu0 0.0
      %809 = vmatprep.subr.mxu0 0.0
      %810 = vmatpush2.msra.mxu0 0.0
      %811 = vmatprep.subr.mxu0 0.0
      %812 = vmatpush2.msra.mxu0 0.0
      %813 = vmatprep.subr.mxu0 0.0
      %814 = vmatpush2.msra.mxu0 0.0
      %815 = vmatprep.subr.mxu0 0.0
      %816 = vmatpush2.msra.mxu0 0.0
      %817 = vmatprep.subr.mxu0 0.0
      %818 = vmatpush2.msra.mxu0 0.0
      %819 = vmatprep.subr.mxu0 0.0
      %820 = vmatpush2.msra.mxu0 0.0
      %821 = vmatprep.subr.mxu0 0.0
      %822 = vmatpush2.msra.mxu0 0.0
      %823 = vmatprep.subr.mxu0 0.0
      %824 = vmatpush2.msra.mxu0 0.0
      %825 = vmatprep.subr.mxu0 0.0
      %826 = vmatpush2.msra.mxu0 0.0
      %827 = vmatprep.subr.mxu0 0.0
      %828 = vmatpush2.msra.mxu0 0.0
      %829 = vmatprep.subr.mxu0 0.0
      %830 = vmatpush2.msra.mxu0 0.0
      %831 = vmatprep.subr.mxu0 0.0
      %832 = vmatpush2.msra.mxu0 0.0
      %833 = vmatprep.subr.mxu0 0.0
      %834 = vmatpush2.msra.mxu0 0.0
      %835 = vmatprep.subr.mxu0 0.0
      %836 = vmatpush2.msra.mxu0 0.0
      %837 = vmatprep.subr.mxu0 0.0
      %838 = vmatpush2.msra.mxu0 0.0
      %839 = vmatprep.mubr.f32.mxu0 0.0
      %840 = vmatmul.mubr.f32.gmra.mxu0 %v770
      %v841 = vpop.f32.mrf.mxu0
      %v842 = vadd.f32 0.0, %v841
      %v843 = vpop.f32.mrf.mxu0
      %844 = vmatprep.mubr.f32.mxu0 0.0
      %845 = vmatmul.mubr.f32.gmra.mxu0 %v773
      %v846 = vpop.f32.mrf.mxu0
      %v847 = vadd.f32 0.0, %v846
      %v848 = vpop.f32.mrf.mxu0
      %849 = vdwg.mxu0
      %v850 = vadd.f32 %v763, %v842
      %v851 = vadd.f32 %v764, %v847
      %v852 = vld [vmem:[#allocation2 + $0x7] sm:$0xff]
      %v853 = vld [vmem:[#allocation2 + $0xf] sm:$0xff]
      %s854 = scalar_lea.vmem %s0, 48
      %v855 = vld [vmem:[%s854] sm:$0xff]
      %v857 = vsel %vm332, %v852, 0
      %v860 = vsel %vm332, %v853, 0
      %862 = vmatprep.subr.mxu0 0.0
      %863 = vmatpush1.msra.mxu0 0.0
      %864 = vmatprep.subr.mxu0 0.0
      %865 = vmatpush1.msra.mxu0 0.0
      %866 = vmatprep.subr.mxu0 0.0
      %867 = vmatpush1.msra.mxu0 0.0
      %868 = vmatprep.subr.mxu0 0.0
      %869 = vmatpush1.msra.mxu0 0.0
      %870 = vmatprep.subr.mxu0 0.0
      %871 = vmatpush1.msra.mxu0 0.0
      %872 = vmatprep.subr.mxu0 0.0
      %873 = vmatpush1.msra.mxu0 0.0
      %874 = vmatprep.subr.mxu0 0.0
      %875 = vmatpush1.msra.mxu0 0.0
      %876 = vmatprep.subr.mxu0 0.0
      %877 = vmatpush1.msra.mxu0 0.0
      %878 = vmatprep.subr.mxu0 0.0
      %879 = vmatpush1.msra.mxu0 0.0
      %880 = vmatprep.subr.mxu0 0.0
      %881 = vmatpush1.msra.mxu0 0.0
      %882 = vmatprep.subr.mxu0 0.0
      %883 = vmatpush1.msra.mxu0 0.0
      %884 = vmatprep.subr.mxu0 0.0
      %885 = vmatpush1.msra.mxu0 0.0
      %886 = vmatprep.subr.mxu0 0.0
      %887 = vmatpush1.msra.mxu0 0.0
      %888 = vmatprep.subr.mxu0 0.0
      %889 = vmatpush1.msra.mxu0 0.0
      %890 = vmatprep.subr.mxu0 0.0
      %891 = vmatpush1.msra.mxu0 0.0
      %892 = vmatprep.subr.mxu0 0.0
      %893 = vmatpush1.msra.mxu0 %v855
      %894 = vmatprep.subr.mxu0 0.0
      %895 = vmatpush2.msra.mxu0 0.0
      %896 = vmatprep.subr.mxu0 0.0
      %897 = vmatpush2.msra.mxu0 0.0
      %898 = vmatprep.subr.mxu0 0.0
      %899 = vmatpush2.msra.mxu0 0.0
      %900 = vmatprep.subr.mxu0 0.0
      %901 = vmatpush2.msra.mxu0 0.0
      %902 = vmatprep.subr.mxu0 0.0
      %903 = vmatpush2.msra.mxu0 0.0
      %904 = vmatprep.subr.mxu0 0.0
      %905 = vmatpush2.msra.mxu0 0.0
      %906 = vmatprep.subr.mxu0 0.0
      %907 = vmatpush2.msra.mxu0 0.0
      %908 = vmatprep.subr.mxu0 0.0
      %909 = vmatpush2.msra.mxu0 0.0
      %910 = vmatprep.subr.mxu0 0.0
      %911 = vmatpush2.msra.mxu0 0.0
      %912 = vmatprep.subr.mxu0 0.0
      %913 = vmatpush2.msra.mxu0 0.0
      %914 = vmatprep.subr.mxu0 0.0
      %915 = vmatpush2.msra.mxu0 0.0
      %916 = vmatprep.subr.mxu0 0.0
      %917 = vmatpush2.msra.mxu0 0.0
      %918 = vmatprep.subr.mxu0 0.0
      %919 = vmatpush2.msra.mxu0 0.0
      %920 = vmatprep.subr.mxu0 0.0
      %921 = vmatpush2.msra.mxu0 0.0
      %922 = vmatprep.subr.mxu0 0.0
      %923 = vmatpush2.msra.mxu0 0.0
      %924 = vmatprep.subr.mxu0 0.0
      %925 = vmatpush2.msra.mxu0 0.0
      %926 = vmatprep.mubr.f32.mxu0 0.0
      %927 = vmatmul.mubr.f32.gmra.mxu0 %v857
      %v928 = vpop.f32.mrf.mxu0
      %v929 = vadd.f32 0.0, %v928
      %v930 = vpop.f32.mrf.mxu0
      %931 = vmatprep.mubr.f32.mxu0 0.0
      %932 = vmatmul.mubr.f32.gmra.mxu0 %v860
      %v933 = vpop.f32.mrf.mxu0
      %v934 = vadd.f32 0.0, %v933
      %v935 = vpop.f32.mrf.mxu0
      %936 = vdwg.mxu0
      %v937 = vadd.f32 %v850, %v929
      %v938 = vadd.f32 %v851, %v934
      %v939 = vld [vmem:[#allocation2 + $0x8] sm:$0xff]
      %v940 = vld [vmem:[#allocation2 + $0x10] sm:$0xff]
      %s941 = scalar_lea.vmem %s0, 56
      %v942 = vld [vmem:[%s941] sm:$0xff]
      %v944 = vsel %vm332, %v939, 0
      %v947 = vsel %vm332, %v940, 0
      %949 = vmatprep.subr.mxu0 0.0
      %950 = vmatpush1.msra.mxu0 0.0
      %951 = vmatprep.subr.mxu0 0.0
      %952 = vmatpush1.msra.mxu0 0.0
      %953 = vmatprep.subr.mxu0 0.0
      %954 = vmatpush1.msra.mxu0 0.0
      %955 = vmatprep.subr.mxu0 0.0
      %956 = vmatpush1.msra.mxu0 0.0
      %957 = vmatprep.subr.mxu0 0.0
      %958 = vmatpush1.msra.mxu0 0.0
      %959 = vmatprep.subr.mxu0 0.0
      %960 = vmatpush1.msra.mxu0 0.0
      %961 = vmatprep.subr.mxu0 0.0
      %962 = vmatpush1.msra.mxu0 0.0
      %963 = vmatprep.subr.mxu0 0.0
      %964 = vmatpush1.msra.mxu0 0.0
      %965 = vmatprep.subr.mxu0 0.0
      %966 = vmatpush1.msra.mxu0 0.0
      %967 = vmatprep.subr.mxu0 0.0
      %968 = vmatpush1.msra.mxu0 0.0
      %969 = vmatprep.subr.mxu0 0.0
      %970 = vmatpush1.msra.mxu0 0.0
      %971 = vmatprep.subr.mxu0 0.0
      %972 = vmatpush1.msra.mxu0 0.0
      %973 = vmatprep.subr.mxu0 0.0
      %974 = vmatpush1.msra.mxu0 0.0
      %975 = vmatprep.subr.mxu0 0.0
      %976 = vmatpush1.msra.mxu0 0.0
      %977 = vmatprep.subr.mxu0 0.0
      %978 = vmatpush1.msra.mxu0 0.0
      %979 = vmatprep.subr.mxu0 0.0
      %980 = vmatpush1.msra.mxu0 %v942
      %981 = vmatprep.subr.mxu0 0.0
      %982 = vmatpush2.msra.mxu0 0.0
      %983 = vmatprep.subr.mxu0 0.0
      %984 = vmatpush2.msra.mxu0 0.0
      %985 = vmatprep.subr.mxu0 0.0
      %986 = vmatpush2.msra.mxu0 0.0
      %987 = vmatprep.subr.mxu0 0.0
      %988 = vmatpush2.msra.mxu0 0.0
      %989 = vmatprep.subr.mxu0 0.0
      %990 = vmatpush2.msra.mxu0 0.0
      %991 = vmatprep.subr.mxu0 0.0
      %992 = vmatpush2.msra.mxu0 0.0
      %993 = vmatprep.subr.mxu0 0.0
      %994 = vmatpush2.msra.mxu0 0.0
      %995 = vmatprep.subr.mxu0 0.0
      %996 = vmatpush2.msra.mxu0 0.0
      %997 = vmatprep.subr.mxu0 0.0
      %998 = vmatpush2.msra.mxu0 0.0
      %999 = vmatprep.subr.mxu0 0.0
      %1000 = vmatpush2.msra.mxu0 0.0
      %1001 = vmatprep.subr.mxu0 0.0
      %1002 = vmatpush2.msra.mxu0 0.0
      %1003 = vmatprep.subr.mxu0 0.0
      %1004 = vmatpush2.msra.mxu0 0.0
      %1005 = vmatprep.subr.mxu0 0.0
      %1006 = vmatpush2.msra.mxu0 0.0
      %1007 = vmatprep.subr.mxu0 0.0
      %1008 = vmatpush2.msra.mxu0 0.0
      %1009 = vmatprep.subr.mxu0 0.0
      %1010 = vmatpush2.msra.mxu0 0.0
      %1011 = vmatprep.subr.mxu0 0.0
      %1012 = vmatpush2.msra.mxu0 0.0
      %1013 = vmatprep.mubr.f32.mxu0 0.0
      %1014 = vmatmul.mubr.f32.gmra.mxu0 %v944
      %v1015 = vpop.f32.mrf.mxu0
      %v1016 = vadd.f32 0.0, %v1015
      %v1017 = vpop.f32.mrf.mxu0
      %1018 = vmatprep.mubr.f32.mxu0 0.0
      %1019 = vmatmul.mubr.f32.gmra.mxu0 %v947
      %v1020 = vpop.f32.mrf.mxu0
      %v1021 = vadd.f32 0.0, %v1020
      %v1022 = vpop.f32.mrf.mxu0
      %1023 = vdwg.mxu0
      %v1024 = vadd.f32 %v937, %v1016
      %v1025 = vadd.f32 %v938, %v1021
      %v1026 = vld [vmem:[%s1] sm:$0x1]
      %v1028 = vlaneseq
      %v1029 = vshrl.u32 %v1028, 7
      %v1030 = vsub.s32 0, %v1029
      %v1031 = vrot.slane %v1026, %v1030
      %v1033 = vadd.f32 %v1024, %v1031
      %v1034 = vadd.f32 %v1025, %v1031
      %v1035 = vmax.f32 %v1033, 0.0
      %v1036 = vmax.f32 %v1034, 0.0
      %vm1037 = vcmask 48128
      %1038 = vst.msk [vmem:[#allocation3 + $0x8] sm:$0xff] %vm1037, %v1035
      %1039 = vst.msk [vmem:[#allocation3 + $0x10] sm:$0xff] %vm1037, %v1036
      %v1040 = vld [vmem:[#allocation3 + $0x1] sm:$0xff]
      %v1041 = vld [vmem:[#allocation3 + $0x9] sm:$0xff]
      %v1042 = vld [vmem:[%s2] sm:$0x3f]
      %v1043 = vld [vmem:[#allocation3 + $0x2] sm:$0xff]
      %v1044 = vld [vmem:[#allocation3 + $0xa] sm:$0xff]
      %s1045 = scalar_lea.vmem %s2, 8
      %v1046 = vld [vmem:[%s1045] sm:$0x3f]
      %v1048 = vsel %vm1037, %v1043, 0
      %v1051 = vsel %vm1037, %v1044, 0
      %vm1053 = vcmask 1045504
      %v1055 = vsel %vm1053, %v1046, 0
      %1057 = vmatprep.subr.mxu0 0.0
      %1058 = vmatpush1.msra.mxu0 0.0
      %1059 = vmatprep.subr.mxu0 0.0
      %1060 = vmatpush1.msra.mxu0 0.0
      %1061 = vmatprep.subr.mxu0 0.0
      %1062 = vmatpush1.msra.mxu0 0.0
      %1063 = vmatprep.subr.mxu0 0.0
      %1064 = vmatpush1.msra.mxu0 0.0
      %1065 = vmatprep.subr.mxu0 0.0
      %1066 = vmatpush1.msra.mxu0 0.0
      %1067 = vmatprep.subr.mxu0 0.0
      %1068 = vmatpush1.msra.mxu0 0.0
      %1069 = vmatprep.subr.mxu0 0.0
      %1070 = vmatpush1.msra.mxu0 0.0
      %1071 = vmatprep.subr.mxu0 0.0
      %1072 = vmatpush1.msra.mxu0 0.0
      %1073 = vmatprep.subr.mxu0 0.0
      %1074 = vmatpush1.msra.mxu0 0.0
      %1075 = vmatprep.subr.mxu0 0.0
      %1076 = vmatpush1.msra.mxu0 0.0
      %1077 = vmatprep.subr.mxu0 0.0
      %1078 = vmatpush1.msra.mxu0 0.0
      %1079 = vmatprep.subr.mxu0 0.0
      %1080 = vmatpush1.msra.mxu0 0.0
      %1081 = vmatprep.subr.mxu0 0.0
      %1082 = vmatpush1.msra.mxu0 0.0
      %1083 = vmatprep.subr.mxu0 0.0
      %1084 = vmatpush1.msra.mxu0 0.0
      %1085 = vmatprep.subr.mxu0 0.0
      %1086 = vmatpush1.msra.mxu0 0.0
      %1087 = vmatprep.subr.mxu0 0.0
      %1088 = vmatpush1.msra.mxu0 %v1055
      %1089 = vmatprep.subr.mxu0 0.0
      %1090 = vmatpush2.msra.mxu0 0.0
      %1091 = vmatprep.subr.mxu0 0.0
      %1092 = vmatpush2.msra.mxu0 0.0
      %1093 = vmatprep.subr.mxu0 0.0
      %1094 = vmatpush2.msra.mxu0 0.0
      %1095 = vmatprep.subr.mxu0 0.0
      %1096 = vmatpush2.msra.mxu0 0.0
      %1097 = vmatprep.subr.mxu0 0.0
      %1098 = vmatpush2.msra.mxu0 0.0
      %1099 = vmatprep.subr.mxu0 0.0
      %1100 = vmatpush2.msra.mxu0 0.0
      %1101 = vmatprep.subr.mxu0 0.0
      %1102 = vmatpush2.msra.mxu0 0.0
      %1103 = vmatprep.subr.mxu0 0.0
      %1104 = vmatpush2.msra.mxu0 0.0
      %1105 = vmatprep.subr.mxu0 0.0
      %1106 = vmatpush2.msra.mxu0 0.0
      %1107 = vmatprep.subr.mxu0 0.0
      %1108 = vmatpush2.msra.mxu0 0.0
      %1109 = vmatprep.subr.mxu0 0.0
      %1110 = vmatpush2.msra.mxu0 0.0
      %1111 = vmatprep.subr.mxu0 0.0
      %1112 = vmatpush2.msra.mxu0 0.0
      %1113 = vmatprep.subr.mxu0 0.0
      %1114 = vmatpush2.msra.mxu0 0.0
      %1115 = vmatprep.subr.mxu0 0.0
      %1116 = vmatpush2.msra.mxu0 0.0
      %1117 = vmatprep.subr.mxu0 0.0
      %1118 = vmatpush2.msra.mxu0 0.0
      %1119 = vmatprep.subr.mxu0 0.0
      %1120 = vmatpush2.msra.mxu0 0.0
      %1121 = vmatprep.mubr.f32.mxu0 0.0
      %1122 = vmatmul.mubr.f32.gmra.mxu0 %v1048
      %v1123 = vpop.f32.mrf.mxu0
      %v1124 = vadd.f32 0.0, %v1123
      %v1125 = vpop.f32.mrf.mxu0
      %1126 = vmatprep.mubr.f32.mxu0 0.0
      %1127 = vmatmul.mubr.f32.gmra.mxu0 %v1051
      %v1128 = vpop.f32.mrf.mxu0
      %v1129 = vadd.f32 0.0, %v1128
      %v1130 = vpop.f32.mrf.mxu0
      %1131 = vdwg.mxu0
      %v1133 = vsel %vm1037, %v1040, 0
      %v1136 = vsel %vm1037, %v1041, 0
      %v1139 = vsel %vm1053, %v1042, 0
      %1141 = vmatprep.subr.mxu0 0.0
      %1142 = vmatpush1.msra.mxu0 0.0
      %1143 = vmatprep.subr.mxu0 0.0
      %1144 = vmatpush1.msra.mxu0 0.0
      %1145 = vmatprep.subr.mxu0 0.0
      %1146 = vmatpush1.msra.mxu0 0.0
      %1147 = vmatprep.subr.mxu0 0.0
      %1148 = vmatpush1.msra.mxu0 0.0
      %1149 = vmatprep.subr.mxu0 0.0
      %1150 = vmatpush1.msra.mxu0 0.0
      %1151 = vmatprep.subr.mxu0 0.0
      %1152 = vmatpush1.msra.mxu0 0.0
      %1153 = vmatprep.subr.mxu0 0.0
      %1154 = vmatpush1.msra.mxu0 0.0
      %1155 = vmatprep.subr.mxu0 0.0
      %1156 = vmatpush1.msra.mxu0 0.0
      %1157 = vmatprep.subr.mxu0 0.0
      %1158 = vmatpush1.msra.mxu0 0.0
      %1159 = vmatprep.subr.mxu0 0.0
      %1160 = vmatpush1.msra.mxu0 0.0
      %1161 = vmatprep.subr.mxu0 0.0
      %1162 = vmatpush1.msra.mxu0 0.0
      %1163 = vmatprep.subr.mxu0 0.0
      %1164 = vmatpush1.msra.mxu0 0.0
      %1165 = vmatprep.subr.mxu0 0.0
      %1166 = vmatpush1.msra.mxu0 0.0
      %1167 = vmatprep.subr.mxu0 0.0
      %1168 = vmatpush1.msra.mxu0 0.0
      %1169 = vmatprep.subr.mxu0 0.0
      %1170 = vmatpush1.msra.mxu0 0.0
      %1171 = vmatprep.subr.mxu0 0.0
      %1172 = vmatpush1.msra.mxu0 %v1139
      %1173 = vmatprep.subr.mxu0 0.0
      %1174 = vmatpush2.msra.mxu0 0.0
      %1175 = vmatprep.subr.mxu0 0.0
      %1176 = vmatpush2.msra.mxu0 0.0
      %1177 = vmatprep.subr.mxu0 0.0
      %1178 = vmatpush2.msra.mxu0 0.0
      %1179 = vmatprep.subr.mxu0 0.0
      %1180 = vmatpush2.msra.mxu0 0.0
      %1181 = vmatprep.subr.mxu0 0.0
      %1182 = vmatpush2.msra.mxu0 0.0
      %1183 = vmatprep.subr.mxu0 0.0
      %1184 = vmatpush2.msra.mxu0 0.0
      %1185 = vmatprep.subr.mxu0 0.0
      %1186 = vmatpush2.msra.mxu0 0.0
      %1187 = vmatprep.subr.mxu0 0.0
      %1188 = vmatpush2.msra.mxu0 0.0
      %1189 = vmatprep.subr.mxu0 0.0
      %1190 = vmatpush2.msra.mxu0 0.0
      %1191 = vmatprep.subr.mxu0 0.0
      %1192 = vmatpush2.msra.mxu0 0.0
      %1193 = vmatprep.subr.mxu0 0.0
      %1194 = vmatpush2.msra.mxu0 0.0
      %1195 = vmatprep.subr.mxu0 0.0
      %1196 = vmatpush2.msra.mxu0 0.0
      %1197 = vmatprep.subr.mxu0 0.0
      %1198 = vmatpush2.msra.mxu0 0.0
      %1199 = vmatprep.subr.mxu0 0.0
      %1200 = vmatpush2.msra.mxu0 0.0
      %1201 = vmatprep.subr.mxu0 0.0
      %1202 = vmatpush2.msra.mxu0 0.0
      %1203 = vmatprep.subr.mxu0 0.0
      %1204 = vmatpush2.msra.mxu0 0.0
      %1205 = vmatprep.mubr.f32.mxu0 0.0
      %1206 = vmatmul.mubr.f32.gmra.mxu0 %v1133
      %v1207 = vpop.f32.mrf.mxu0
      %v1208 = vadd.f32 %v1124, %v1207
      %v1209 = vpop.f32.mrf.mxu0
      %1210 = vmatprep.mubr.f32.mxu0 0.0
      %1211 = vmatmul.mubr.f32.gmra.mxu0 %v1136
      %v1212 = vpop.f32.mrf.mxu0
      %v1213 = vadd.f32 %v1129, %v1212
      %v1214 = vpop.f32.mrf.mxu0
      %1215 = vdwg.mxu0
      %v1216 = vld [vmem:[#allocation3 + $0x3] sm:$0xff]
      %v1217 = vld [vmem:[#allocation3 + $0xb] sm:$0xff]
      %s1218 = scalar_lea.vmem %s2, 16
      %v1219 = vld [vmem:[%s1218] sm:$0x3f]
      %v1221 = vsel %vm1037, %v1216, 0
      %v1224 = vsel %vm1037, %v1217, 0
      %v1227 = vsel %vm1053, %v1219, 0
      %1229 = vmatprep.subr.mxu0 0.0
      %1230 = vmatpush1.msra.mxu0 0.0
      %1231 = vmatprep.subr.mxu0 0.0
      %1232 = vmatpush1.msra.mxu0 0.0
      %1233 = vmatprep.subr.mxu0 0.0
      %1234 = vmatpush1.msra.mxu0 0.0
      %1235 = vmatprep.subr.mxu0 0.0
      %1236 = vmatpush1.msra.mxu0 0.0
      %1237 = vmatprep.subr.mxu0 0.0
      %1238 = vmatpush1.msra.mxu0 0.0
      %1239 = vmatprep.subr.mxu0 0.0
      %1240 = vmatpush1.msra.mxu0 0.0
      %1241 = vmatprep.subr.mxu0 0.0
      %1242 = vmatpush1.msra.mxu0 0.0
      %1243 = vmatprep.subr.mxu0 0.0
      %1244 = vmatpush1.msra.mxu0 0.0
      %1245 = vmatprep.subr.mxu0 0.0
      %1246 = vmatpush1.msra.mxu0 0.0
      %1247 = vmatprep.subr.mxu0 0.0
      %1248 = vmatpush1.msra.mxu0 0.0
      %1249 = vmatprep.subr.mxu0 0.0
      %1250 = vmatpush1.msra.mxu0 0.0
      %1251 = vmatprep.subr.mxu0 0.0
      %1252 = vmatpush1.msra.mxu0 0.0
      %1253 = vmatprep.subr.mxu0 0.0
      %1254 = vmatpush1.msra.mxu0 0.0
      %1255 = vmatprep.subr.mxu0 0.0
      %1256 = vmatpush1.msra.mxu0 0.0
      %1257 = vmatprep.subr.mxu0 0.0
      %1258 = vmatpush1.msra.mxu0 0.0
      %1259 = vmatprep.subr.mxu0 0.0
      %1260 = vmatpush1.msra.mxu0 %v1227
      %1261 = vmatprep.subr.mxu0 0.0
      %1262 = vmatpush2.msra.mxu0 0.0
      %1263 = vmatprep.subr.mxu0 0.0
      %1264 = vmatpush2.msra.mxu0 0.0
      %1265 = vmatprep.subr.mxu0 0.0
      %1266 = vmatpush2.msra.mxu0 0.0
      %1267 = vmatprep.subr.mxu0 0.0
      %1268 = vmatpush2.msra.mxu0 0.0
      %1269 = vmatprep.subr.mxu0 0.0
      %1270 = vmatpush2.msra.mxu0 0.0
      %1271 = vmatprep.subr.mxu0 0.0
      %1272 = vmatpush2.msra.mxu0 0.0
      %1273 = vmatprep.subr.mxu0 0.0
      %1274 = vmatpush2.msra.mxu0 0.0
      %1275 = vmatprep.subr.mxu0 0.0
      %1276 = vmatpush2.msra.mxu0 0.0
      %1277 = vmatprep.subr.mxu0 0.0
      %1278 = vmatpush2.msra.mxu0 0.0
      %1279 = vmatprep.subr.mxu0 0.0
      %1280 = vmatpush2.msra.mxu0 0.0
      %1281 = vmatprep.subr.mxu0 0.0
      %1282 = vmatpush2.msra.mxu0 0.0
      %1283 = vmatprep.subr.mxu0 0.0
      %1284 = vmatpush2.msra.mxu0 0.0
      %1285 = vmatprep.subr.mxu0 0.0
      %1286 = vmatpush2.msra.mxu0 0.0
      %1287 = vmatprep.subr.mxu0 0.0
      %1288 = vmatpush2.msra.mxu0 0.0
      %1289 = vmatprep.subr.mxu0 0.0
      %1290 = vmatpush2.msra.mxu0 0.0
      %1291 = vmatprep.subr.mxu0 0.0
      %1292 = vmatpush2.msra.mxu0 0.0
      %1293 = vmatprep.mubr.f32.mxu0 0.0
      %1294 = vmatmul.mubr.f32.gmra.mxu0 %v1221
      %v1295 = vpop.f32.mrf.mxu0
      %v1296 = vadd.f32 0.0, %v1295
      %v1297 = vpop.f32.mrf.mxu0
      %1298 = vmatprep.mubr.f32.mxu0 0.0
      %1299 = vmatmul.mubr.f32.gmra.mxu0 %v1224
      %v1300 = vpop.f32.mrf.mxu0
      %v1301 = vadd.f32 0.0, %v1300
      %v1302 = vpop.f32.mrf.mxu0
      %1303 = vdwg.mxu0
      %v1304 = vadd.f32 %v1208, %v1296
      %v1305 = vadd.f32 %v1213, %v1301
      %v1306 = vld [vmem:[#allocation3 + $0x4] sm:$0xff]
      %v1307 = vld [vmem:[#allocation3 + $0xc] sm:$0xff]
      %s1308 = scalar_lea.vmem %s2, 24
      %v1309 = vld [vmem:[%s1308] sm:$0x3f]
      %v1311 = vsel %vm1037, %v1306, 0
      %v1314 = vsel %vm1037, %v1307, 0
      %v1317 = vsel %vm1053, %v1309, 0
      %1319 = vmatprep.subr.mxu0 0.0
      %1320 = vmatpush1.msra.mxu0 0.0
      %1321 = vmatprep.subr.mxu0 0.0
      %1322 = vmatpush1.msra.mxu0 0.0
      %1323 = vmatprep.subr.mxu0 0.0
      %1324 = vmatpush1.msra.mxu0 0.0
      %1325 = vmatprep.subr.mxu0 0.0
      %1326 = vmatpush1.msra.mxu0 0.0
      %1327 = vmatprep.subr.mxu0 0.0
      %1328 = vmatpush1.msra.mxu0 0.0
      %1329 = vmatprep.subr.mxu0 0.0
      %1330 = vmatpush1.msra.mxu0 0.0
      %1331 = vmatprep.subr.mxu0 0.0
      %1332 = vmatpush1.msra.mxu0 0.0
      %1333 = vmatprep.subr.mxu0 0.0
      %1334 = vmatpush1.msra.mxu0 0.0
      %1335 = vmatprep.subr.mxu0 0.0
      %1336 = vmatpush1.msra.mxu0 0.0
      %1337 = vmatprep.subr.mxu0 0.0
      %1338 = vmatpush1.msra.mxu0 0.0
      %1339 = vmatprep.subr.mxu0 0.0
      %1340 = vmatpush1.msra.mxu0 0.0
      %1341 = vmatprep.subr.mxu0 0.0
      %1342 = vmatpush1.msra.mxu0 0.0
      %1343 = vmatprep.subr.mxu0 0.0
      %1344 = vmatpush1.msra.mxu0 0.0
      %1345 = vmatprep.subr.mxu0 0.0
      %1346 = vmatpush1.msra.mxu0 0.0
      %1347 = vmatprep.subr.mxu0 0.0
      %1348 = vmatpush1.msra.mxu0 0.0
      %1349 = vmatprep.subr.mxu0 0.0
      %1350 = vmatpush1.msra.mxu0 %v1317
      %1351 = vmatprep.subr.mxu0 0.0
      %1352 = vmatpush2.msra.mxu0 0.0
      %1353 = vmatprep.subr.mxu0 0.0
      %1354 = vmatpush2.msra.mxu0 0.0
      %1355 = vmatprep.subr.mxu0 0.0
      %1356 = vmatpush2.msra.mxu0 0.0
      %1357 = vmatprep.subr.mxu0 0.0
      %1358 = vmatpush2.msra.mxu0 0.0
      %1359 = vmatprep.subr.mxu0 0.0
      %1360 = vmatpush2.msra.mxu0 0.0
      %1361 = vmatprep.subr.mxu0 0.0
      %1362 = vmatpush2.msra.mxu0 0.0
      %1363 = vmatprep.subr.mxu0 0.0
      %1364 = vmatpush2.msra.mxu0 0.0
      %1365 = vmatprep.subr.mxu0 0.0
      %1366 = vmatpush2.msra.mxu0 0.0
      %1367 = vmatprep.subr.mxu0 0.0
      %1368 = vmatpush2.msra.mxu0 0.0
      %1369 = vmatprep.subr.mxu0 0.0
      %1370 = vmatpush2.msra.mxu0 0.0
      %1371 = vmatprep.subr.mxu0 0.0
      %1372 = vmatpush2.msra.mxu0 0.0
      %1373 = vmatprep.subr.mxu0 0.0
      %1374 = vmatpush2.msra.mxu0 0.0
      %1375 = vmatprep.subr.mxu0 0.0
      %1376 = vmatpush2.msra.mxu0 0.0
      %1377 = vmatprep.subr.mxu0 0.0
      %1378 = vmatpush2.msra.mxu0 0.0
      %1379 = vmatprep.subr.mxu0 0.0
      %1380 = vmatpush2.msra.mxu0 0.0
      %1381 = vmatprep.subr.mxu0 0.0
      %1382 = vmatpush2.msra.mxu0 0.0
      %1383 = vmatprep.mubr.f32.mxu0 0.0
      %1384 = vmatmul.mubr.f32.gmra.mxu0 %v1311
      %v1385 = vpop.f32.mrf.mxu0
      %v1386 = vadd.f32 0.0, %v1385
      %v1387 = vpop.f32.mrf.mxu0
      %1388 = vmatprep.mubr.f32.mxu0 0.0
      %1389 = vmatmul.mubr.f32.gmra.mxu0 %v1314
      %v1390 = vpop.f32.mrf.mxu0
      %v1391 = vadd.f32 0.0, %v1390
      %v1392 = vpop.f32.mrf.mxu0
      %1393 = vdwg.mxu0
      %v1394 = vadd.f32 %v1304, %v1386
      %v1395 = vadd.f32 %v1305, %v1391
      %v1396 = vld [vmem:[#allocation3 + $0x5] sm:$0xff]
      %v1397 = vld [vmem:[#allocation3 + $0xd] sm:$0xff]
      %s1398 = scalar_lea.vmem %s2, 32
      %v1399 = vld [vmem:[%s1398] sm:$0x3f]
      %v1401 = vsel %vm1037, %v1396, 0
      %v1404 = vsel %vm1037, %v1397, 0
      %v1407 = vsel %vm1053, %v1399, 0
      %1409 = vmatprep.subr.mxu0 0.0
      %1410 = vmatpush1.msra.mxu0 0.0
      %1411 = vmatprep.subr.mxu0 0.0
      %1412 = vmatpush1.msra.mxu0 0.0
      %1413 = vmatprep.subr.mxu0 0.0
      %1414 = vmatpush1.msra.mxu0 0.0
      %1415 = vmatprep.subr.mxu0 0.0
      %1416 = vmatpush1.msra.mxu0 0.0
      %1417 = vmatprep.subr.mxu0 0.0
      %1418 = vmatpush1.msra.mxu0 0.0
      %1419 = vmatprep.subr.mxu0 0.0
      %1420 = vmatpush1.msra.mxu0 0.0
      %1421 = vmatprep.subr.mxu0 0.0
      %1422 = vmatpush1.msra.mxu0 0.0
      %1423 = vmatprep.subr.mxu0 0.0
      %1424 = vmatpush1.msra.mxu0 0.0
      %1425 = vmatprep.subr.mxu0 0.0
      %1426 = vmatpush1.msra.mxu0 0.0
      %1427 = vmatprep.subr.mxu0 0.0
      %1428 = vmatpush1.msra.mxu0 0.0
      %1429 = vmatprep.subr.mxu0 0.0
      %1430 = vmatpush1.msra.mxu0 0.0
      %1431 = vmatprep.subr.mxu0 0.0
      %1432 = vmatpush1.msra.mxu0 0.0
      %1433 = vmatprep.subr.mxu0 0.0
      %1434 = vmatpush1.msra.mxu0 0.0
      %1435 = vmatprep.subr.mxu0 0.0
      %1436 = vmatpush1.msra.mxu0 0.0
      %1437 = vmatprep.subr.mxu0 0.0
      %1438 = vmatpush1.msra.mxu0 0.0
      %1439 = vmatprep.subr.mxu0 0.0
      %1440 = vmatpush1.msra.mxu0 %v1407
      %1441 = vmatprep.subr.mxu0 0.0
      %1442 = vmatpush2.msra.mxu0 0.0
      %1443 = vmatprep.subr.mxu0 0.0
      %1444 = vmatpush2.msra.mxu0 0.0
      %1445 = vmatprep.subr.mxu0 0.0
      %1446 = vmatpush2.msra.mxu0 0.0
      %1447 = vmatprep.subr.mxu0 0.0
      %1448 = vmatpush2.msra.mxu0 0.0
      %1449 = vmatprep.subr.mxu0 0.0
      %1450 = vmatpush2.msra.mxu0 0.0
      %1451 = vmatprep.subr.mxu0 0.0
      %1452 = vmatpush2.msra.mxu0 0.0
      %1453 = vmatprep.subr.mxu0 0.0
      %1454 = vmatpush2.msra.mxu0 0.0
      %1455 = vmatprep.subr.mxu0 0.0
      %1456 = vmatpush2.msra.mxu0 0.0
      %1457 = vmatprep.subr.mxu0 0.0
      %1458 = vmatpush2.msra.mxu0 0.0
      %1459 = vmatprep.subr.mxu0 0.0
      %1460 = vmatpush2.msra.mxu0 0.0
      %1461 = vmatprep.subr.mxu0 0.0
      %1462 = vmatpush2.msra.mxu0 0.0
      %1463 = vmatprep.subr.mxu0 0.0
      %1464 = vmatpush2.msra.mxu0 0.0
      %1465 = vmatprep.subr.mxu0 0.0
      %1466 = vmatpush2.msra.mxu0 0.0
      %1467 = vmatprep.subr.mxu0 0.0
      %1468 = vmatpush2.msra.mxu0 0.0
      %1469 = vmatprep.subr.mxu0 0.0
      %1470 = vmatpush2.msra.mxu0 0.0
      %1471 = vmatprep.subr.mxu0 0.0
      %1472 = vmatpush2.msra.mxu0 0.0
      %1473 = vmatprep.mubr.f32.mxu0 0.0
      %1474 = vmatmul.mubr.f32.gmra.mxu0 %v1401
      %v1475 = vpop.f32.mrf.mxu0
      %v1476 = vadd.f32 0.0, %v1475
      %v1477 = vpop.f32.mrf.mxu0
      %1478 = vmatprep.mubr.f32.mxu0 0.0
      %1479 = vmatmul.mubr.f32.gmra.mxu0 %v1404
      %v1480 = vpop.f32.mrf.mxu0
      %v1481 = vadd.f32 0.0, %v1480
      %v1482 = vpop.f32.mrf.mxu0
      %1483 = vdwg.mxu0
      %v1484 = vadd.f32 %v1394, %v1476
      %v1485 = vadd.f32 %v1395, %v1481
      %v1486 = vld [vmem:[#allocation3 + $0x6] sm:$0xff]
      %v1487 = vld [vmem:[#allocation3 + $0xe] sm:$0xff]
      %s1488 = scalar_lea.vmem %s2, 40
      %v1489 = vld [vmem:[%s1488] sm:$0x3f]
      %v1491 = vsel %vm1037, %v1486, 0
      %v1494 = vsel %vm1037, %v1487, 0
      %v1497 = vsel %vm1053, %v1489, 0
      %1499 = vmatprep.subr.mxu0 0.0
      %1500 = vmatpush1.msra.mxu0 0.0
      %1501 = vmatprep.subr.mxu0 0.0
      %1502 = vmatpush1.msra.mxu0 0.0
      %1503 = vmatprep.subr.mxu0 0.0
      %1504 = vmatpush1.msra.mxu0 0.0
      %1505 = vmatprep.subr.mxu0 0.0
      %1506 = vmatpush1.msra.mxu0 0.0
      %1507 = vmatprep.subr.mxu0 0.0
      %1508 = vmatpush1.msra.mxu0 0.0
      %1509 = vmatprep.subr.mxu0 0.0
      %1510 = vmatpush1.msra.mxu0 0.0
      %1511 = vmatprep.subr.mxu0 0.0
      %1512 = vmatpush1.msra.mxu0 0.0
      %1513 = vmatprep.subr.mxu0 0.0
      %1514 = vmatpush1.msra.mxu0 0.0
      %1515 = vmatprep.subr.mxu0 0.0
      %1516 = vmatpush1.msra.mxu0 0.0
      %1517 = vmatprep.subr.mxu0 0.0
      %1518 = vmatpush1.msra.mxu0 0.0
      %1519 = vmatprep.subr.mxu0 0.0
      %1520 = vmatpush1.msra.mxu0 0.0
      %1521 = vmatprep.subr.mxu0 0.0
      %1522 = vmatpush1.msra.mxu0 0.0
      %1523 = vmatprep.subr.mxu0 0.0
      %1524 = vmatpush1.msra.mxu0 0.0
      %1525 = vmatprep.subr.mxu0 0.0
      %1526 = vmatpush1.msra.mxu0 0.0
      %1527 = vmatprep.subr.mxu0 0.0
      %1528 = vmatpush1.msra.mxu0 0.0
      %1529 = vmatprep.subr.mxu0 0.0
      %1530 = vmatpush1.msra.mxu0 %v1497
      %1531 = vmatprep.subr.mxu0 0.0
      %1532 = vmatpush2.msra.mxu0 0.0
      %1533 = vmatprep.subr.mxu0 0.0
      %1534 = vmatpush2.msra.mxu0 0.0
      %1535 = vmatprep.subr.mxu0 0.0
      %1536 = vmatpush2.msra.mxu0 0.0
      %1537 = vmatprep.subr.mxu0 0.0
      %1538 = vmatpush2.msra.mxu0 0.0
      %1539 = vmatprep.subr.mxu0 0.0
      %1540 = vmatpush2.msra.mxu0 0.0
      %1541 = vmatprep.subr.mxu0 0.0
      %1542 = vmatpush2.msra.mxu0 0.0
      %1543 = vmatprep.subr.mxu0 0.0
      %1544 = vmatpush2.msra.mxu0 0.0
      %1545 = vmatprep.subr.mxu0 0.0
      %1546 = vmatpush2.msra.mxu0 0.0
      %1547 = vmatprep.subr.mxu0 0.0
      %1548 = vmatpush2.msra.mxu0 0.0
      %1549 = vmatprep.subr.mxu0 0.0
      %1550 = vmatpush2.msra.mxu0 0.0
      %1551 = vmatprep.subr.mxu0 0.0
      %1552 = vmatpush2.msra.mxu0 0.0
      %1553 = vmatprep.subr.mxu0 0.0
      %1554 = vmatpush2.msra.mxu0 0.0
      %1555 = vmatprep.subr.mxu0 0.0
      %1556 = vmatpush2.msra.mxu0 0.0
      %1557 = vmatprep.subr.mxu0 0.0
      %1558 = vmatpush2.msra.mxu0 0.0
      %1559 = vmatprep.subr.mxu0 0.0
      %1560 = vmatpush2.msra.mxu0 0.0
      %1561 = vmatprep.subr.mxu0 0.0
      %1562 = vmatpush2.msra.mxu0 0.0
      %1563 = vmatprep.mubr.f32.mxu0 0.0
      %1564 = vmatmul.mubr.f32.gmra.mxu0 %v1491
      %v1565 = vpop.f32.mrf.mxu0
      %v1566 = vadd.f32 0.0, %v1565
      %v1567 = vpop.f32.mrf.mxu0
      %1568 = vmatprep.mubr.f32.mxu0 0.0
      %1569 = vmatmul.mubr.f32.gmra.mxu0 %v1494
      %v1570 = vpop.f32.mrf.mxu0
      %v1571 = vadd.f32 0.0, %v1570
      %v1572 = vpop.f32.mrf.mxu0
      %1573 = vdwg.mxu0
      %v1574 = vadd.f32 %v1484, %v1566
      %v1575 = vadd.f32 %v1485, %v1571
      %v1576 = vld [vmem:[#allocation3 + $0x7] sm:$0xff]
      %v1577 = vld [vmem:[#allocation3 + $0xf] sm:$0xff]
      %s1578 = scalar_lea.vmem %s2, 48
      %v1579 = vld [vmem:[%s1578] sm:$0x3f]
      %v1581 = vsel %vm1037, %v1576, 0
      %v1584 = vsel %vm1037, %v1577, 0
      %v1587 = vsel %vm1053, %v1579, 0
      %1589 = vmatprep.subr.mxu0 0.0
      %1590 = vmatpush1.msra.mxu0 0.0
      %1591 = vmatprep.subr.mxu0 0.0
      %1592 = vmatpush1.msra.mxu0 0.0
      %1593 = vmatprep.subr.mxu0 0.0
      %1594 = vmatpush1.msra.mxu0 0.0
      %1595 = vmatprep.subr.mxu0 0.0
      %1596 = vmatpush1.msra.mxu0 0.0
      %1597 = vmatprep.subr.mxu0 0.0
      %1598 = vmatpush1.msra.mxu0 0.0
      %1599 = vmatprep.subr.mxu0 0.0
      %1600 = vmatpush1.msra.mxu0 0.0
      %1601 = vmatprep.subr.mxu0 0.0
      %1602 = vmatpush1.msra.mxu0 0.0
      %1603 = vmatprep.subr.mxu0 0.0
      %1604 = vmatpush1.msra.mxu0 0.0
      %1605 = vmatprep.subr.mxu0 0.0
      %1606 = vmatpush1.msra.mxu0 0.0
      %1607 = vmatprep.subr.mxu0 0.0
      %1608 = vmatpush1.msra.mxu0 0.0
      %1609 = vmatprep.subr.mxu0 0.0
      %1610 = vmatpush1.msra.mxu0 0.0
      %1611 = vmatprep.subr.mxu0 0.0
      %1612 = vmatpush1.msra.mxu0 0.0
      %1613 = vmatprep.subr.mxu0 0.0
      %1614 = vmatpush1.msra.mxu0 0.0
      %1615 = vmatprep.subr.mxu0 0.0
      %1616 = vmatpush1.msra.mxu0 0.0
      %1617 = vmatprep.subr.mxu0 0.0
      %1618 = vmatpush1.msra.mxu0 0.0
      %1619 = vmatprep.subr.mxu0 0.0
      %1620 = vmatpush1.msra.mxu0 %v1587
      %1621 = vmatprep.subr.mxu0 0.0
      %1622 = vmatpush2.msra.mxu0 0.0
      %1623 = vmatprep.subr.mxu0 0.0
      %1624 = vmatpush2.msra.mxu0 0.0
      %1625 = vmatprep.subr.mxu0 0.0
      %1626 = vmatpush2.msra.mxu0 0.0
      %1627 = vmatprep.subr.mxu0 0.0
      %1628 = vmatpush2.msra.mxu0 0.0
      %1629 = vmatprep.subr.mxu0 0.0
      %1630 = vmatpush2.msra.mxu0 0.0
      %1631 = vmatprep.subr.mxu0 0.0
      %1632 = vmatpush2.msra.mxu0 0.0
      %1633 = vmatprep.subr.mxu0 0.0
      %1634 = vmatpush2.msra.mxu0 0.0
      %1635 = vmatprep.subr.mxu0 0.0
      %1636 = vmatpush2.msra.mxu0 0.0
      %1637 = vmatprep.subr.mxu0 0.0
      %1638 = vmatpush2.msra.mxu0 0.0
      %1639 = vmatprep.subr.mxu0 0.0
      %1640 = vmatpush2.msra.mxu0 0.0
      %1641 = vmatprep.subr.mxu0 0.0
      %1642 = vmatpush2.msra.mxu0 0.0
      %1643 = vmatprep.subr.mxu0 0.0
      %1644 = vmatpush2.msra.mxu0 0.0
      %1645 = vmatprep.subr.mxu0 0.0
      %1646 = vmatpush2.msra.mxu0 0.0
      %1647 = vmatprep.subr.mxu0 0.0
      %1648 = vmatpush2.msra.mxu0 0.0
      %1649 = vmatprep.subr.mxu0 0.0
      %1650 = vmatpush2.msra.mxu0 0.0
      %1651 = vmatprep.subr.mxu0 0.0
      %1652 = vmatpush2.msra.mxu0 0.0
      %1653 = vmatprep.mubr.f32.mxu0 0.0
      %1654 = vmatmul.mubr.f32.gmra.mxu0 %v1581
      %v1655 = vpop.f32.mrf.mxu0
      %v1656 = vadd.f32 0.0, %v1655
      %v1657 = vpop.f32.mrf.mxu0
      %1658 = vmatprep.mubr.f32.mxu0 0.0
      %1659 = vmatmul.mubr.f32.gmra.mxu0 %v1584
      %v1660 = vpop.f32.mrf.mxu0
      %v1661 = vadd.f32 0.0, %v1660
      %v1662 = vpop.f32.mrf.mxu0
      %1663 = vdwg.mxu0
      %v1664 = vadd.f32 %v1574, %v1656
      %v1665 = vadd.f32 %v1575, %v1661
      %v1666 = vld [vmem:[#allocation3 + $0x8] sm:$0xff]
      %v1667 = vld [vmem:[#allocation3 + $0x10] sm:$0xff]
      %s1668 = scalar_lea.vmem %s2, 56
      %v1669 = vld [vmem:[%s1668] sm:$0x3f]
      %v1671 = vsel %vm1037, %v1666, 0
      %v1674 = vsel %vm1037, %v1667, 0
      %v1677 = vsel %vm1053, %v1669, 0
      %1679 = vmatprep.subr.mxu0 0.0
      %1680 = vmatpush1.msra.mxu0 0.0
      %1681 = vmatprep.subr.mxu0 0.0
      %1682 = vmatpush1.msra.mxu0 0.0
      %1683 = vmatprep.subr.mxu0 0.0
      %1684 = vmatpush1.msra.mxu0 0.0
      %1685 = vmatprep.subr.mxu0 0.0
      %1686 = vmatpush1.msra.mxu0 0.0
      %1687 = vmatprep.subr.mxu0 0.0
      %1688 = vmatpush1.msra.mxu0 0.0
      %1689 = vmatprep.subr.mxu0 0.0
      %1690 = vmatpush1.msra.mxu0 0.0
      %1691 = vmatprep.subr.mxu0 0.0
      %1692 = vmatpush1.msra.mxu0 0.0
      %1693 = vmatprep.subr.mxu0 0.0
      %1694 = vmatpush1.msra.mxu0 0.0
      %1695 = vmatprep.subr.mxu0 0.0
      %1696 = vmatpush1.msra.mxu0 0.0
      %1697 = vmatprep.subr.mxu0 0.0
      %1698 = vmatpush1.msra.mxu0 0.0
      %1699 = vmatprep.subr.mxu0 0.0
      %1700 = vmatpush1.msra.mxu0 0.0
      %1701 = vmatprep.subr.mxu0 0.0
      %1702 = vmatpush1.msra.mxu0 0.0
      %1703 = vmatprep.subr.mxu0 0.0
      %1704 = vmatpush1.msra.mxu0 0.0
      %1705 = vmatprep.subr.mxu0 0.0
      %1706 = vmatpush1.msra.mxu0 0.0
      %1707 = vmatprep.subr.mxu0 0.0
      %1708 = vmatpush1.msra.mxu0 0.0
      %1709 = vmatprep.subr.mxu0 0.0
      %1710 = vmatpush1.msra.mxu0 %v1677
      %1711 = vmatprep.subr.mxu0 0.0
      %1712 = vmatpush2.msra.mxu0 0.0
      %1713 = vmatprep.subr.mxu0 0.0
      %1714 = vmatpush2.msra.mxu0 0.0
      %1715 = vmatprep.subr.mxu0 0.0
      %1716 = vmatpush2.msra.mxu0 0.0
      %1717 = vmatprep.subr.mxu0 0.0
      %1718 = vmatpush2.msra.mxu0 0.0
      %1719 = vmatprep.subr.mxu0 0.0
      %1720 = vmatpush2.msra.mxu0 0.0
      %1721 = vmatprep.subr.mxu0 0.0
      %1722 = vmatpush2.msra.mxu0 0.0
      %1723 = vmatprep.subr.mxu0 0.0
      %1724 = vmatpush2.msra.mxu0 0.0
      %1725 = vmatprep.subr.mxu0 0.0
      %1726 = vmatpush2.msra.mxu0 0.0
      %1727 = vmatprep.subr.mxu0 0.0
      %1728 = vmatpush2.msra.mxu0 0.0
      %1729 = vmatprep.subr.mxu0 0.0
      %1730 = vmatpush2.msra.mxu0 0.0
      %1731 = vmatprep.subr.mxu0 0.0
      %1732 = vmatpush2.msra.mxu0 0.0
      %1733 = vmatprep.subr.mxu0 0.0
      %1734 = vmatpush2.msra.mxu0 0.0
      %1735 = vmatprep.subr.mxu0 0.0
      %1736 = vmatpush2.msra.mxu0 0.0
      %1737 = vmatprep.subr.mxu0 0.0
      %1738 = vmatpush2.msra.mxu0 0.0
      %1739 = vmatprep.subr.mxu0 0.0
      %1740 = vmatpush2.msra.mxu0 0.0
      %1741 = vmatprep.subr.mxu0 0.0
      %1742 = vmatpush2.msra.mxu0 0.0
      %1743 = vmatprep.mubr.f32.mxu0 0.0
      %1744 = vmatmul.mubr.f32.gmra.mxu0 %v1671
      %v1745 = vpop.f32.mrf.mxu0
      %v1746 = vadd.f32 0.0, %v1745
      %v1747 = vpop.f32.mrf.mxu0
      %1748 = vmatprep.mubr.f32.mxu0 0.0
      %1749 = vmatmul.mubr.f32.gmra.mxu0 %v1674
      %v1750 = vpop.f32.mrf.mxu0
      %v1751 = vadd.f32 0.0, %v1750
      %v1752 = vpop.f32.mrf.mxu0
      %1753 = vdwg.mxu0
      %v1754 = vadd.f32 %v1664, %v1746
      %v1755 = vadd.f32 %v1665, %v1751
      %v1756 = vld [vmem:[%s3] sm:$0x1]
      %v1758 = vlaneseq
      %v1759 = vshrl.u32 %v1758, 7
      %v1760 = vsub.s32 0, %v1759
      %v1761 = vrot.slane %v1756, %v1760
      %v1763 = vadd.f32 %v1754, %v1761
      %v1764 = vadd.f32 %v1755, %v1761
      %v1765 = vmax.f32 %v1763, 0.0
      %v1766 = vmax.f32 %v1764, 0.0
      %v1767 = vld [vmem:[%s306] sm:$0xff]
      %v1768 = vld [vmem:[%s306 + $0x8] sm:$0xff]
      %v1769 = vld [vmem:[%s4] sm:$0xff]
      %v1770 = vld [vmem:[%s5] sm:$0x1]
      %v1772 = vlaneseq
      %v1773 = vshrl.u32 %v1772, 7
      %v1774 = vsub.s32 0, %v1773
      %v1775 = vrot.slane %v1770, %v1774
      %v1778 = vsel %vm332, %v1767, 0
      %v1781 = vsel %vm332, %v1768, 0
      %1783 = vmatprep.subr.mxu0 0.0
      %1784 = vmatpush1.msra.mxu0 0.0
      %1785 = vmatprep.subr.mxu0 0.0
      %1786 = vmatpush1.msra.mxu0 0.0
      %1787 = vmatprep.subr.mxu0 0.0
      %1788 = vmatpush1.msra.mxu0 0.0
      %1789 = vmatprep.subr.mxu0 0.0
      %1790 = vmatpush1.msra.mxu0 0.0
      %1791 = vmatprep.subr.mxu0 0.0
      %1792 = vmatpush1.msra.mxu0 0.0
      %1793 = vmatprep.subr.mxu0 0.0
      %1794 = vmatpush1.msra.mxu0 0.0
      %1795 = vmatprep.subr.mxu0 0.0
      %1796 = vmatpush1.msra.mxu0 0.0
      %1797 = vmatprep.subr.mxu0 0.0
      %1798 = vmatpush1.msra.mxu0 0.0
      %1799 = vmatprep.subr.mxu0 0.0
      %1800 = vmatpush1.msra.mxu0 0.0
      %1801 = vmatprep.subr.mxu0 0.0
      %1802 = vmatpush1.msra.mxu0 0.0
      %1803 = vmatprep.subr.mxu0 0.0
      %1804 = vmatpush1.msra.mxu0 0.0
      %1805 = vmatprep.subr.mxu0 0.0
      %1806 = vmatpush1.msra.mxu0 0.0
      %1807 = vmatprep.subr.mxu0 0.0
      %1808 = vmatpush1.msra.mxu0 0.0
      %1809 = vmatprep.subr.mxu0 0.0
      %1810 = vmatpush1.msra.mxu0 0.0
      %1811 = vmatprep.subr.mxu0 0.0
      %1812 = vmatpush1.msra.mxu0 0.0
      %1813 = vmatprep.subr.mxu0 0.0
      %1814 = vmatpush1.msra.mxu0 %v1769
      %1815 = vmatprep.subr.mxu0 0.0
      %1816 = vmatpush2.msra.mxu0 0.0
      %1817 = vmatprep.subr.mxu0 0.0
      %1818 = vmatpush2.msra.mxu0 0.0
      %1819 = vmatprep.subr.mxu0 0.0
      %1820 = vmatpush2.msra.mxu0 0.0
      %1821 = vmatprep.subr.mxu0 0.0
      %1822 = vmatpush2.msra.mxu0 0.0
      %1823 = vmatprep.subr.mxu0 0.0
      %1824 = vmatpush2.msra.mxu0 0.0
      %1825 = vmatprep.subr.mxu0 0.0
      %1826 = vmatpush2.msra.mxu0 0.0
      %1827 = vmatprep.subr.mxu0 0.0
      %1828 = vmatpush2.msra.mxu0 0.0
      %1829 = vmatprep.subr.mxu0 0.0
      %1830 = vmatpush2.msra.mxu0 0.0
      %1831 = vmatprep.subr.mxu0 0.0
      %1832 = vmatpush2.msra.mxu0 0.0
      %1833 = vmatprep.subr.mxu0 0.0
      %1834 = vmatpush2.msra.mxu0 0.0
      %1835 = vmatprep.subr.mxu0 0.0
      %1836 = vmatpush2.msra.mxu0 0.0
      %1837 = vmatprep.subr.mxu0 0.0
      %1838 = vmatpush2.msra.mxu0 0.0
      %1839 = vmatprep.subr.mxu0 0.0
      %1840 = vmatpush2.msra.mxu0 0.0
      %1841 = vmatprep.subr.mxu0 0.0
      %1842 = vmatpush2.msra.mxu0 0.0
      %1843 = vmatprep.subr.mxu0 0.0
      %1844 = vmatpush2.msra.mxu0 0.0
      %1845 = vmatprep.subr.mxu0 0.0
      %1846 = vmatpush2.msra.mxu0 0.0
      %1847 = vmatprep.mubr.f32.mxu0 0.0
      %1848 = vmatmul.mubr.f32.gmra.mxu0 %v1778
      %v1849 = vpop.f32.mrf.mxu0
      %v1850 = vadd.f32 %v1775, %v1849
      %v1851 = vpop.f32.mrf.mxu0
      %1852 = vmatprep.mubr.f32.mxu0 0.0
      %1853 = vmatmul.mubr.f32.gmra.mxu0 %v1781
      %v1854 = vpop.f32.mrf.mxu0
      %v1855 = vadd.f32 %v1775, %v1854
      %v1856 = vpop.f32.mrf.mxu0
      %1857 = vdwg.mxu0
      %v1858 = vadd.f32 %v1765, %v1850
      %v1859 = vadd.f32 %v1766, %v1855
      %v1860 = vmax.f32 %v1858, 0.0
      %v1861 = vmax.f32 %v1859, 0.0
      %1862 = vst.msk [vmem:[%s316] sm:$0xff] %vm1037, %v1860
      %1863 = vst.msk [vmem:[%s316 + $0x8] sm:$0xff] %vm1037, %v1861
      %p1864 = scmp.ne.s32.totalorder %s23, 0
      // Predicated region
      $region53: #{_lambda_.5} parent=47 // pred_check
        %p1865 = pneg %p1864
      $region54: #{_lambda_.5} parent=47 // pred_check_branch
        %1867 = sbr.rel (%p1865) target = $region56
      $region55: #{_lambda_.5} parent=47 // pred_region
        %v1868 = vld [vmem:[#allocation2 + $0x10] sm:$0xff]
        %1869 = vst.msk [vmem:[#allocation2] sm:$0xff] %vm332, %v1868
        %v1870 = vld [vmem:[#allocation3 + $0x10] sm:$0xff]
        %1871 = vst.msk [vmem:[#allocation3] sm:$0xff] %vm1037, %v1870
      $region56: #{_lambda_.5} parent=47 // pred_fallthru
        _
      %s1872 = smul.u32 2, %s23
      %p1873 = scmp.lt.s32.totalorder %s22, 1
      %s1874 = scalar_select %p1873, %s22, 1
      %p1875 = scmp.lt.s32.totalorder %s1872, 1
      %s1876 = scalar_select %p1875, %s1872, 1
      %s1877 = smul.addr %s1874, 2
      %s1878 = sadd.s32 %s1876, %s1877
      %s1879 = smul.addr %s1878, 8
      %s1880 = scalar_lea.vmem %s7, %s1879
      // Predicated region
      $region57: #{_lambda_.5} parent=47 // pred_check
        %p1881 = pneg %p204
      $region58: #{_lambda_.5} parent=47 // pred_check_branch
        %1883 = sbr.rel (%p1881) target = $region60
      $region59: #{_lambda_.5} parent=47 // pred_region
        %s1884 = smul.u32 2, %s23
      $region60: #{_lambda_.5} parent=47 // pred_fallthru
        _
    $region48: #{_lambda_.5} parent=5 // pred_fallthru
      _
    %p1885 = scmp.le.s32.totalorder 2, %s13
    // Predicated region
    $region61: #{_lambda_.5} parent=5 // pred_check
      %p1886 = pneg %p1885
    $region62: #{_lambda_.5} parent=5 // pred_check_branch
      %1888 = sbr.rel (%p1886) target = $region64
    $region63: #{_lambda_.5} parent=5 // pred_region
      %s1889 = ssub.s32 %s13, 2
      // Predicated region
      $region65: #{_lambda_.5} parent=63 // pred_check
        %p1890 = pneg %p210
      $region66: #{_lambda_.5} parent=63 // pred_check_branch
        %1892 = sbr.rel (%p1890) target = $region68
      $region67: #{_lambda_.5} parent=63 // pred_region
        %s1893 = smul.u32 2, %s25
        %p1894 = scmp.lt.s32.totalorder %s24, 1
        %s1895 = scalar_select %p1894, %s24, 1
        %p1896 = scmp.lt.s32.totalorder %s1893, 1
        %s1897 = scalar_select %p1896, %s1893, 1
        %s1898 = smul.addr %s1895, 2
        %s1899 = sadd.s32 %s1897, %s1898
        %s1900 = smul.addr %s1899, 8
        %s1901 = scalar_lea.vmem %s7, %s1900
      $region68: #{_lambda_.5} parent=63 // pred_fallthru
        _
    $region64: #{_lambda_.5} parent=5 // pred_fallthru
      _
  $region6: #{_lambda_.5} parent=0 // loop_footer
    %s17 = sadd.s32 1, %s13
  $region7: #{_lambda_.5} parent=0 // loop_footer_branch
    %12 = sbr.rel target = $region3
  $region8: #{_lambda_.5} parent=0 // loop_exit
    _

</llo_original>
